<compile_context>
chip_gen: v6e
topology: v6e:2x2x1
jax: 0.10.0
libtpu: 0.0.40
codegen_flags: <defaults>
</compile_context>

<pallas_src>
import numpy as np
import jax
import jax.numpy as jnp
from jax.experimental import pallas as pl
from jax.experimental.pallas import tpu as pltpu

# ----------------------------- synthetic task configuration -----------------------------
BS = 2                      # env batch size
N_AGENTS = 3
N_ENEMIES = 3
N_ALLIES = N_AGENTS - 1
OBS_OWN = 10                # own-feature dim
OBS_NF_EN = 6               # per-enemy obs feature dim
OBS_NF_AL = 5               # per-ally obs feature dim
ID_LEN = 4                  # args.id_length
MAX_AGENT = 8               # args.max_agent
N_ACT_NO_ATTACK = 6
N_ACTIONS = N_ACT_NO_ATTACK + N_ENEMIES          # last_action_shape
OBS_DIM = OBS_OWN + N_ENEMIES * OBS_NF_EN + N_ALLIES * OBS_NF_AL

ENTITY_EMBED = 32           # args.entity_embed_dim
HEADS = 4                   # args.head
DEPTH = 2                   # args.depth
NUM_STACK_FRAMES = 1        # args.num_stack_frames

# sc2-style wrapping (obs_last_action=True): own gets id + compact action, enemy gets +1 bit
WRAPPED_OWN = OBS_OWN + ID_LEN + (N_ACT_NO_ATTACK + 1)
OBS_EN_DIM = OBS_NF_EN + 1
OBS_AL_DIM = OBS_NF_AL
SEQ = 1 + N_ENEMIES + N_ALLIES + 1               # [own | enemies | allies | history]
N_FLAT = BS * N_AGENTS                           # flattened batch (bs * n_agents)
NS = N_FLAT * SEQ                                # total token rows in one kernel call

# packed-encoder column layout:  [own(21) | enemy(7) | ally(5) | hist(32) | b_own b_en b_al]
OFF_EN = WRAPPED_OWN                             # 21
OFF_AL = OFF_EN + OBS_EN_DIM                     # 28
OFF_HID = OFF_AL + OBS_AL_DIM                    # 33
OFF_BIAS = OFF_HID + ENTITY_EMBED                # 65
PACK_DIM = OFF_BIAS + 3                          # 68


# ----------------------------- parameter init (deterministic) -----------------------------
def init_params(key):
    E, H, D = ENTITY_EMBED, HEADS, DEPTH
    keys = list(jax.random.split(key, 64))
    kit = iter(keys)

    def lin(i, o):
        lim = 1.0 / np.sqrt(i)
        w = jax.random.uniform(next(kit), (i, o), jnp.float32, -lim, lim)
        b = jax.random.uniform(next(kit), (1, o), jnp.float32, -lim, lim)
        return w, b

    def lin_nb(i, o, lead=()):
        lim = 1.0 / np.sqrt(i)
        return jax.random.uniform(next(kit), lead + (i, o), jnp.float32, -lim, lim)

    p = {}
    p['w_own'], p['b_own'] = lin(WRAPPED_OWN, E)      # own_value
    p['w_en'], p['b_en'] = lin(OBS_EN_DIM, E)         # enemy_value
    p['w_al'], p['b_al'] = lin(OBS_AL_DIM, E)         # ally_value
    # transformer (UPDeT/ODIS definition): per-layer SelfAttention + FFN
    p['wq'] = lin_nb(E, H * E, (D,))
    p['wk'] = lin_nb(E, H * E, (D,))
    p['wv'] = lin_nb(E, H * E, (D,))
    p['wu'] = lin_nb(H * E, E, (D,))
    lim = 1.0 / np.sqrt(H * E)
    p['bu'] = jax.random.uniform(next(kit), (D, 1, E), jnp.float32, -lim, lim)
    p['g1'] = jnp.ones((D, 1, E), jnp.float32)
    p['be1'] = jnp.zeros((D, 1, E), jnp.float32)
    p['g2'] = jnp.ones((D, 1, E), jnp.float32)
    p['be2'] = jnp.zeros((D, 1, E), jnp.float32)
    p['wf1'] = lin_nb(E, 4 * E, (D,))
    lim = 1.0 / np.sqrt(E)
    p['bf1'] = jax.random.uniform(next(kit), (D, 1, 4 * E), jnp.float32, -lim, lim)
    p['wf2'] = lin_nb(4 * E, E, (D,))
    lim = 1.0 / np.sqrt(4 * E)
    p['bf2'] = jax.random.uniform(next(kit), (D, 1, E), jnp.float32, -lim, lim)
    p['w_tp'], p['b_tp'] = lin(E, E)                  # toprobs
    return p


# ----------------------------- Pallas kernel (single invocation, whole batch) -----------------------------
def planner_kernel(xp_ref, bias_ref, enc_ref, wqkv_ref, wu_ref,
                   wf1_ref, wf2_ref, bf1_ref, vecs_ref, wtp_ref, btp_ref,
                   out_ref):
    f32 = jnp.float32
    E = ENTITY_EMBED
    HE = HEADS * E
    eps = 1e-5
    scale = 1.0 / (E ** 0.25)      # UPDeT scales q and k each by E**(-1/4)

    bias = bias_ref[...]           # (NS, NS) additive block-diagonal mask (0 / -1e9)

    # fused entity encoders + history pass-through: one block-diagonal matmul
    x = jnp.dot(xp_ref[...], enc_ref[...], preferred_element_type=f32)   # (NS, E)

    def layernorm(v, g, b):
        m = jnp.mean(v, axis=-1, keepdims=True)
        var = jnp.mean((v - m) ** 2, axis=-1, keepdims=True)
        return (v - m) * jax.lax.rsqrt(var + eps) * g + b

    for d in range(DEPTH):
        vec = vecs_ref[d]          # (6, E): rows = [bu, g1, be1, bf2, g2, be2]
        wu_d = wu_ref[d]           # (H*E, E)

        # fused QKV projection: one MXU push, lane-aligned q/k/v slices
        qkv = jnp.dot(x, wqkv_ref[d], preferred_element_type=f32)        # (NS, 3*H*E)

        # residual + attention-output bias; heads accumulate directly against wu slices
        y = x + vec[0:1]
        for h in range(HEADS):
            qh = qkv[:, h * E:(h + 1) * E] * scale
            kh = qkv[:, HE + h * E:HE + (h + 1) * E] * scale
            vh = qkv[:, 2 * HE + h * E:2 * HE + (h + 1) * E]
            sc = jax.lax.dot_general(qh, kh, (((1,), (1,)), ((), ())),
                                     preferred_element_type=f32) + bias  # (NS, NS)
            sc = sc - jnp.max(sc, axis=-1, keepdims=True)
            ex = jnp.exp(sc)
            attn = ex * pl.reciprocal(jnp.sum(ex, axis=-1, keepdims=True), approx=True)
            ho = jnp.dot(attn, vh, preferred_element_type=f32)           # (NS, E)
            y = y + jnp.dot(ho, wu_d[h * E:(h + 1) * E], preferred_element_type=f32)
        x = layernorm(y, vec[1:2], vec[2:3])

        ff = jnp.dot(x, wf1_ref[d], preferred_element_type=f32) + bf1_ref[d]
        ff = jnp.maximum(ff, 0.0)
        ff = jnp.dot(ff, wf2_ref[d], preferred_element_type=f32) + vec[3:4]
        x = layernorm(ff + x, vec[4:5], vec[5:6])

    # toprobs
    out_ref[...] = jnp.dot(x, wtp_ref[...], preferred_element_type=f32) + btp_ref[...]


def pallas_transformer(xp, attn_bias, enc_w, wqkv, wu, wf1, wf2, bf1, vecs, w_tp, b_tp):
    args = (xp, attn_bias, enc_w, wqkv, wu, wf1, wf2, bf1, vecs, w_tp, b_tp)

    def full_spec(a):
        nd = a.ndim
        return pl.BlockSpec(a.shape, lambda i, nd=nd: (0,) * nd)

    return pl.pallas_call(
        planner_kernel,
        out_shape=jax.ShapeDtypeStruct((NS, ENTITY_EMBED), jnp.float32),
        grid=(1,),                                        # single step: whole batch at once
        in_specs=[full_spec(a) for a in args],
        out_specs=pl.BlockSpec((NS, ENTITY_EMBED), lambda i: (0, 0)),
        compiler_params=pltpu.CompilerParams(dimension_semantics=("arbitrary",)),
    )(*args)


# ----------------------------- glue: obs / action decomposition -----------------------------
def binary_embed(value, bit_length, max_value):
    assert value <= max_value
    bits = [int(c) for c in bin(value)[2:]]
    bits = [0] * (bit_length - len(bits)) + bits
    return np.array(bits, dtype=np.float32)


def preprocess(inputs, hidden_state):
    # inputs: (N_FLAT, OBS_DIM + N_ACTIONS + ID_LEN)  (trailing id part is overwritten in
    #  the original forward, so it is unused here as well)
    obs = inputs[:, :OBS_DIM]
    last_action = inputs[:, OBS_DIM:OBS_DIM + N_ACTIONS]

    own_obs = obs[:, :OBS_OWN]
    enemy_feats = obs[:, OBS_OWN:OBS_OWN + N_ENEMIES * OBS_NF_EN].reshape(N_FLAT, N_ENEMIES, OBS_NF_EN)
    ally_feats = obs[:, OBS_OWN + N_ENEMIES * OBS_NF_EN:].reshape(N_FLAT, N_ALLIES, OBS_NF_AL)

    ids = np.stack([binary_embed(i + 1, ID_LEN, MAX_AGENT) for i in range(N_AGENTS)], 0)
    agent_id = jnp.asarray(np.tile(ids, (BS, 1)), jnp.float32)                 # (N, ID_LEN)

    no_attack = last_action[:, :N_ACT_NO_ATTACK]
    attack = last_action[:, N_ACT_NO_ATTACK:]                                  # (N, n_en)
    compact = jnp.concatenate([no_attack, attack.sum(-1, keepdims=True)], -1)  # (N, nna+1)

    own_in = jnp.concatenate([own_obs, agent_id, compact], -1)                 # (N, WRAPPED_OWN)
    enemy_in = jnp.concatenate([enemy_feats, attack[..., None]], -1)           # (N, n_en, OBS_EN_DIM)
    ally_in = ally_feats                                                       # (N, n_al, OBS_AL_DIM)
    hid = hidden_state.reshape(N_FLAT, ENTITY_EMBED)                           # (N, E)
    return own_in, enemy_in, ally_in, hid


def pack_tokens(own_in, enemy_in, ally_in, hid):
    """Place each token's raw features in its column range of a (NS, PACK_DIM) array
    plus a one-hot bias indicator, so the in-kernel encoder is a single matmul."""
    f32 = jnp.float32
    n = N_FLAT

    def z(*shape):
        return jnp.zeros(shape, f32)

    own_row = jnp.concatenate(
        [own_in, z(n, OBS_EN_DIM + OBS_AL_DIM + ENTITY_EMBED),
         jnp.ones((n, 1), f32), z(n, 2)], axis=-1)[:, None, :]                 # (n,1,PACK)
    en_rows = jnp.concatenate(
        [z(n, N_ENEMIES, OFF_EN), enemy_in,
         z(n, N_ENEMIES, OBS_AL_DIM + ENTITY_EMBED + 1),
         jnp.ones((n, N_ENEMIES, 1), f32), z(n, N_ENEMIES, 1)], axis=-1)       # (n,3,PACK)
    al_rows = jnp.concatenate(
        [z(n, N_ALLIES, OFF_AL), ally_in,
         z(n, N_ALLIES, ENTITY_EMBED + 2),
         jnp.ones((n, N_ALLIES, 1), f32)], axis=-1)                            # (n,2,PACK)
    hid_row = jnp.concatenate([z(n, OFF_HID), hid, z(n, 3)],
                              axis=-1)[:, None, :]                             # (n,1,PACK)
    xp = jnp.concatenate([own_row, en_rows, al_rows, hid_row], axis=1)         # (n,SEQ,PACK)
    return xp.reshape(NS, PACK_DIM)


def build_enc_weight(p):
    # block-diagonal fused encoder: [w_own; w_en; w_al; I(hist pass-through); b_own; b_en; b_al]
    return jnp.concatenate(
        [p['w_own'], p['w_en'], p['w_al'],
         jnp.eye(ENTITY_EMBED, dtype=jnp.float32),
         p['b_own'], p['b_en'], p['b_al']], axis=0)                            # (PACK_DIM, E)


def build_attn_bias():
    # per-sample block-diagonal additive mask over the flattened token rows
    blk = np.repeat(np.arange(N_FLAT), SEQ)
    mask = blk[:, None] == blk[None, :]
    return jnp.asarray(np.where(mask, 0.0, -1e9).astype(np.float32))           # (NS, NS)


def planner_forward(inputs, hidden_state, params):
    own_in, enemy_in, ally_in, hid = preprocess(inputs, hidden_state)
    xp = pack_tokens(own_in, enemy_in, ally_in, hid)

    # weight packing (fusions could be cached once per model; cheap either way)
    enc_w = build_enc_weight(params)
    wqkv = jnp.concatenate([params['wq'], params['wk'], params['wv']], axis=-1)   # (D,E,3HE)
    vecs = jnp.concatenate([params['bu'], params['g1'], params['be1'],
                            params['bf2'], params['g2'], params['be2']], axis=1)  # (D,6,E)
    attn_bias = build_attn_bias()

    out_flat = pallas_transformer(xp, attn_bias, enc_w, wqkv, params['wu'],
                                  params['wf1'], params['wf2'], params['bf1'],
                                  vecs, params['w_tp'], params['b_tp'])            # (NS, E)
    out = out_flat.reshape(N_FLAT, SEQ, ENTITY_EMBED)

    h = out[:, -1]                                                                 # history token
    tokens = out[:, :-1]
    own_out_h = tokens[:, 0:1]
    enemy_out_h = tokens[:, 1:1 + N_ENEMIES]
    ally_out_h = tokens[:, 1 + N_ENEMIES:1 + N_ENEMIES + N_ALLIES]
    out_loss = jnp.float32(0.0)       # loss_out=False / vq_skill=False path
    return [own_out_h, enemy_out_h, ally_out_h], h, out_loss


# ----------------------------- pure-JAX reference (for verification) -----------------------------
def ref_transformer(own_in, enemy_in, ally_in, hid, p):
    E, H = ENTITY_EMBED, HEADS
    own_h = (own_in @ p['w_own'] + p['b_own'])[:, None, :]
    en_h = enemy_in @ p['w_en'] + p['b_en']
    al_h = ally_in @ p['w_al'] + p['b_al']
    x = jnp.concatenate([own_h, en_h, al_h, hid[:, None, :]], axis=1)        # (N, SEQ, E)

    def ln(v, g, b):
        m = v.mean(-1, keepdims=True)
        var = ((v - m) ** 2).mean(-1, keepdims=True)
        return (v - m) * jax.lax.rsqrt(var + 1e-5) * g + b

    scale = 1.0 / (E ** 0.25)
    for d in range(DEPTH):
        q = (x @ p['wq'][d]).reshape(N_FLAT, SEQ, H, E).transpose(0, 2, 1, 3)
        k = (x @ p['wk'][d]).reshape(N_FLAT, SEQ, H, E).transpose(0, 2, 1, 3)
        v = (x @ p['wv'][d]).reshape(N_FLAT, SEQ, H, E).transpose(0, 2, 1, 3)
        dot = jnp.einsum('bhqe,bhke->bhqk', q * scale, k * scale)
        attn = jax.nn.softmax(dot, axis=-1)
        o = jnp.einsum('bhqk,bhke->bhqe', attn, v).transpose(0, 2, 1, 3).reshape(N_FLAT, SEQ, H * E)
        attended = o @ p['wu'][d] + p['bu'][d]
        x = ln(attended + x, p['g1'][d], p['be1'][d])
        ff = jax.nn.relu(x @ p['wf1'][d] + p['bf1'][d]) @ p['wf2'][d] + p['bf2'][d]
        x = ln(ff + x, p['g2'][d], p['be2'][d])
    return x @ p['w_tp'] + p['b_tp']


# ----------------------------- main -----------------------------
if __name__ == "__main__":
    key = jax.random.PRNGKey(0)
    kp, kin, kh, ka = jax.random.split(key, 4)
    params = init_params(kp)

    obs = jax.random.normal(kin, (N_FLAT, OBS_DIM), jnp.float32)
    act_idx = jax.random.randint(ka, (N_FLAT,), 0, N_ACTIONS)
    last_action = jax.nn.one_hot(act_idx, N_ACTIONS, dtype=jnp.float32)
    id_pad = jnp.zeros((N_FLAT, ID_LEN), jnp.float32)       # unused (overwritten in forward)
    inputs = jnp.concatenate([obs, last_action, id_pad], -1)          # (N_FLAT, 51)
    hidden_state = jax.random.normal(kh, (N_FLAT, ENTITY_EMBED), jnp.float32) * 0.1

    (own_out, enemy_out, ally_out), h, out_loss = planner_forward(inputs, hidden_state, params)
    jax.block_until_ready((own_out, enemy_out, ally_out, h, out_loss))

    # verify against pure-JAX reference (tolerance covers approx-reciprocal softmax)
    own_in, enemy_in, ally_in, hid = preprocess(inputs, hidden_state)
    ref_out = ref_transformer(own_in, enemy_in, ally_in, hid, params)
    ref_h = ref_out[:, -1]
    ref_tokens = ref_out[:, :-1]
    np.testing.assert_allclose(np.asarray(own_out), np.asarray(ref_tokens[:, 0:1]),
                               rtol=1e-3, atol=1e-3)
    np.testing.assert_allclose(np.asarray(enemy_out), np.asarray(ref_tokens[:, 1:1 + N_ENEMIES]),
                               rtol=1e-3, atol=1e-3)
    np.testing.assert_allclose(np.asarray(ally_out),
                               np.asarray(ref_tokens[:, 1 + N_ENEMIES:1 + N_ENEMIES + N_ALLIES]),
                               rtol=1e-3, atol=1e-3)
    np.testing.assert_allclose(np.asarray(h), np.asarray(ref_h), rtol=1e-3, atol=1e-3)

    print("KERNEL_OK")
</pallas_src>

<mosaic_0001>
module attributes {stable_mosaic.version = 11 : i64} {
  func.func @planner_kernel(%arg0: i32, %arg1: memref<42x68xf32, #tpu.memory_space<vmem>>, %arg2: memref<42x42xf32, #tpu.memory_space<vmem>>, %arg3: memref<68x32xf32, #tpu.memory_space<vmem>>, %arg4: memref<2x32x384xf32, #tpu.memory_space<vmem>>, %arg5: memref<2x128x32xf32, #tpu.memory_space<vmem>>, %arg6: memref<2x32x128xf32, #tpu.memory_space<vmem>>, %arg7: memref<2x128x32xf32, #tpu.memory_space<vmem>>, %arg8: memref<2x1x128xf32, #tpu.memory_space<vmem>>, %arg9: memref<2x6x32xf32, #tpu.memory_space<vmem>>, %arg10: memref<32x32xf32, #tpu.memory_space<vmem>>, %arg11: memref<1x32xf32, #tpu.memory_space<vmem>>, %arg12: memref<42x32xf32, #tpu.memory_space<vmem>>) attributes {dimension_semantics = [#tpu.dimension_semantics<arbitrary>], iteration_bounds = array<i64: 1>, scalar_prefetch = 0 : i64, scratch_operands = 0 : i64, tpu.core_type = #tpu.core_type<tc>, window_params = [{pipeline_mode = #tpu.pipeline_mode<synchronous>, transform_indices = @transform_0, window_bounds = array<i64: 42, 68>}, {pipeline_mode = #tpu.pipeline_mode<synchronous>, transform_indices = @transform_1, window_bounds = array<i64: 42, 42>}, {pipeline_mode = #tpu.pipeline_mode<synchronous>, transform_indices = @transform_2, window_bounds = array<i64: 68, 32>}, {pipeline_mode = #tpu.pipeline_mode<synchronous>, transform_indices = @transform_3, window_bounds = array<i64: 2, 32, 384>}, {pipeline_mode = #tpu.pipeline_mode<synchronous>, transform_indices = @transform_4, window_bounds = array<i64: 2, 128, 32>}, {pipeline_mode = #tpu.pipeline_mode<synchronous>, transform_indices = @transform_5, window_bounds = array<i64: 2, 32, 128>}, {pipeline_mode = #tpu.pipeline_mode<synchronous>, transform_indices = @transform_6, window_bounds = array<i64: 2, 128, 32>}, {pipeline_mode = #tpu.pipeline_mode<synchronous>, transform_indices = @transform_7, window_bounds = array<i64: 2, 1, 128>}, {pipeline_mode = #tpu.pipeline_mode<synchronous>, transform_indices = @transform_8, window_bounds = array<i64: 2, 6, 32>}, {pipeline_mode = #tpu.pipeline_mode<synchronous>, transform_indices = @transform_9, window_bounds = array<i64: 32, 32>}, {pipeline_mode = #tpu.pipeline_mode<synchronous>, transform_indices = @transform_10, window_bounds = array<i64: 1, 32>}, {pipeline_mode = #tpu.pipeline_mode<synchronous>, transform_indices = @transform_11, window_bounds = array<i64: 42, 32>}]} {
    %c0 = arith.constant 0 : index
    %c0_0 = arith.constant 0 : index
    %0 = vector.load %arg2[%c0, %c0_0] : memref<42x42xf32, #tpu.memory_space<vmem>>, vector<42x42xf32>
    %c0_1 = arith.constant 0 : index
    %c0_2 = arith.constant 0 : index
    %1 = vector.load %arg1[%c0_1, %c0_2] : memref<42x68xf32, #tpu.memory_space<vmem>>, vector<42x68xf32>
    %c0_3 = arith.constant 0 : index
    %c0_4 = arith.constant 0 : index
    %2 = vector.load %arg3[%c0_3, %c0_4] : memref<68x32xf32, #tpu.memory_space<vmem>>, vector<68x32xf32>
    %cst = arith.constant dense<0.000000e+00> : vector<42x32xf32>
    %3 = tpu.matmul %1, %2, %cst {dimension_numbers = #tpu.dot_dimension_numbers<[1], [0], [0], [1], [0, 0, 1, 1], [], []>} : vector<42x68xf32>, vector<68x32xf32>, vector<42x32xf32> -> vector<42x32xf32>
    %c0_5 = arith.constant 0 : index
    %c0_6 = arith.constant 0 : index
    %c0_7 = arith.constant 0 : index
    %4 = vector.load %arg9[%c0_5, %c0_6, %c0_7] : memref<2x6x32xf32, #tpu.memory_space<vmem>>, vector<1x6x32xf32>
    %5 = vector.shape_cast %4 : vector<1x6x32xf32> to vector<6x32xf32>
    %c0_8 = arith.constant 0 : index
    %c0_9 = arith.constant 0 : index
    %c0_10 = arith.constant 0 : index
    %6 = vector.load %arg5[%c0_8, %c0_9, %c0_10] : memref<2x128x32xf32, #tpu.memory_space<vmem>>, vector<1x128x32xf32>
    %7 = vector.shape_cast %6 : vector<1x128x32xf32> to vector<128x32xf32>
    %c0_11 = arith.constant 0 : index
    %c0_12 = arith.constant 0 : index
    %c0_13 = arith.constant 0 : index
    %8 = vector.load %arg4[%c0_11, %c0_12, %c0_13] : memref<2x32x384xf32, #tpu.memory_space<vmem>>, vector<1x32x384xf32>
    %9 = vector.shape_cast %8 : vector<1x32x384xf32> to vector<32x384xf32>
    %cst_14 = arith.constant dense<0.000000e+00> : vector<42x384xf32>
    %10 = tpu.matmul %3, %9, %cst_14 {dimension_numbers = #tpu.dot_dimension_numbers<[1], [0], [0], [1], [0, 0, 1, 1], [], []>} : vector<42x32xf32>, vector<32x384xf32>, vector<42x384xf32> -> vector<42x384xf32>
    %11 = vector.extract_strided_slice %5 {offsets = [0, 0], sizes = [1, 32], strides = [1, 1]} : vector<6x32xf32> to vector<1x32xf32>
    %12 = vector.broadcast %11 : vector<1x32xf32> to vector<42x32xf32>
    %13 = arith.addf %3, %12 : vector<42x32xf32>
    %14 = vector.extract_strided_slice %10 {offsets = [0, 0], sizes = [42, 32], strides = [1, 1]} : vector<42x384xf32> to vector<42x32xf32>
    %cst_15 = arith.constant 0.420448214 : f32
    %15 = vector.broadcast %cst_15 : f32 to vector<42x32xf32>
    %16 = arith.mulf %14, %15 : vector<42x32xf32>
    %17 = vector.extract_strided_slice %10 {offsets = [0, 128], sizes = [42, 32], strides = [1, 1]} : vector<42x384xf32> to vector<42x32xf32>
    %cst_16 = arith.constant 0.420448214 : f32
    %18 = vector.broadcast %cst_16 : f32 to vector<42x32xf32>
    %19 = arith.mulf %17, %18 : vector<42x32xf32>
    %20 = vector.extract_strided_slice %10 {offsets = [0, 256], sizes = [42, 32], strides = [1, 1]} : vector<42x384xf32> to vector<42x32xf32>
    %cst_17 = arith.constant dense<0.000000e+00> : vector<42x42xf32>
    %21 = tpu.matmul %16, %19, %cst_17 {dimension_numbers = #tpu.dot_dimension_numbers<[1], [1], [0], [0], [0, 0, 1, 0], [], []>} : vector<42x32xf32>, vector<42x32xf32>, vector<42x42xf32> -> vector<42x42xf32>
    %22 = arith.addf %21, %0 : vector<42x42xf32>
    %cst_18 = arith.constant dense<0xFF800000> : vector<42xf32>
    %23 = vector.multi_reduction <maximumf>, %22, %cst_18 [1] : vector<42x42xf32> to vector<42xf32>
    %24 = vector.shape_cast %23 : vector<42xf32> to vector<42x1xf32>
    %25 = vector.broadcast %24 : vector<42x1xf32> to vector<42x42xf32>
    %26 = arith.subf %22, %25 : vector<42x42xf32>
    %27 = math.exp %26 : vector<42x42xf32>
    %cst_19 = arith.constant dense<0.000000e+00> : vector<42xf32>
    %28 = vector.multi_reduction <add>, %27, %cst_19 [1] : vector<42x42xf32> to vector<42xf32>
    %29 = vector.shape_cast %28 : vector<42xf32> to vector<42x1xf32>
    %30 = tpu.reciprocal %29 {approx = true} : vector<42x1xf32> -> vector<42x1xf32>
    %31 = vector.broadcast %30 : vector<42x1xf32> to vector<42x42xf32>
    %32 = arith.mulf %27, %31 : vector<42x42xf32>
    %cst_20 = arith.constant dense<0.000000e+00> : vector<42x32xf32>
    %33 = tpu.matmul %32, %20, %cst_20 {dimension_numbers = #tpu.dot_dimension_numbers<[1], [0], [0], [1], [0, 0, 1, 1], [], []>} : vector<42x42xf32>, vector<42x32xf32>, vector<42x32xf32> -> vector<42x32xf32>
    %34 = vector.extract_strided_slice %7 {offsets = [0, 0], sizes = [32, 32], strides = [1, 1]} : vector<128x32xf32> to vector<32x32xf32>
    %cst_21 = arith.constant dense<0.000000e+00> : vector<42x32xf32>
    %35 = tpu.matmul %33, %34, %cst_21 {dimension_numbers = #tpu.dot_dimension_numbers<[1], [0], [0], [1], [0, 0, 1, 1], [], []>} : vector<42x32xf32>, vector<32x32xf32>, vector<42x32xf32> -> vector<42x32xf32>
    %36 = arith.addf %13, %35 : vector<42x32xf32>
    %37 = vector.extract_strided_slice %10 {offsets = [0, 32], sizes = [42, 32], strides = [1, 1]} : vector<42x384xf32> to vector<42x32xf32>
    %cst_22 = arith.constant 0.420448214 : f32
    %38 = vector.broadcast %cst_22 : f32 to vector<42x32xf32>
    %39 = arith.mulf %37, %38 : vector<42x32xf32>
    %40 = vector.extract_strided_slice %10 {offsets = [0, 160], sizes = [42, 32], strides = [1, 1]} : vector<42x384xf32> to vector<42x32xf32>
    %cst_23 = arith.constant 0.420448214 : f32
    %41 = vector.broadcast %cst_23 : f32 to vector<42x32xf32>
    %42 = arith.mulf %40, %41 : vector<42x32xf32>
    %43 = vector.extract_strided_slice %10 {offsets = [0, 288], sizes = [42, 32], strides = [1, 1]} : vector<42x384xf32> to vector<42x32xf32>
    %cst_24 = arith.constant dense<0.000000e+00> : vector<42x42xf32>
    %44 = tpu.matmul %39, %42, %cst_24 {dimension_numbers = #tpu.dot_dimension_numbers<[1], [1], [0], [0], [0, 0, 1, 0], [], []>} : vector<42x32xf32>, vector<42x32xf32>, vector<42x42xf32> -> vector<42x42xf32>
    %45 = arith.addf %44, %0 : vector<42x42xf32>
    %cst_25 = arith.constant dense<0xFF800000> : vector<42xf32>
    %46 = vector.multi_reduction <maximumf>, %45, %cst_25 [1] : vector<42x42xf32> to vector<42xf32>
    %47 = vector.shape_cast %46 : vector<42xf32> to vector<42x1xf32>
    %48 = vector.broadcast %47 : vector<42x1xf32> to vector<42x42xf32>
    %49 = arith.subf %45, %48 : vector<42x42xf32>
    %50 = math.exp %49 : vector<42x42xf32>
    %cst_26 = arith.constant dense<0.000000e+00> : vector<42xf32>
    %51 = vector.multi_reduction <add>, %50, %cst_26 [1] : vector<42x42xf32> to vector<42xf32>
    %52 = vector.shape_cast %51 : vector<42xf32> to vector<42x1xf32>
    %53 = tpu.reciprocal %52 {approx = true} : vector<42x1xf32> -> vector<42x1xf32>
    %54 = vector.broadcast %53 : vector<42x1xf32> to vector<42x42xf32>
    %55 = arith.mulf %50, %54 : vector<42x42xf32>
    %cst_27 = arith.constant dense<0.000000e+00> : vector<42x32xf32>
    %56 = tpu.matmul %55, %43, %cst_27 {dimension_numbers = #tpu.dot_dimension_numbers<[1], [0], [0], [1], [0, 0, 1, 1], [], []>} : vector<42x42xf32>, vector<42x32xf32>, vector<42x32xf32> -> vector<42x32xf32>
    %57 = vector.extract_strided_slice %7 {offsets = [32, 0], sizes = [32, 32], strides = [1, 1]} : vector<128x32xf32> to vector<32x32xf32>
    %cst_28 = arith.constant dense<0.000000e+00> : vector<42x32xf32>
    %58 = tpu.matmul %56, %57, %cst_28 {dimension_numbers = #tpu.dot_dimension_numbers<[1], [0], [0], [1], [0, 0, 1, 1], [], []>} : vector<42x32xf32>, vector<32x32xf32>, vector<42x32xf32> -> vector<42x32xf32>
    %59 = arith.addf %36, %58 : vector<42x32xf32>
    %60 = vector.extract_strided_slice %10 {offsets = [0, 64], sizes = [42, 32], strides = [1, 1]} : vector<42x384xf32> to vector<42x32xf32>
    %cst_29 = arith.constant 0.420448214 : f32
    %61 = vector.broadcast %cst_29 : f32 to vector<42x32xf32>
    %62 = arith.mulf %60, %61 : vector<42x32xf32>
    %63 = vector.extract_strided_slice %10 {offsets = [0, 192], sizes = [42, 32], strides = [1, 1]} : vector<42x384xf32> to vector<42x32xf32>
    %cst_30 = arith.constant 0.420448214 : f32
    %64 = vector.broadcast %cst_30 : f32 to vector<42x32xf32>
    %65 = arith.mulf %63, %64 : vector<42x32xf32>
    %66 = vector.extract_strided_slice %10 {offsets = [0, 320], sizes = [42, 32], strides = [1, 1]} : vector<42x384xf32> to vector<42x32xf32>
    %cst_31 = arith.constant dense<0.000000e+00> : vector<42x42xf32>
    %67 = tpu.matmul %62, %65, %cst_31 {dimension_numbers = #tpu.dot_dimension_numbers<[1], [1], [0], [0], [0, 0, 1, 0], [], []>} : vector<42x32xf32>, vector<42x32xf32>, vector<42x42xf32> -> vector<42x42xf32>
    %68 = arith.addf %67, %0 : vector<42x42xf32>
    %cst_32 = arith.constant dense<0xFF800000> : vector<42xf32>
    %69 = vector.multi_reduction <maximumf>, %68, %cst_32 [1] : vector<42x42xf32> to vector<42xf32>
    %70 = vector.shape_cast %69 : vector<42xf32> to vector<42x1xf32>
    %71 = vector.broadcast %70 : vector<42x1xf32> to vector<42x42xf32>
    %72 = arith.subf %68, %71 : vector<42x42xf32>
    %73 = math.exp %72 : vector<42x42xf32>
    %cst_33 = arith.constant dense<0.000000e+00> : vector<42xf32>
    %74 = vector.multi_reduction <add>, %73, %cst_33 [1] : vector<42x42xf32> to vector<42xf32>
    %75 = vector.shape_cast %74 : vector<42xf32> to vector<42x1xf32>
    %76 = tpu.reciprocal %75 {approx = true} : vector<42x1xf32> -> vector<42x1xf32>
    %77 = vector.broadcast %76 : vector<42x1xf32> to vector<42x42xf32>
    %78 = arith.mulf %73, %77 : vector<42x42xf32>
    %cst_34 = arith.constant dense<0.000000e+00> : vector<42x32xf32>
    %79 = tpu.matmul %78, %66, %cst_34 {dimension_numbers = #tpu.dot_dimension_numbers<[1], [0], [0], [1], [0, 0, 1, 1], [], []>} : vector<42x42xf32>, vector<42x32xf32>, vector<42x32xf32> -> vector<42x32xf32>
    %80 = vector.extract_strided_slice %7 {offsets = [64, 0], sizes = [32, 32], strides = [1, 1]} : vector<128x32xf32> to vector<32x32xf32>
    %cst_35 = arith.constant dense<0.000000e+00> : vector<42x32xf32>
    %81 = tpu.matmul %79, %80, %cst_35 {dimension_numbers = #tpu.dot_dimension_numbers<[1], [0], [0], [1], [0, 0, 1, 1], [], []>} : vector<42x32xf32>, vector<32x32xf32>, vector<42x32xf32> -> vector<42x32xf32>
    %82 = arith.addf %59, %81 : vector<42x32xf32>
    %83 = vector.extract_strided_slice %10 {offsets = [0, 96], sizes = [42, 32], strides = [1, 1]} : vector<42x384xf32> to vector<42x32xf32>
    %cst_36 = arith.constant 0.420448214 : f32
    %84 = vector.broadcast %cst_36 : f32 to vector<42x32xf32>
    %85 = arith.mulf %83, %84 : vector<42x32xf32>
    %86 = vector.extract_strided_slice %10 {offsets = [0, 224], sizes = [42, 32], strides = [1, 1]} : vector<42x384xf32> to vector<42x32xf32>
    %cst_37 = arith.constant 0.420448214 : f32
    %87 = vector.broadcast %cst_37 : f32 to vector<42x32xf32>
    %88 = arith.mulf %86, %87 : vector<42x32xf32>
    %89 = vector.extract_strided_slice %10 {offsets = [0, 352], sizes = [42, 32], strides = [1, 1]} : vector<42x384xf32> to vector<42x32xf32>
    %cst_38 = arith.constant dense<0.000000e+00> : vector<42x42xf32>
    %90 = tpu.matmul %85, %88, %cst_38 {dimension_numbers = #tpu.dot_dimension_numbers<[1], [1], [0], [0], [0, 0, 1, 0], [], []>} : vector<42x32xf32>, vector<42x32xf32>, vector<42x42xf32> -> vector<42x42xf32>
    %91 = arith.addf %90, %0 : vector<42x42xf32>
    %cst_39 = arith.constant dense<0xFF800000> : vector<42xf32>
    %92 = vector.multi_reduction <maximumf>, %91, %cst_39 [1] : vector<42x42xf32> to vector<42xf32>
    %93 = vector.shape_cast %92 : vector<42xf32> to vector<42x1xf32>
    %94 = vector.broadcast %93 : vector<42x1xf32> to vector<42x42xf32>
    %95 = arith.subf %91, %94 : vector<42x42xf32>
    %96 = math.exp %95 : vector<42x42xf32>
    %cst_40 = arith.constant dense<0.000000e+00> : vector<42xf32>
    %97 = vector.multi_reduction <add>, %96, %cst_40 [1] : vector<42x42xf32> to vector<42xf32>
    %98 = vector.shape_cast %97 : vector<42xf32> to vector<42x1xf32>
    %99 = tpu.reciprocal %98 {approx = true} : vector<42x1xf32> -> vector<42x1xf32>
    %100 = vector.broadcast %99 : vector<42x1xf32> to vector<42x42xf32>
    %101 = arith.mulf %96, %100 : vector<42x42xf32>
    %cst_41 = arith.constant dense<0.000000e+00> : vector<42x32xf32>
    %102 = tpu.matmul %101, %89, %cst_41 {dimension_numbers = #tpu.dot_dimension_numbers<[1], [0], [0], [1], [0, 0, 1, 1], [], []>} : vector<42x42xf32>, vector<42x32xf32>, vector<42x32xf32> -> vector<42x32xf32>
    %103 = vector.extract_strided_slice %7 {offsets = [96, 0], sizes = [32, 32], strides = [1, 1]} : vector<128x32xf32> to vector<32x32xf32>
    %cst_42 = arith.constant dense<0.000000e+00> : vector<42x32xf32>
    %104 = tpu.matmul %102, %103, %cst_42 {dimension_numbers = #tpu.dot_dimension_numbers<[1], [0], [0], [1], [0, 0, 1, 1], [], []>} : vector<42x32xf32>, vector<32x32xf32>, vector<42x32xf32> -> vector<42x32xf32>
    %105 = arith.addf %82, %104 : vector<42x32xf32>
    %106 = vector.extract_strided_slice %5 {offsets = [1, 0], sizes = [1, 32], strides = [1, 1]} : vector<6x32xf32> to vector<1x32xf32>
    %107 = vector.extract_strided_slice %5 {offsets = [2, 0], sizes = [1, 32], strides = [1, 1]} : vector<6x32xf32> to vector<1x32xf32>
    %cst_43 = arith.constant dense<0.000000e+00> : vector<42xf32>
    %108 = vector.multi_reduction <add>, %105, %cst_43 [1] : vector<42x32xf32> to vector<42xf32>
    %109 = vector.shape_cast %108 : vector<42xf32> to vector<42x1xf32>
    %cst_44 = arith.constant 3.200000e+01 : f32
    %110 = vector.broadcast %cst_44 : f32 to vector<42x1xf32>
    %111 = arith.divf %109, %110 : vector<42x1xf32>
    %112 = vector.broadcast %111 : vector<42x1xf32> to vector<42x32xf32>
    %113 = arith.subf %105, %112 : vector<42x32xf32>
    %114 = arith.mulf %113, %113 : vector<42x32xf32>
    %cst_45 = arith.constant dense<0.000000e+00> : vector<42xf32>
    %115 = vector.multi_reduction <add>, %114, %cst_45 [1] : vector<42x32xf32> to vector<42xf32>
    %116 = vector.shape_cast %115 : vector<42xf32> to vector<42x1xf32>
    %cst_46 = arith.constant 3.200000e+01 : f32
    %117 = vector.broadcast %cst_46 : f32 to vector<42x1xf32>
    %118 = arith.divf %116, %117 : vector<42x1xf32>
    %119 = vector.broadcast %111 : vector<42x1xf32> to vector<42x32xf32>
    %120 = arith.subf %105, %119 : vector<42x32xf32>
    %cst_47 = arith.constant 9.99999974E-6 : f32
    %121 = vector.broadcast %cst_47 : f32 to vector<42x1xf32>
    %122 = arith.addf %118, %121 : vector<42x1xf32>
    %123 = math.rsqrt %122 : vector<42x1xf32>
    %124 = vector.broadcast %123 : vector<42x1xf32> to vector<42x32xf32>
    %125 = arith.mulf %120, %124 : vector<42x32xf32>
    %126 = vector.broadcast %106 : vector<1x32xf32> to vector<42x32xf32>
    %127 = arith.mulf %125, %126 : vector<42x32xf32>
    %128 = vector.broadcast %107 : vector<1x32xf32> to vector<42x32xf32>
    %129 = arith.addf %127, %128 : vector<42x32xf32>
    %c0_48 = arith.constant 0 : index
    %c0_49 = arith.constant 0 : index
    %c0_50 = arith.constant 0 : index
    %130 = vector.load %arg6[%c0_48, %c0_49, %c0_50] : memref<2x32x128xf32, #tpu.memory_space<vmem>>, vector<1x32x128xf32>
    %131 = vector.shape_cast %130 : vector<1x32x128xf32> to vector<32x128xf32>
    %cst_51 = arith.constant dense<0.000000e+00> : vector<42x128xf32>
    %132 = tpu.matmul %129, %131, %cst_51 {dimension_numbers = #tpu.dot_dimension_numbers<[1], [0], [0], [1], [0, 0, 1, 1], [], []>} : vector<42x32xf32>, vector<32x128xf32>, vector<42x128xf32> -> vector<42x128xf32>
    %c0_52 = arith.constant 0 : index
    %c0_53 = arith.constant 0 : index
    %c0_54 = arith.constant 0 : index
    %133 = vector.load %arg8[%c0_52, %c0_53, %c0_54] : memref<2x1x128xf32, #tpu.memory_space<vmem>>, vector<1x1x128xf32>
    %134 = vector.shape_cast %133 : vector<1x1x128xf32> to vector<1x128xf32>
    %135 = vector.broadcast %134 : vector<1x128xf32> to vector<42x128xf32>
    %136 = arith.addf %132, %135 : vector<42x128xf32>
    %cst_55 = arith.constant 0.000000e+00 : f32
    %137 = vector.broadcast %cst_55 : f32 to vector<42x128xf32>
    %138 = arith.maximumf %136, %137 : vector<42x128xf32>
    %c0_56 = arith.constant 0 : index
    %c0_57 = arith.constant 0 : index
    %c0_58 = arith.constant 0 : index
    %139 = vector.load %arg7[%c0_56, %c0_57, %c0_58] : memref<2x128x32xf32, #tpu.memory_space<vmem>>, vector<1x128x32xf32>
    %140 = vector.shape_cast %139 : vector<1x128x32xf32> to vector<128x32xf32>
    %cst_59 = arith.constant dense<0.000000e+00> : vector<42x32xf32>
    %141 = tpu.matmul %138, %140, %cst_59 {dimension_numbers = #tpu.dot_dimension_numbers<[1], [0], [0], [1], [0, 0, 1, 1], [], []>} : vector<42x128xf32>, vector<128x32xf32>, vector<42x32xf32> -> vector<42x32xf32>
    %142 = vector.extract_strided_slice %5 {offsets = [3, 0], sizes = [1, 32], strides = [1, 1]} : vector<6x32xf32> to vector<1x32xf32>
    %143 = vector.broadcast %142 : vector<1x32xf32> to vector<42x32xf32>
    %144 = arith.addf %141, %143 : vector<42x32xf32>
    %145 = arith.addf %144, %129 : vector<42x32xf32>
    %146 = vector.extract_strided_slice %5 {offsets = [4, 0], sizes = [1, 32], strides = [1, 1]} : vector<6x32xf32> to vector<1x32xf32>
    %147 = vector.extract_strided_slice %5 {offsets = [5, 0], sizes = [1, 32], strides = [1, 1]} : vector<6x32xf32> to vector<1x32xf32>
    %cst_60 = arith.constant dense<0.000000e+00> : vector<42xf32>
    %148 = vector.multi_reduction <add>, %145, %cst_60 [1] : vector<42x32xf32> to vector<42xf32>
    %149 = vector.shape_cast %148 : vector<42xf32> to vector<42x1xf32>
    %cst_61 = arith.constant 3.200000e+01 : f32
    %150 = vector.broadcast %cst_61 : f32 to vector<42x1xf32>
    %151 = arith.divf %149, %150 : vector<42x1xf32>
    %152 = vector.broadcast %151 : vector<42x1xf32> to vector<42x32xf32>
    %153 = arith.subf %145, %152 : vector<42x32xf32>
    %154 = arith.mulf %153, %153 : vector<42x32xf32>
    %cst_62 = arith.constant dense<0.000000e+00> : vector<42xf32>
    %155 = vector.multi_reduction <add>, %154, %cst_62 [1] : vector<42x32xf32> to vector<42xf32>
    %156 = vector.shape_cast %155 : vector<42xf32> to vector<42x1xf32>
    %cst_63 = arith.constant 3.200000e+01 : f32
    %157 = vector.broadcast %cst_63 : f32 to vector<42x1xf32>
    %158 = arith.divf %156, %157 : vector<42x1xf32>
    %159 = vector.broadcast %151 : vector<42x1xf32> to vector<42x32xf32>
    %160 = arith.subf %145, %159 : vector<42x32xf32>
    %cst_64 = arith.constant 9.99999974E-6 : f32
    %161 = vector.broadcast %cst_64 : f32 to vector<42x1xf32>
    %162 = arith.addf %158, %161 : vector<42x1xf32>
    %163 = math.rsqrt %162 : vector<42x1xf32>
    %164 = vector.broadcast %163 : vector<42x1xf32> to vector<42x32xf32>
    %165 = arith.mulf %160, %164 : vector<42x32xf32>
    %166 = vector.broadcast %146 : vector<1x32xf32> to vector<42x32xf32>
    %167 = arith.mulf %165, %166 : vector<42x32xf32>
    %168 = vector.broadcast %147 : vector<1x32xf32> to vector<42x32xf32>
    %169 = arith.addf %167, %168 : vector<42x32xf32>
    %c1 = arith.constant 1 : index
    %c0_65 = arith.constant 0 : index
    %c0_66 = arith.constant 0 : index
    %170 = vector.load %arg9[%c1, %c0_65, %c0_66] : memref<2x6x32xf32, #tpu.memory_space<vmem>>, vector<1x6x32xf32>
    %171 = vector.shape_cast %170 : vector<1x6x32xf32> to vector<6x32xf32>
    %c1_67 = arith.constant 1 : index
    %c0_68 = arith.constant 0 : index
    %c0_69 = arith.constant 0 : index
    %172 = vector.load %arg5[%c1_67, %c0_68, %c0_69] : memref<2x128x32xf32, #tpu.memory_space<vmem>>, vector<1x128x32xf32>
    %173 = vector.shape_cast %172 : vector<1x128x32xf32> to vector<128x32xf32>
    %c1_70 = arith.constant 1 : index
    %c0_71 = arith.constant 0 : index
    %c0_72 = arith.constant 0 : index
    %174 = vector.load %arg4[%c1_70, %c0_71, %c0_72] : memref<2x32x384xf32, #tpu.memory_space<vmem>>, vector<1x32x384xf32>
    %175 = vector.shape_cast %174 : vector<1x32x384xf32> to vector<32x384xf32>
    %cst_73 = arith.constant dense<0.000000e+00> : vector<42x384xf32>
    %176 = tpu.matmul %169, %175, %cst_73 {dimension_numbers = #tpu.dot_dimension_numbers<[1], [0], [0], [1], [0, 0, 1, 1], [], []>} : vector<42x32xf32>, vector<32x384xf32>, vector<42x384xf32> -> vector<42x384xf32>
    %177 = vector.extract_strided_slice %171 {offsets = [0, 0], sizes = [1, 32], strides = [1, 1]} : vector<6x32xf32> to vector<1x32xf32>
    %178 = vector.broadcast %177 : vector<1x32xf32> to vector<42x32xf32>
    %179 = arith.addf %169, %178 : vector<42x32xf32>
    %180 = vector.extract_strided_slice %176 {offsets = [0, 0], sizes = [42, 32], strides = [1, 1]} : vector<42x384xf32> to vector<42x32xf32>
    %cst_74 = arith.constant 0.420448214 : f32
    %181 = vector.broadcast %cst_74 : f32 to vector<42x32xf32>
    %182 = arith.mulf %180, %181 : vector<42x32xf32>
    %183 = vector.extract_strided_slice %176 {offsets = [0, 128], sizes = [42, 32], strides = [1, 1]} : vector<42x384xf32> to vector<42x32xf32>
    %cst_75 = arith.constant 0.420448214 : f32
    %184 = vector.broadcast %cst_75 : f32 to vector<42x32xf32>
    %185 = arith.mulf %183, %184 : vector<42x32xf32>
    %186 = vector.extract_strided_slice %176 {offsets = [0, 256], sizes = [42, 32], strides = [1, 1]} : vector<42x384xf32> to vector<42x32xf32>
    %cst_76 = arith.constant dense<0.000000e+00> : vector<42x42xf32>
    %187 = tpu.matmul %182, %185, %cst_76 {dimension_numbers = #tpu.dot_dimension_numbers<[1], [1], [0], [0], [0, 0, 1, 0], [], []>} : vector<42x32xf32>, vector<42x32xf32>, vector<42x42xf32> -> vector<42x42xf32>
    %188 = arith.addf %187, %0 : vector<42x42xf32>
    %cst_77 = arith.constant dense<0xFF800000> : vector<42xf32>
    %189 = vector.multi_reduction <maximumf>, %188, %cst_77 [1] : vector<42x42xf32> to vector<42xf32>
    %190 = vector.shape_cast %189 : vector<42xf32> to vector<42x1xf32>
    %191 = vector.broadcast %190 : vector<42x1xf32> to vector<42x42xf32>
    %192 = arith.subf %188, %191 : vector<42x42xf32>
    %193 = math.exp %192 : vector<42x42xf32>
    %cst_78 = arith.constant dense<0.000000e+00> : vector<42xf32>
    %194 = vector.multi_reduction <add>, %193, %cst_78 [1] : vector<42x42xf32> to vector<42xf32>
    %195 = vector.shape_cast %194 : vector<42xf32> to vector<42x1xf32>
    %196 = tpu.reciprocal %195 {approx = true} : vector<42x1xf32> -> vector<42x1xf32>
    %197 = vector.broadcast %196 : vector<42x1xf32> to vector<42x42xf32>
    %198 = arith.mulf %193, %197 : vector<42x42xf32>
    %cst_79 = arith.constant dense<0.000000e+00> : vector<42x32xf32>
    %199 = tpu.matmul %198, %186, %cst_79 {dimension_numbers = #tpu.dot_dimension_numbers<[1], [0], [0], [1], [0, 0, 1, 1], [], []>} : vector<42x42xf32>, vector<42x32xf32>, vector<42x32xf32> -> vector<42x32xf32>
    %200 = vector.extract_strided_slice %173 {offsets = [0, 0], sizes = [32, 32], strides = [1, 1]} : vector<128x32xf32> to vector<32x32xf32>
    %cst_80 = arith.constant dense<0.000000e+00> : vector<42x32xf32>
    %201 = tpu.matmul %199, %200, %cst_80 {dimension_numbers = #tpu.dot_dimension_numbers<[1], [0], [0], [1], [0, 0, 1, 1], [], []>} : vector<42x32xf32>, vector<32x32xf32>, vector<42x32xf32> -> vector<42x32xf32>
    %202 = arith.addf %179, %201 : vector<42x32xf32>
    %203 = vector.extract_strided_slice %176 {offsets = [0, 32], sizes = [42, 32], strides = [1, 1]} : vector<42x384xf32> to vector<42x32xf32>
    %cst_81 = arith.constant 0.420448214 : f32
    %204 = vector.broadcast %cst_81 : f32 to vector<42x32xf32>
    %205 = arith.mulf %203, %204 : vector<42x32xf32>
    %206 = vector.extract_strided_slice %176 {offsets = [0, 160], sizes = [42, 32], strides = [1, 1]} : vector<42x384xf32> to vector<42x32xf32>
    %cst_82 = arith.constant 0.420448214 : f32
    %207 = vector.broadcast %cst_82 : f32 to vector<42x32xf32>
    %208 = arith.mulf %206, %207 : vector<42x32xf32>
    %209 = vector.extract_strided_slice %176 {offsets = [0, 288], sizes = [42, 32], strides = [1, 1]} : vector<42x384xf32> to vector<42x32xf32>
    %cst_83 = arith.constant dense<0.000000e+00> : vector<42x42xf32>
    %210 = tpu.matmul %205, %208, %cst_83 {dimension_numbers = #tpu.dot_dimension_numbers<[1], [1], [0], [0], [0, 0, 1, 0], [], []>} : vector<42x32xf32>, vector<42x32xf32>, vector<42x42xf32> -> vector<42x42xf32>
    %211 = arith.addf %210, %0 : vector<42x42xf32>
    %cst_84 = arith.constant dense<0xFF800000> : vector<42xf32>
    %212 = vector.multi_reduction <maximumf>, %211, %cst_84 [1] : vector<42x42xf32> to vector<42xf32>
    %213 = vector.shape_cast %212 : vector<42xf32> to vector<42x1xf32>
    %214 = vector.broadcast %213 : vector<42x1xf32> to vector<42x42xf32>
    %215 = arith.subf %211, %214 : vector<42x42xf32>
    %216 = math.exp %215 : vector<42x42xf32>
    %cst_85 = arith.constant dense<0.000000e+00> : vector<42xf32>
    %217 = vector.multi_reduction <add>, %216, %cst_85 [1] : vector<42x42xf32> to vector<42xf32>
    %218 = vector.shape_cast %217 : vector<42xf32> to vector<42x1xf32>
    %219 = tpu.reciprocal %218 {approx = true} : vector<42x1xf32> -> vector<42x1xf32>
    %220 = vector.broadcast %219 : vector<42x1xf32> to vector<42x42xf32>
    %221 = arith.mulf %216, %220 : vector<42x42xf32>
    %cst_86 = arith.constant dense<0.000000e+00> : vector<42x32xf32>
    %222 = tpu.matmul %221, %209, %cst_86 {dimension_numbers = #tpu.dot_dimension_numbers<[1], [0], [0], [1], [0, 0, 1, 1], [], []>} : vector<42x42xf32>, vector<42x32xf32>, vector<42x32xf32> -> vector<42x32xf32>
    %223 = vector.extract_strided_slice %173 {offsets = [32, 0], sizes = [32, 32], strides = [1, 1]} : vector<128x32xf32> to vector<32x32xf32>
    %cst_87 = arith.constant dense<0.000000e+00> : vector<42x32xf32>
    %224 = tpu.matmul %222, %223, %cst_87 {dimension_numbers = #tpu.dot_dimension_numbers<[1], [0], [0], [1], [0, 0, 1, 1], [], []>} : vector<42x32xf32>, vector<32x32xf32>, vector<42x32xf32> -> vector<42x32xf32>
    %225 = arith.addf %202, %224 : vector<42x32xf32>
    %226 = vector.extract_strided_slice %176 {offsets = [0, 64], sizes = [42, 32], strides = [1, 1]} : vector<42x384xf32> to vector<42x32xf32>
    %cst_88 = arith.constant 0.420448214 : f32
    %227 = vector.broadcast %cst_88 : f32 to vector<42x32xf32>
    %228 = arith.mulf %226, %227 : vector<42x32xf32>
    %229 = vector.extract_strided_slice %176 {offsets = [0, 192], sizes = [42, 32], strides = [1, 1]} : vector<42x384xf32> to vector<42x32xf32>
    %cst_89 = arith.constant 0.420448214 : f32
    %230 = vector.broadcast %cst_89 : f32 to vector<42x32xf32>
    %231 = arith.mulf %229, %230 : vector<42x32xf32>
    %232 = vector.extract_strided_slice %176 {offsets = [0, 320], sizes = [42, 32], strides = [1, 1]} : vector<42x384xf32> to vector<42x32xf32>
    %cst_90 = arith.constant dense<0.000000e+00> : vector<42x42xf32>
    %233 = tpu.matmul %228, %231, %cst_90 {dimension_numbers = #tpu.dot_dimension_numbers<[1], [1], [0], [0], [0, 0, 1, 0], [], []>} : vector<42x32xf32>, vector<42x32xf32>, vector<42x42xf32> -> vector<42x42xf32>
    %234 = arith.addf %233, %0 : vector<42x42xf32>
    %cst_91 = arith.constant dense<0xFF800000> : vector<42xf32>
    %235 = vector.multi_reduction <maximumf>, %234, %cst_91 [1] : vector<42x42xf32> to vector<42xf32>
    %236 = vector.shape_cast %235 : vector<42xf32> to vector<42x1xf32>
    %237 = vector.broadcast %236 : vector<42x1xf32> to vector<42x42xf32>
    %238 = arith.subf %234, %237 : vector<42x42xf32>
    %239 = math.exp %238 : vector<42x42xf32>
    %cst_92 = arith.constant dense<0.000000e+00> : vector<42xf32>
    %240 = vector.multi_reduction <add>, %239, %cst_92 [1] : vector<42x42xf32> to vector<42xf32>
    %241 = vector.shape_cast %240 : vector<42xf32> to vector<42x1xf32>
    %242 = tpu.reciprocal %241 {approx = true} : vector<42x1xf32> -> vector<42x1xf32>
    %243 = vector.broadcast %242 : vector<42x1xf32> to vector<42x42xf32>
    %244 = arith.mulf %239, %243 : vector<42x42xf32>
    %cst_93 = arith.constant dense<0.000000e+00> : vector<42x32xf32>
    %245 = tpu.matmul %244, %232, %cst_93 {dimension_numbers = #tpu.dot_dimension_numbers<[1], [0], [0], [1], [0, 0, 1, 1], [], []>} : vector<42x42xf32>, vector<42x32xf32>, vector<42x32xf32> -> vector<42x32xf32>
    %246 = vector.extract_strided_slice %173 {offsets = [64, 0], sizes = [32, 32], strides = [1, 1]} : vector<128x32xf32> to vector<32x32xf32>
    %cst_94 = arith.constant dense<0.000000e+00> : vector<42x32xf32>
    %247 = tpu.matmul %245, %246, %cst_94 {dimension_numbers = #tpu.dot_dimension_numbers<[1], [0], [0], [1], [0, 0, 1, 1], [], []>} : vector<42x32xf32>, vector<32x32xf32>, vector<42x32xf32> -> vector<42x32xf32>
    %248 = arith.addf %225, %247 : vector<42x32xf32>
    %249 = vector.extract_strided_slice %176 {offsets = [0, 96], sizes = [42, 32], strides = [1, 1]} : vector<42x384xf32> to vector<42x32xf32>
    %cst_95 = arith.constant 0.420448214 : f32
    %250 = vector.broadcast %cst_95 : f32 to vector<42x32xf32>
    %251 = arith.mulf %249, %250 : vector<42x32xf32>
    %252 = vector.extract_strided_slice %176 {offsets = [0, 224], sizes = [42, 32], strides = [1, 1]} : vector<42x384xf32> to vector<42x32xf32>
    %cst_96 = arith.constant 0.420448214 : f32
    %253 = vector.broadcast %cst_96 : f32 to vector<42x32xf32>
    %254 = arith.mulf %252, %253 : vector<42x32xf32>
    %255 = vector.extract_strided_slice %176 {offsets = [0, 352], sizes = [42, 32], strides = [1, 1]} : vector<42x384xf32> to vector<42x32xf32>
    %cst_97 = arith.constant dense<0.000000e+00> : vector<42x42xf32>
    %256 = tpu.matmul %251, %254, %cst_97 {dimension_numbers = #tpu.dot_dimension_numbers<[1], [1], [0], [0], [0, 0, 1, 0], [], []>} : vector<42x32xf32>, vector<42x32xf32>, vector<42x42xf32> -> vector<42x42xf32>
    %257 = arith.addf %256, %0 : vector<42x42xf32>
    %cst_98 = arith.constant dense<0xFF800000> : vector<42xf32>
    %258 = vector.multi_reduction <maximumf>, %257, %cst_98 [1] : vector<42x42xf32> to vector<42xf32>
    %259 = vector.shape_cast %258 : vector<42xf32> to vector<42x1xf32>
    %260 = vector.broadcast %259 : vector<42x1xf32> to vector<42x42xf32>
    %261 = arith.subf %257, %260 : vector<42x42xf32>
    %262 = math.exp %261 : vector<42x42xf32>
    %cst_99 = arith.constant dense<0.000000e+00> : vector<42xf32>
    %263 = vector.multi_reduction <add>, %262, %cst_99 [1] : vector<42x42xf32> to vector<42xf32>
    %264 = vector.shape_cast %263 : vector<42xf32> to vector<42x1xf32>
    %265 = tpu.reciprocal %264 {approx = true} : vector<42x1xf32> -> vector<42x1xf32>
    %266 = vector.broadcast %265 : vector<42x1xf32> to vector<42x42xf32>
    %267 = arith.mulf %262, %266 : vector<42x42xf32>
    %cst_100 = arith.constant dense<0.000000e+00> : vector<42x32xf32>
    %268 = tpu.matmul %267, %255, %cst_100 {dimension_numbers = #tpu.dot_dimension_numbers<[1], [0], [0], [1], [0, 0, 1, 1], [], []>} : vector<42x42xf32>, vector<42x32xf32>, vector<42x32xf32> -> vector<42x32xf32>
    %269 = vector.extract_strided_slice %173 {offsets = [96, 0], sizes = [32, 32], strides = [1, 1]} : vector<128x32xf32> to vector<32x32xf32>
    %cst_101 = arith.constant dense<0.000000e+00> : vector<42x32xf32>
    %270 = tpu.matmul %268, %269, %cst_101 {dimension_numbers = #tpu.dot_dimension_numbers<[1], [0], [0], [1], [0, 0, 1, 1], [], []>} : vector<42x32xf32>, vector<32x32xf32>, vector<42x32xf32> -> vector<42x32xf32>
    %271 = arith.addf %248, %270 : vector<42x32xf32>
    %272 = vector.extract_strided_slice %171 {offsets = [1, 0], sizes = [1, 32], strides = [1, 1]} : vector<6x32xf32> to vector<1x32xf32>
    %273 = vector.extract_strided_slice %171 {offsets = [2, 0], sizes = [1, 32], strides = [1, 1]} : vector<6x32xf32> to vector<1x32xf32>
    %cst_102 = arith.constant dense<0.000000e+00> : vector<42xf32>
    %274 = vector.multi_reduction <add>, %271, %cst_102 [1] : vector<42x32xf32> to vector<42xf32>
    %275 = vector.shape_cast %274 : vector<42xf32> to vector<42x1xf32>
    %cst_103 = arith.constant 3.200000e+01 : f32
    %276 = vector.broadcast %cst_103 : f32 to vector<42x1xf32>
    %277 = arith.divf %275, %276 : vector<42x1xf32>
    %278 = vector.broadcast %277 : vector<42x1xf32> to vector<42x32xf32>
    %279 = arith.subf %271, %278 : vector<42x32xf32>
    %280 = arith.mulf %279, %279 : vector<42x32xf32>
    %cst_104 = arith.constant dense<0.000000e+00> : vector<42xf32>
    %281 = vector.multi_reduction <add>, %280, %cst_104 [1] : vector<42x32xf32> to vector<42xf32>
    %282 = vector.shape_cast %281 : vector<42xf32> to vector<42x1xf32>
    %cst_105 = arith.constant 3.200000e+01 : f32
    %283 = vector.broadcast %cst_105 : f32 to vector<42x1xf32>
    %284 = arith.divf %282, %283 : vector<42x1xf32>
    %285 = vector.broadcast %277 : vector<42x1xf32> to vector<42x32xf32>
    %286 = arith.subf %271, %285 : vector<42x32xf32>
    %cst_106 = arith.constant 9.99999974E-6 : f32
    %287 = vector.broadcast %cst_106 : f32 to vector<42x1xf32>
    %288 = arith.addf %284, %287 : vector<42x1xf32>
    %289 = math.rsqrt %288 : vector<42x1xf32>
    %290 = vector.broadcast %289 : vector<42x1xf32> to vector<42x32xf32>
    %291 = arith.mulf %286, %290 : vector<42x32xf32>
    %292 = vector.broadcast %272 : vector<1x32xf32> to vector<42x32xf32>
    %293 = arith.mulf %291, %292 : vector<42x32xf32>
    %294 = vector.broadcast %273 : vector<1x32xf32> to vector<42x32xf32>
    %295 = arith.addf %293, %294 : vector<42x32xf32>
    %c1_107 = arith.constant 1 : index
    %c0_108 = arith.constant 0 : index
    %c0_109 = arith.constant 0 : index
    %296 = vector.load %arg6[%c1_107, %c0_108, %c0_109] : memref<2x32x128xf32, #tpu.memory_space<vmem>>, vector<1x32x128xf32>
    %297 = vector.shape_cast %296 : vector<1x32x128xf32> to vector<32x128xf32>
    %cst_110 = arith.constant dense<0.000000e+00> : vector<42x128xf32>
    %298 = tpu.matmul %295, %297, %cst_110 {dimension_numbers = #tpu.dot_dimension_numbers<[1], [0], [0], [1], [0, 0, 1, 1], [], []>} : vector<42x32xf32>, vector<32x128xf32>, vector<42x128xf32> -> vector<42x128xf32>
    %c1_111 = arith.constant 1 : index
    %c0_112 = arith.constant 0 : index
    %c0_113 = arith.constant 0 : index
    %299 = vector.load %arg8[%c1_111, %c0_112, %c0_113] : memref<2x1x128xf32, #tpu.memory_space<vmem>>, vector<1x1x128xf32>
    %300 = vector.shape_cast %299 : vector<1x1x128xf32> to vector<1x128xf32>
    %301 = vector.broadcast %300 : vector<1x128xf32> to vector<42x128xf32>
    %302 = arith.addf %298, %301 : vector<42x128xf32>
    %cst_114 = arith.constant 0.000000e+00 : f32
    %303 = vector.broadcast %cst_114 : f32 to vector<42x128xf32>
    %304 = arith.maximumf %302, %303 : vector<42x128xf32>
    %c1_115 = arith.constant 1 : index
    %c0_116 = arith.constant 0 : index
    %c0_117 = arith.constant 0 : index
    %305 = vector.load %arg7[%c1_115, %c0_116, %c0_117] : memref<2x128x32xf32, #tpu.memory_space<vmem>>, vector<1x128x32xf32>
    %306 = vector.shape_cast %305 : vector<1x128x32xf32> to vector<128x32xf32>
    %cst_118 = arith.constant dense<0.000000e+00> : vector<42x32xf32>
    %307 = tpu.matmul %304, %306, %cst_118 {dimension_numbers = #tpu.dot_dimension_numbers<[1], [0], [0], [1], [0, 0, 1, 1], [], []>} : vector<42x128xf32>, vector<128x32xf32>, vector<42x32xf32> -> vector<42x32xf32>
    %308 = vector.extract_strided_slice %171 {offsets = [3, 0], sizes = [1, 32], strides = [1, 1]} : vector<6x32xf32> to vector<1x32xf32>
    %309 = vector.broadcast %308 : vector<1x32xf32> to vector<42x32xf32>
    %310 = arith.addf %307, %309 : vector<42x32xf32>
    %311 = arith.addf %310, %295 : vector<42x32xf32>
    %312 = vector.extract_strided_slice %171 {offsets = [4, 0], sizes = [1, 32], strides = [1, 1]} : vector<6x32xf32> to vector<1x32xf32>
    %313 = vector.extract_strided_slice %171 {offsets = [5, 0], sizes = [1, 32], strides = [1, 1]} : vector<6x32xf32> to vector<1x32xf32>
    %cst_119 = arith.constant dense<0.000000e+00> : vector<42xf32>
    %314 = vector.multi_reduction <add>, %311, %cst_119 [1] : vector<42x32xf32> to vector<42xf32>
    %315 = vector.shape_cast %314 : vector<42xf32> to vector<42x1xf32>
    %cst_120 = arith.constant 3.200000e+01 : f32
    %316 = vector.broadcast %cst_120 : f32 to vector<42x1xf32>
    %317 = arith.divf %315, %316 : vector<42x1xf32>
    %318 = vector.broadcast %317 : vector<42x1xf32> to vector<42x32xf32>
    %319 = arith.subf %311, %318 : vector<42x32xf32>
    %320 = arith.mulf %319, %319 : vector<42x32xf32>
    %cst_121 = arith.constant dense<0.000000e+00> : vector<42xf32>
    %321 = vector.multi_reduction <add>, %320, %cst_121 [1] : vector<42x32xf32> to vector<42xf32>
    %322 = vector.shape_cast %321 : vector<42xf32> to vector<42x1xf32>
    %cst_122 = arith.constant 3.200000e+01 : f32
    %323 = vector.broadcast %cst_122 : f32 to vector<42x1xf32>
    %324 = arith.divf %322, %323 : vector<42x1xf32>
    %325 = vector.broadcast %317 : vector<42x1xf32> to vector<42x32xf32>
    %326 = arith.subf %311, %325 : vector<42x32xf32>
    %cst_123 = arith.constant 9.99999974E-6 : f32
    %327 = vector.broadcast %cst_123 : f32 to vector<42x1xf32>
    %328 = arith.addf %324, %327 : vector<42x1xf32>
    %329 = math.rsqrt %328 : vector<42x1xf32>
    %330 = vector.broadcast %329 : vector<42x1xf32> to vector<42x32xf32>
    %331 = arith.mulf %326, %330 : vector<42x32xf32>
    %332 = vector.broadcast %312 : vector<1x32xf32> to vector<42x32xf32>
    %333 = arith.mulf %331, %332 : vector<42x32xf32>
    %334 = vector.broadcast %313 : vector<1x32xf32> to vector<42x32xf32>
    %335 = arith.addf %333, %334 : vector<42x32xf32>
    %c0_124 = arith.constant 0 : index
    %c0_125 = arith.constant 0 : index
    %336 = vector.load %arg10[%c0_124, %c0_125] : memref<32x32xf32, #tpu.memory_space<vmem>>, vector<32x32xf32>
    %cst_126 = arith.constant dense<0.000000e+00> : vector<42x32xf32>
    %337 = tpu.matmul %335, %336, %cst_126 {dimension_numbers = #tpu.dot_dimension_numbers<[1], [0], [0], [1], [0, 0, 1, 1], [], []>} : vector<42x32xf32>, vector<32x32xf32>, vector<42x32xf32> -> vector<42x32xf32>
    %c0_127 = arith.constant 0 : index
    %c0_128 = arith.constant 0 : index
    %338 = vector.load %arg11[%c0_127, %c0_128] : memref<1x32xf32, #tpu.memory_space<vmem>>, vector<1x32xf32>
    %339 = vector.broadcast %338 : vector<1x32xf32> to vector<42x32xf32>
    %340 = arith.addf %337, %339 : vector<42x32xf32>
    %c0_129 = arith.constant 0 : index
    %c0_130 = arith.constant 0 : index
    %341 = vector.load %arg12[%c0_129, %c0_130] : memref<42x32xf32, #tpu.memory_space<vmem>>, vector<42x32xf32>
    tpu.vector_store %arg12[%c0_129, %c0_130], %340 {strides = array<i32>} : memref<42x32xf32, #tpu.memory_space<vmem>>, vector<42x32xf32>,
    return
  }
  func.func @transform_0(%arg0: i32) -> (i32, i32) {
    %c0_i32 = arith.constant 0 : i32
    %c0_i32_0 = arith.constant 0 : i32
    %c0_i32_1 = arith.constant 0 : i32
    return %c0_i32, %c0_i32_0 : i32, i32
  }
  func.func @transform_1(%arg0: i32) -> (i32, i32) {
    %c0_i32 = arith.constant 0 : i32
    %c0_i32_0 = arith.constant 0 : i32
    %c0_i32_1 = arith.constant 0 : i32
    return %c0_i32, %c0_i32_0 : i32, i32
  }
  func.func @transform_2(%arg0: i32) -> (i32, i32) {
    %c0_i32 = arith.constant 0 : i32
    %c0_i32_0 = arith.constant 0 : i32
    %c0_i32_1 = arith.constant 0 : i32
    return %c0_i32, %c0_i32_0 : i32, i32
  }
  func.func @transform_3(%arg0: i32) -> (i32, i32, i32) {
    %c0_i32 = arith.constant 0 : i32
    %c0_i32_0 = arith.constant 0 : i32
    %c0_i32_1 = arith.constant 0 : i32
    %c0_i32_2 = arith.constant 0 : i32
    return %c0_i32, %c0_i32_0, %c0_i32_1 : i32, i32, i32
  }
  func.func @transform_4(%arg0: i32) -> (i32, i32, i32) {
    %c0_i32 = arith.constant 0 : i32
    %c0_i32_0 = arith.constant 0 : i32
    %c0_i32_1 = arith.constant 0 : i32
    %c0_i32_2 = arith.constant 0 : i32
    return %c0_i32, %c0_i32_0, %c0_i32_1 : i32, i32, i32
  }
  func.func @transform_5(%arg0: i32) -> (i32, i32, i32) {
    %c0_i32 = arith.constant 0 : i32
    %c0_i32_0 = arith.constant 0 : i32
    %c0_i32_1 = arith.constant 0 : i32
    %c0_i32_2 = arith.constant 0 : i32
    return %c0_i32, %c0_i32_0, %c0_i32_1 : i32, i32, i32
  }
  func.func @transform_6(%arg0: i32) -> (i32, i32, i32) {
    %c0_i32 = arith.constant 0 : i32
    %c0_i32_0 = arith.constant 0 : i32
    %c0_i32_1 = arith.constant 0 : i32
    %c0_i32_2 = arith.constant 0 : i32
    return %c0_i32, %c0_i32_0, %c0_i32_1 : i32, i32, i32
  }
  func.func @transform_7(%arg0: i32) -> (i32, i32, i32) {
    %c0_i32 = arith.constant 0 : i32
    %c0_i32_0 = arith.constant 0 : i32
    %c0_i32_1 = arith.constant 0 : i32
    %c0_i32_2 = arith.constant 0 : i32
    return %c0_i32, %c0_i32_0, %c0_i32_1 : i32, i32, i32
  }
  func.func @transform_8(%arg0: i32) -> (i32, i32, i32) {
    %c0_i32 = arith.constant 0 : i32
    %c0_i32_0 = arith.constant 0 : i32
    %c0_i32_1 = arith.constant 0 : i32
    %c0_i32_2 = arith.constant 0 : i32
    return %c0_i32, %c0_i32_0, %c0_i32_1 : i32, i32, i32
  }
  func.func @transform_9(%arg0: i32) -> (i32, i32) {
    %c0_i32 = arith.constant 0 : i32
    %c0_i32_0 = arith.constant 0 : i32
    %c0_i32_1 = arith.constant 0 : i32
    return %c0_i32, %c0_i32_0 : i32, i32
  }
  func.func @transform_10(%arg0: i32) -> (i32, i32) {
    %c0_i32 = arith.constant 0 : i32
    %c0_i32_0 = arith.constant 0 : i32
    %c0_i32_1 = arith.constant 0 : i32
    return %c0_i32, %c0_i32_0 : i32, i32
  }
  func.func @transform_11(%arg0: i32) -> (i32, i32) {
    %c0_i32 = arith.constant 0 : i32
    %c0_i32_0 = arith.constant 0 : i32
    %c0_i32_1 = arith.constant 0 : i32
    return %c0_i32, %c0_i32_0 : i32, i32
  }
}

</mosaic_0001>

<llo_original>
// kernel: tpu_custom_call.1
$region0: #{tpu_custom_call.1}
  #allocation0 [shape = 'u32[]', space=smem, size = 0x4, offset = 0x4, fixed_abs, tag = 'smem constant byte address 0x4 - core index']
  #allocation1 [shape = 'u32[144,128]{1,0:T(1,128)}', space=vmem, size = 0x12000, scoped, tag = 'internal scratch']
  %s0 = inlined_call_operand.vmem [shape: f32[42,68], index: 0, kind: input, shape index: {}]
  %s1 = inlined_call_operand.vmem [shape: f32[42,42], index: 1, kind: input, shape index: {}]
  %s2 = inlined_call_operand.vmem [shape: f32[68,32], index: 2, kind: input, shape index: {}]
  %s3 = inlined_call_operand.vmem [shape: f32[2,32,384], index: 3, kind: input, shape index: {}]
  %s4 = inlined_call_operand.vmem [shape: f32[2,128,32], index: 4, kind: input, shape index: {}]
  %s5 = inlined_call_operand.vmem [shape: f32[2,32,128], index: 5, kind: input, shape index: {}]
  %s6 = inlined_call_operand.vmem [shape: f32[2,128,32], index: 6, kind: input, shape index: {}]
  %s7 = inlined_call_operand.vmem [shape: f32[2,1,128], index: 7, kind: input, shape index: {}]
  %s8 = inlined_call_operand.vmem [shape: f32[2,6,32], index: 8, kind: input, shape index: {}]
  %s9 = inlined_call_operand.vmem [shape: f32[32,32], index: 9, kind: input, shape index: {}]
  %s10 = inlined_call_operand.vmem [shape: f32[1,32], index: 10, kind: input, shape index: {}]
  %s11 = inlined_call_operand.vmem [shape: f32[42,32], index: 11, kind: output, shape index: {}]
  %s12 = sld [smem:[#allocation0]]
  $region54: #{tpu_custom_call.1} parent=0
    _
  %s14 = ssub.s32 1, %s12
  %s15 = scalar_select 0, %s14, %s12
  // Predicated region
  $region2: #{tpu_custom_call.1} parent=0 // pred_check
    _
  $region3: #{tpu_custom_call.1} parent=0 // pred_check_branch
    %17 = sbr.rel (0) target = $region5
  $region4: #{tpu_custom_call.1} parent=0 // pred_region
    _
  $region5: #{tpu_custom_call.1} parent=0 // pred_fallthru
    _
  // Predicated region
  $region6: #{tpu_custom_call.1} parent=0 // pred_check
    _
  $region7: #{tpu_custom_call.1} parent=0 // pred_check_branch
    %19 = sbr.rel (0) target = $region9
  $region8: #{tpu_custom_call.1} parent=0 // pred_region
    _
  $region9: #{tpu_custom_call.1} parent=0 // pred_fallthru
    _
  // Predicated region
  $region10: #{tpu_custom_call.1} parent=0 // pred_check
    _
  $region11: #{tpu_custom_call.1} parent=0 // pred_check_branch
    %21 = sbr.rel (0) target = $region13
  $region12: #{tpu_custom_call.1} parent=0 // pred_region
    _
  $region13: #{tpu_custom_call.1} parent=0 // pred_fallthru
    _
  // Predicated region
  $region14: #{tpu_custom_call.1} parent=0 // pred_check
    _
  $region15: #{tpu_custom_call.1} parent=0 // pred_check_branch
    %23 = sbr.rel (0) target = $region17
  $region16: #{tpu_custom_call.1} parent=0 // pred_region
    _
  $region17: #{tpu_custom_call.1} parent=0 // pred_fallthru
    _
  // Predicated region
  $region18: #{tpu_custom_call.1} parent=0 // pred_check
    _
  $region19: #{tpu_custom_call.1} parent=0 // pred_check_branch
    %25 = sbr.rel (0) target = $region21
  $region20: #{tpu_custom_call.1} parent=0 // pred_region
    _
  $region21: #{tpu_custom_call.1} parent=0 // pred_fallthru
    _
  // Predicated region
  $region22: #{tpu_custom_call.1} parent=0 // pred_check
    _
  $region23: #{tpu_custom_call.1} parent=0 // pred_check_branch
    %27 = sbr.rel (0) target = $region25
  $region24: #{tpu_custom_call.1} parent=0 // pred_region
    _
  $region25: #{tpu_custom_call.1} parent=0 // pred_fallthru
    _
  // Predicated region
  $region26: #{tpu_custom_call.1} parent=0 // pred_check
    _
  $region27: #{tpu_custom_call.1} parent=0 // pred_check_branch
    %29 = sbr.rel (0) target = $region29
  $region28: #{tpu_custom_call.1} parent=0 // pred_region
    _
  $region29: #{tpu_custom_call.1} parent=0 // pred_fallthru
    _
  // Predicated region
  $region30: #{tpu_custom_call.1} parent=0 // pred_check
    _
  $region31: #{tpu_custom_call.1} parent=0 // pred_check_branch
    %31 = sbr.rel (0) target = $region33
  $region32: #{tpu_custom_call.1} parent=0 // pred_region
    _
  $region33: #{tpu_custom_call.1} parent=0 // pred_fallthru
    _
  // Predicated region
  $region34: #{tpu_custom_call.1} parent=0 // pred_check
    _
  $region35: #{tpu_custom_call.1} parent=0 // pred_check_branch
    %33 = sbr.rel (0) target = $region37
  $region36: #{tpu_custom_call.1} parent=0 // pred_region
    _
  $region37: #{tpu_custom_call.1} parent=0 // pred_fallthru
    _
  // Predicated region
  $region38: #{tpu_custom_call.1} parent=0 // pred_check
    _
  $region39: #{tpu_custom_call.1} parent=0 // pred_check_branch
    %35 = sbr.rel (0) target = $region41
  $region40: #{tpu_custom_call.1} parent=0 // pred_region
    _
  $region41: #{tpu_custom_call.1} parent=0 // pred_fallthru
    _
  // Predicated region
  $region42: #{tpu_custom_call.1} parent=0 // pred_check
    _
  $region43: #{tpu_custom_call.1} parent=0 // pred_check_branch
    %37 = sbr.rel (0) target = $region45
  $region44: #{tpu_custom_call.1} parent=0 // pred_region
    _
  $region45: #{tpu_custom_call.1} parent=0 // pred_fallthru
    _
  %v38 = vld [vmem:[%s1] sm:$0xff]
  %v39 = vld [vmem:[%s1 + $0x8] sm:$0xff]
  %v40 = vld [vmem:[%s1 + $0x10] sm:$0xff]
  %v41 = vld [vmem:[%s1 + $0x18] sm:$0xff]
  %v42 = vld [vmem:[%s1 + $0x20] sm:$0xff]
  %v43 = vld [vmem:[%s1 + $0x28] sm:$0x3]
  %v44 = vld [vmem:[%s0] sm:$0xff]
  %v45 = vld [vmem:[%s0 + $0x8] sm:$0xff]
  %v46 = vld [vmem:[%s0 + $0x10] sm:$0xff]
  %v47 = vld [vmem:[%s0 + $0x18] sm:$0xff]
  %v48 = vld [vmem:[%s0 + $0x20] sm:$0xff]
  %v49 = vld [vmem:[%s0 + $0x28] sm:$0x3]
  %v50 = vld [vmem:[%s2] sm:$0xff]
  %v51 = vld [vmem:[%s2 + $0x8] sm:$0xff]
  %v52 = vld [vmem:[%s2 + $0x10] sm:$0xff]
  %v53 = vld [vmem:[%s2 + $0x18] sm:$0xff]
  %v54 = vld [vmem:[%s2 + $0x20] sm:$0xff]
  %v55 = vld [vmem:[%s2 + $0x28] sm:$0xff]
  %v56 = vld [vmem:[%s2 + $0x30] sm:$0xff]
  %v57 = vld [vmem:[%s2 + $0x38] sm:$0xff]
  %v58 = vld [vmem:[%s2 + $0x40] sm:$0xf]
  %vm59 = vcmask 556032
  %v61 = vsel %vm59, %v44, 0
  %v64 = vsel %vm59, %v45, 0
  %v67 = vsel %vm59, %v46, 0
  %v70 = vsel %vm59, %v47, 0
  %v73 = vsel %vm59, %v48, 0
  %v76 = vsel %vm59, %v49, 0
  %vm78 = vcmask 1043456
  %v80 = vsel %vm78, %v58, 0
  %82 = vmatprep.subr.mxu0 0.0
  %83 = vmatpush1.msra.mxu0 0.0
  %84 = vmatprep.subr.mxu0 0.0
  %85 = vmatpush1.msra.mxu0 0.0
  %86 = vmatprep.subr.mxu0 0.0
  %87 = vmatpush1.msra.mxu0 0.0
  %88 = vmatprep.subr.mxu0 0.0
  %89 = vmatpush1.msra.mxu0 0.0
  %90 = vmatprep.subr.mxu0 0.0
  %91 = vmatpush1.msra.mxu0 0.0
  %92 = vmatprep.subr.mxu0 0.0
  %93 = vmatpush1.msra.mxu0 0.0
  %94 = vmatprep.subr.mxu0 0.0
  %95 = vmatpush1.msra.mxu0 0.0
  %96 = vmatprep.subr.mxu0 0.0
  %97 = vmatpush1.msra.mxu0 %v80
  %98 = vmatprep.subr.mxu0 0.0
  %99 = vmatpush1.msra.mxu0 %v57
  %100 = vmatprep.subr.mxu0 0.0
  %101 = vmatpush1.msra.mxu0 %v56
  %102 = vmatprep.subr.mxu0 0.0
  %103 = vmatpush1.msra.mxu0 %v55
  %104 = vmatprep.subr.mxu0 0.0
  %105 = vmatpush1.msra.mxu0 %v54
  %106 = vmatprep.subr.mxu0 0.0
  %107 = vmatpush1.msra.mxu0 %v53
  %108 = vmatprep.subr.mxu0 0.0
  %109 = vmatpush1.msra.mxu0 %v52
  %110 = vmatprep.subr.mxu0 0.0
  %111 = vmatpush1.msra.mxu0 %v51
  %112 = vmatprep.subr.mxu0 0.0
  %113 = vmatpush1.msra.mxu0 %v50
  %114 = vmatprep.subr.mxu0 0.0
  %115 = vmatpush2.msra.mxu0 0.0
  %116 = vmatprep.subr.mxu0 0.0
  %117 = vmatpush2.msra.mxu0 0.0
  %118 = vmatprep.subr.mxu0 0.0
  %119 = vmatpush2.msra.mxu0 0.0
  %120 = vmatprep.subr.mxu0 0.0
  %121 = vmatpush2.msra.mxu0 0.0
  %122 = vmatprep.subr.mxu0 0.0
  %123 = vmatpush2.msra.mxu0 0.0
  %124 = vmatprep.subr.mxu0 0.0
  %125 = vmatpush2.msra.mxu0 0.0
  %126 = vmatprep.subr.mxu0 0.0
  %127 = vmatpush2.msra.mxu0 0.0
  %128 = vmatprep.subr.mxu0 0.0
  %129 = vmatpush2.msra.mxu0 0.0
  %130 = vmatprep.subr.mxu0 0.0
  %131 = vmatpush2.msra.mxu0 0.0
  %132 = vmatprep.subr.mxu0 0.0
  %133 = vmatpush2.msra.mxu0 0.0
  %134 = vmatprep.subr.mxu0 0.0
  %135 = vmatpush2.msra.mxu0 0.0
  %136 = vmatprep.subr.mxu0 0.0
  %137 = vmatpush2.msra.mxu0 0.0
  %138 = vmatprep.subr.mxu0 0.0
  %139 = vmatpush2.msra.mxu0 0.0
  %140 = vmatprep.subr.mxu0 0.0
  %141 = vmatpush2.msra.mxu0 0.0
  %142 = vmatprep.subr.mxu0 0.0
  %143 = vmatpush2.msra.mxu0 0.0
  %144 = vmatprep.subr.mxu0 0.0
  %145 = vmatpush2.msra.mxu0 0.0
  %146 = vmatprep.mubr.f32.mxu0 0.0
  %147 = vmatmul.mubr.f32.gmra.mxu0 %v61
  %v148 = vpop.f32.mrf.mxu0
  %v149 = vadd.f32 0.0, %v148
  %v150 = vpop.f32.mrf.mxu0
  %151 = vmatprep.mubr.f32.mxu0 0.0
  %152 = vmatmul.mubr.f32.gmra.mxu0 %v64
  %v153 = vpop.f32.mrf.mxu0
  %v154 = vadd.f32 0.0, %v153
  %v155 = vpop.f32.mrf.mxu0
  %156 = vmatprep.mubr.f32.mxu0 0.0
  %157 = vmatmul.mubr.f32.gmra.mxu0 %v67
  %v158 = vpop.f32.mrf.mxu0
  %v159 = vadd.f32 0.0, %v158
  %v160 = vpop.f32.mrf.mxu0
  %161 = vmatprep.mubr.f32.mxu0 0.0
  %162 = vmatmul.mubr.f32.gmra.mxu0 %v70
  %v163 = vpop.f32.mrf.mxu0
  %v164 = vadd.f32 0.0, %v163
  %v165 = vpop.f32.mrf.mxu0
  %166 = vmatprep.mubr.f32.mxu0 0.0
  %167 = vmatmul.mubr.f32.gmra.mxu0 %v73
  %v168 = vpop.f32.mrf.mxu0
  %v169 = vadd.f32 0.0, %v168
  %v170 = vpop.f32.mrf.mxu0
  %171 = vmatprep.mubr.f32.mxu0 0.0
  %172 = vmatmul.mubr.f32.gmra.mxu0 %v76
  %v173 = vpop.f32.mrf.mxu0
  %v174 = vadd.f32 0.0, %v173
  %v175 = vpop.f32.mrf.mxu0
  %176 = vdwg.mxu0
  %v177 = vld [vmem:[%s8] sm:$0x3f]
  %v178 = vld [vmem:[%s4] sm:$0xff]
  %v179 = vld [vmem:[%s4 + $0x8] sm:$0xff]
  %v180 = vld [vmem:[%s4 + $0x10] sm:$0xff]
  %v181 = vld [vmem:[%s4 + $0x18] sm:$0xff]
  %v182 = vld [vmem:[%s4 + $0x20] sm:$0xff]
  %v183 = vld [vmem:[%s4 + $0x28] sm:$0xff]
  %v184 = vld [vmem:[%s4 + $0x30] sm:$0xff]
  %v185 = vld [vmem:[%s4 + $0x38] sm:$0xff]
  %v186 = vld [vmem:[%s4 + $0x40] sm:$0xff]
  %v187 = vld [vmem:[%s4 + $0x48] sm:$0xff]
  %v188 = vld [vmem:[%s4 + $0x50] sm:$0xff]
  %v189 = vld [vmem:[%s4 + $0x58] sm:$0xff]
  %v190 = vld [vmem:[%s4 + $0x60] sm:$0xff]
  %v191 = vld [vmem:[%s4 + $0x68] sm:$0xff]
  %v192 = vld [vmem:[%s4 + $0x70] sm:$0xff]
  %v193 = vld [vmem:[%s4 + $0x78] sm:$0xff]
  %v194 = vld [vmem:[%s3] sm:$0xff]
  %v195 = vld [vmem:[%s3 + $0x8] sm:$0xff]
  %v196 = vld [vmem:[%s3 + $0x10] sm:$0xff]
  %v197 = vld [vmem:[%s3 + $0x18] sm:$0xff]
  %v198 = vld [vmem:[%s3 + $0x20] sm:$0xff]
  %v199 = vld [vmem:[%s3 + $0x28] sm:$0xff]
  %v200 = vld [vmem:[%s3 + $0x30] sm:$0xff]
  %v201 = vld [vmem:[%s3 + $0x38] sm:$0xff]
  %v202 = vld [vmem:[%s3 + $0x40] sm:$0xff]
  %v203 = vld [vmem:[%s3 + $0x48] sm:$0xff]
  %v204 = vld [vmem:[%s3 + $0x50] sm:$0xff]
  %v205 = vld [vmem:[%s3 + $0x58] sm:$0xff]
  %vm206 = vcmask 261120
  %v208 = vsel %vm206, %v149, 0
  %v211 = vsel %vm206, %v154, 0
  %v214 = vsel %vm206, %v159, 0
  %v217 = vsel %vm206, %v164, 0
  %v220 = vsel %vm206, %v169, 0
  %v223 = vsel %vm206, %v174, 0
  %225 = vmatprep.subr.mxu0 0.0
  %226 = vmatpush1.msra.mxu0 0.0
  %227 = vmatprep.subr.mxu0 0.0
  %228 = vmatpush1.msra.mxu0 0.0
  %229 = vmatprep.subr.mxu0 0.0
  %230 = vmatpush1.msra.mxu0 0.0
  %231 = vmatprep.subr.mxu0 0.0
  %232 = vmatpush1.msra.mxu0 0.0
  %233 = vmatprep.subr.mxu0 0.0
  %234 = vmatpush1.msra.mxu0 0.0
  %235 = vmatprep.subr.mxu0 0.0
  %236 = vmatpush1.msra.mxu0 0.0
  %237 = vmatprep.subr.mxu0 0.0
  %238 = vmatpush1.msra.mxu0 0.0
  %239 = vmatprep.subr.mxu0 0.0
  %240 = vmatpush1.msra.mxu0 0.0
  %241 = vmatprep.subr.mxu0 0.0
  %242 = vmatpush1.msra.mxu0 0.0
  %243 = vmatprep.subr.mxu0 0.0
  %244 = vmatpush1.msra.mxu0 0.0
  %245 = vmatprep.subr.mxu0 0.0
  %246 = vmatpush1.msra.mxu0 0.0
  %247 = vmatprep.subr.mxu0 0.0
  %248 = vmatpush1.msra.mxu0 0.0
  %249 = vmatprep.subr.mxu0 %v204
  %250 = vmatpush1.msra.mxu0 %v203
  %251 = vmatprep.subr.mxu0 %v201
  %252 = vmatpush1.msra.mxu0 %v200
  %253 = vmatprep.subr.mxu0 %v198
  %254 = vmatpush1.msra.mxu0 %v197
  %255 = vmatprep.subr.mxu0 %v195
  %256 = vmatpush1.msra.mxu0 %v194
  %257 = vmatprep.subr.mxu0 0.0
  %258 = vmatpush2.msra.mxu0 0.0
  %259 = vmatprep.subr.mxu0 0.0
  %260 = vmatpush2.msra.mxu0 0.0
  %261 = vmatprep.subr.mxu0 0.0
  %262 = vmatpush2.msra.mxu0 0.0
  %263 = vmatprep.subr.mxu0 0.0
  %264 = vmatpush2.msra.mxu0 0.0
  %265 = vmatprep.subr.mxu0 0.0
  %266 = vmatpush2.msra.mxu0 0.0
  %267 = vmatprep.subr.mxu0 0.0
  %268 = vmatpush2.msra.mxu0 0.0
  %269 = vmatprep.subr.mxu0 0.0
  %270 = vmatpush2.msra.mxu0 0.0
  %271 = vmatprep.subr.mxu0 0.0
  %272 = vmatpush2.msra.mxu0 0.0
  %273 = vmatprep.subr.mxu0 0.0
  %274 = vmatpush2.msra.mxu0 0.0
  %275 = vmatprep.subr.mxu0 0.0
  %276 = vmatpush2.msra.mxu0 0.0
  %277 = vmatprep.subr.mxu0 0.0
  %278 = vmatpush2.msra.mxu0 0.0
  %279 = vmatprep.subr.mxu0 0.0
  %280 = vmatpush2.msra.mxu0 0.0
  %281 = vmatprep.subr.mxu0 0.0
  %282 = vmatpush2.msra.mxu0 0.0
  %283 = vmatprep.subr.mxu0 0.0
  %284 = vmatpush2.msra.mxu0 0.0
  %285 = vmatprep.subr.mxu0 0.0
  %286 = vmatpush2.msra.mxu0 0.0
  %287 = vmatprep.subr.mxu0 0.0
  %288 = vmatpush2.msra.mxu0 0.0
  %289 = vmatprep.mubr.f32.mxu0 0.0
  %290 = vmatmul.mubr.f32.gmra.mxu0 %v208
  %v291 = vpop.f32.mrf.mxu0
  %v292 = vadd.f32 0.0, %v291
  %v293 = vpop.f32.mrf.mxu0
  %v294 = vadd.f32 0.0, %v293
  %295 = vmatprep.mubr.f32.mxu0 0.0
  %296 = vmatmul.mubr.f32.gmra.mxu0 %v211
  %v297 = vpop.f32.mrf.mxu0
  %v298 = vadd.f32 0.0, %v297
  %v299 = vpop.f32.mrf.mxu0
  %v300 = vadd.f32 0.0, %v299
  %301 = vmatprep.mubr.f32.mxu0 0.0
  %302 = vmatmul.mubr.f32.gmra.mxu0 %v214
  %v303 = vpop.f32.mrf.mxu0
  %v304 = vadd.f32 0.0, %v303
  %v305 = vpop.f32.mrf.mxu0
  %v306 = vadd.f32 0.0, %v305
  %307 = vmatprep.mubr.f32.mxu0 0.0
  %308 = vmatmul.mubr.f32.gmra.mxu0 %v217
  %v309 = vpop.f32.mrf.mxu0
  %v310 = vadd.f32 0.0, %v309
  %v311 = vpop.f32.mrf.mxu0
  %v312 = vadd.f32 0.0, %v311
  %313 = vmatprep.mubr.f32.mxu0 0.0
  %314 = vmatmul.mubr.f32.gmra.mxu0 %v220
  %v315 = vpop.f32.mrf.mxu0
  %v316 = vadd.f32 0.0, %v315
  %v317 = vpop.f32.mrf.mxu0
  %v318 = vadd.f32 0.0, %v317
  %319 = vmatprep.mubr.f32.mxu0 0.0
  %320 = vmatmul.mubr.f32.gmra.mxu0 %v223
  %v321 = vpop.f32.mrf.mxu0
  %v322 = vadd.f32 0.0, %v321
  %v323 = vpop.f32.mrf.mxu0
  %v324 = vadd.f32 0.0, %v323
  %325 = vdwg.mxu0
  %326 = vmatprep.subr.mxu0 0.0
  %327 = vmatpush1.msra.mxu0 0.0
  %328 = vmatprep.subr.mxu0 0.0
  %329 = vmatpush1.msra.mxu0 0.0
  %330 = vmatprep.subr.mxu0 0.0
  %331 = vmatpush1.msra.mxu0 0.0
  %332 = vmatprep.subr.mxu0 0.0
  %333 = vmatpush1.msra.mxu0 0.0
  %334 = vmatprep.subr.mxu0 0.0
  %335 = vmatpush1.msra.mxu0 0.0
  %336 = vmatprep.subr.mxu0 0.0
  %337 = vmatpush1.msra.mxu0 0.0
  %338 = vmatprep.subr.mxu0 0.0
  %339 = vmatpush1.msra.mxu0 0.0
  %340 = vmatprep.subr.mxu0 0.0
  %341 = vmatpush1.msra.mxu0 0.0
  %342 = vmatprep.subr.mxu0 0.0
  %343 = vmatpush1.msra.mxu0 0.0
  %344 = vmatprep.subr.mxu0 0.0
  %345 = vmatpush1.msra.mxu0 0.0
  %346 = vmatprep.subr.mxu0 0.0
  %347 = vmatpush1.msra.mxu0 0.0
  %348 = vmatprep.subr.mxu0 0.0
  %349 = vmatpush1.msra.mxu0 0.0
  %350 = vmatprep.subr.mxu0 0.0
  %351 = vmatpush1.msra.mxu0 %v205
  %352 = vmatprep.subr.mxu0 0.0
  %353 = vmatpush1.msra.mxu0 %v202
  %354 = vmatprep.subr.mxu0 0.0
  %355 = vmatpush1.msra.mxu0 %v199
  %356 = vmatprep.subr.mxu0 0.0
  %357 = vmatpush1.msra.mxu0 %v196
  %358 = vmatprep.subr.mxu0 0.0
  %359 = vmatpush2.msra.mxu0 0.0
  %360 = vmatprep.subr.mxu0 0.0
  %361 = vmatpush2.msra.mxu0 0.0
  %362 = vmatprep.subr.mxu0 0.0
  %363 = vmatpush2.msra.mxu0 0.0
  %364 = vmatprep.subr.mxu0 0.0
  %365 = vmatpush2.msra.mxu0 0.0
  %366 = vmatprep.subr.mxu0 0.0
  %367 = vmatpush2.msra.mxu0 0.0
  %368 = vmatprep.subr.mxu0 0.0
  %369 = vmatpush2.msra.mxu0 0.0
  %370 = vmatprep.subr.mxu0 0.0
  %371 = vmatpush2.msra.mxu0 0.0
  %372 = vmatprep.subr.mxu0 0.0
  %373 = vmatpush2.msra.mxu0 0.0
  %374 = vmatprep.subr.mxu0 0.0
  %375 = vmatpush2.msra.mxu0 0.0
  %376 = vmatprep.subr.mxu0 0.0
  %377 = vmatpush2.msra.mxu0 0.0
  %378 = vmatprep.subr.mxu0 0.0
  %379 = vmatpush2.msra.mxu0 0.0
  %380 = vmatprep.subr.mxu0 0.0
  %381 = vmatpush2.msra.mxu0 0.0
  %382 = vmatprep.subr.mxu0 0.0
  %383 = vmatpush2.msra.mxu0 0.0
  %384 = vmatprep.subr.mxu0 0.0
  %385 = vmatpush2.msra.mxu0 0.0
  %386 = vmatprep.subr.mxu0 0.0
  %387 = vmatpush2.msra.mxu0 0.0
  %388 = vmatprep.subr.mxu0 0.0
  %389 = vmatpush2.msra.mxu0 0.0
  %390 = vmatprep.mubr.f32.mxu0 0.0
  %391 = vmatmul.mubr.f32.gmra.mxu0 %v208
  %v392 = vpop.f32.mrf.mxu0
  %v393 = vadd.f32 0.0, %v392
  %v394 = vpop.f32.mrf.mxu0
  %395 = vmatprep.mubr.f32.mxu0 0.0
  %396 = vmatmul.mubr.f32.gmra.mxu0 %v211
  %v397 = vpop.f32.mrf.mxu0
  %v398 = vadd.f32 0.0, %v397
  %v399 = vpop.f32.mrf.mxu0
  %400 = vmatprep.mubr.f32.mxu0 0.0
  %401 = vmatmul.mubr.f32.gmra.mxu0 %v214
  %v402 = vpop.f32.mrf.mxu0
  %v403 = vadd.f32 0.0, %v402
  %v404 = vpop.f32.mrf.mxu0
  %405 = vmatprep.mubr.f32.mxu0 0.0
  %406 = vmatmul.mubr.f32.gmra.mxu0 %v217
  %v407 = vpop.f32.mrf.mxu0
  %v408 = vadd.f32 0.0, %v407
  %v409 = vpop.f32.mrf.mxu0
  %410 = vmatprep.mubr.f32.mxu0 0.0
  %411 = vmatmul.mubr.f32.gmra.mxu0 %v220
  %v412 = vpop.f32.mrf.mxu0
  %v413 = vadd.f32 0.0, %v412
  %v414 = vpop.f32.mrf.mxu0
  %415 = vmatprep.mubr.f32.mxu0 0.0
  %416 = vmatmul.mubr.f32.gmra.mxu0 %v223
  %v417 = vpop.f32.mrf.mxu0
  %v418 = vadd.f32 0.0, %v417
  %v419 = vpop.f32.mrf.mxu0
  %420 = vdwg.mxu0
  %v421 = vlaneseq
  %v422 = vshrl.u32 %v421, 7
  %v423 = vsub.s32 0, %v422
  %v424 = vrot.slane %v177, %v423
  %v425 = vadd.f32 %v149, %v424
  %v426 = vadd.f32 %v154, %v424
  %v427 = vadd.f32 %v159, %v424
  %v428 = vadd.f32 %v164, %v424
  %v429 = vadd.f32 %v169, %v424
  %v430 = vadd.f32 %v174, %v424
  %v431 = vmul.f32 %v292, 0.4204482
  %v432 = vmul.f32 %v298, 0.4204482
  %v433 = vmul.f32 %v304, 0.4204482
  %v434 = vmul.f32 %v310, 0.4204482
  %v435 = vmul.f32 %v316, 0.4204482
  %v436 = vmul.f32 %v322, 0.4204482
  %v437 = vmul.f32 %v294, 0.4204482
  %v438 = vmul.f32 %v300, 0.4204482
  %v439 = vmul.f32 %v306, 0.4204482
  %v440 = vmul.f32 %v312, 0.4204482
  %v441 = vmul.f32 %v318, 0.4204482
  %v442 = vmul.f32 %v324, 0.4204482
  %v444 = vsel %vm206, %v431, 0
  %v447 = vsel %vm206, %v432, 0
  %v450 = vsel %vm206, %v433, 0
  %v453 = vsel %vm206, %v434, 0
  %v456 = vsel %vm206, %v435, 0
  %v459 = vsel %vm206, %v436, 0
  %v462 = vsel %vm206, %v437, 0
  %v465 = vsel %vm206, %v438, 0
  %v468 = vsel %vm206, %v439, 0
  %v471 = vsel %vm206, %v440, 0
  %v474 = vsel %vm206, %v441, 0
  %v477 = vsel %vm206, %v442, 0
  %479 = vmatprep.subr.mxu0 0.0
  %480 = vmatpush1.xpose.msra.mxu0 0.0
  %481 = vmatprep.subr.mxu0 0.0
  %482 = vmatpush1.xpose.msra.mxu0 0.0
  %483 = vmatprep.subr.mxu0 0.0
  %484 = vmatpush1.xpose.msra.mxu0 0.0
  %485 = vmatprep.subr.mxu0 0.0
  %486 = vmatpush1.xpose.msra.mxu0 0.0
  %487 = vmatprep.subr.mxu0 0.0
  %488 = vmatpush1.xpose.msra.mxu0 0.0
  %489 = vmatprep.subr.mxu0 0.0
  %490 = vmatpush1.xpose.msra.mxu0 0.0
  %491 = vmatprep.subr.mxu0 0.0
  %492 = vmatpush1.xpose.msra.mxu0 0.0
  %493 = vmatprep.subr.mxu0 0.0
  %494 = vmatpush1.xpose.msra.mxu0 0.0
  %495 = vmatprep.subr.mxu0 0.0
  %496 = vmatpush1.xpose.msra.mxu0 0.0
  %497 = vmatprep.subr.mxu0 0.0
  %498 = vmatpush1.xpose.msra.mxu0 0.0
  %499 = vmatprep.subr.mxu0 0.0
  %500 = vmatpush1.xpose.msra.mxu0 %v477
  %501 = vmatprep.subr.mxu0 0.0
  %502 = vmatpush1.xpose.msra.mxu0 %v474
  %503 = vmatprep.subr.mxu0 0.0
  %504 = vmatpush1.xpose.msra.mxu0 %v471
  %505 = vmatprep.subr.mxu0 0.0
  %506 = vmatpush1.xpose.msra.mxu0 %v468
  %507 = vmatprep.subr.mxu0 0.0
  %508 = vmatpush1.xpose.msra.mxu0 %v465
  %509 = vmatprep.subr.mxu0 0.0
  %510 = vmatpush1.xpose.msra.mxu0 %v462
  %511 = vmatprep.subr.mxu0 0.0
  %512 = vmatpush2.xpose.msra.mxu0 0.0
  %513 = vmatprep.subr.mxu0 0.0
  %514 = vmatpush2.xpose.msra.mxu0 0.0
  %515 = vmatprep.subr.mxu0 0.0
  %516 = vmatpush2.xpose.msra.mxu0 0.0
  %517 = vmatprep.subr.mxu0 0.0
  %518 = vmatpush2.xpose.msra.mxu0 0.0
  %519 = vmatprep.subr.mxu0 0.0
  %520 = vmatpush2.xpose.msra.mxu0 0.0
  %521 = vmatprep.subr.mxu0 0.0
  %522 = vmatpush2.xpose.msra.mxu0 0.0
  %523 = vmatprep.subr.mxu0 0.0
  %524 = vmatpush2.xpose.msra.mxu0 0.0
  %525 = vmatprep.subr.mxu0 0.0
  %526 = vmatpush2.xpose.msra.mxu0 0.0
  %527 = vmatprep.subr.mxu0 0.0
  %528 = vmatpush2.xpose.msra.mxu0 0.0
  %529 = vmatprep.subr.mxu0 0.0
  %530 = vmatpush2.xpose.msra.mxu0 0.0
  %531 = vmatprep.subr.mxu0 0.0
  %532 = vmatpush2.xpose.msra.mxu0 0.0
  %533 = vmatprep.subr.mxu0 0.0
  %534 = vmatpush2.xpose.msra.mxu0 0.0
  %535 = vmatprep.subr.mxu0 0.0
  %536 = vmatpush2.xpose.msra.mxu0 0.0
  %537 = vmatprep.subr.mxu0 0.0
  %538 = vmatpush2.xpose.msra.mxu0 0.0
  %539 = vmatprep.subr.mxu0 0.0
  %540 = vmatpush2.xpose.msra.mxu0 0.0
  %541 = vmatprep.subr.mxu0 0.0
  %542 = vmatpush2.xpose.msra.mxu0 0.0
  %543 = vmatprep.mubr.f32.mxu0 0.0
  %544 = vmatmul.mubr.f32.gmra.mxu0 %v444
  %v545 = vpop.f32.mrf.mxu0
  %v546 = vadd.f32 %v38, %v545
  %v547 = vpop.f32.mrf.mxu0
  %548 = vmatprep.mubr.f32.mxu0 0.0
  %549 = vmatmul.mubr.f32.gmra.mxu0 %v447
  %v550 = vpop.f32.mrf.mxu0
  %v551 = vadd.f32 %v39, %v550
  %v552 = vpop.f32.mrf.mxu0
  %553 = vmatprep.mubr.f32.mxu0 0.0
  %554 = vmatmul.mubr.f32.gmra.mxu0 %v450
  %v555 = vpop.f32.mrf.mxu0
  %v556 = vadd.f32 %v40, %v555
  %v557 = vpop.f32.mrf.mxu0
  %558 = vmatprep.mubr.f32.mxu0 0.0
  %559 = vmatmul.mubr.f32.gmra.mxu0 %v453
  %v560 = vpop.f32.mrf.mxu0
  %v561 = vadd.f32 %v41, %v560
  %v562 = vpop.f32.mrf.mxu0
  %563 = vmatprep.mubr.f32.mxu0 0.0
  %564 = vmatmul.mubr.f32.gmra.mxu0 %v456
  %v565 = vpop.f32.mrf.mxu0
  %v566 = vadd.f32 %v42, %v565
  %v567 = vpop.f32.mrf.mxu0
  %568 = vmatprep.mubr.f32.mxu0 0.0
  %569 = vmatmul.mubr.f32.gmra.mxu0 %v459
  %v570 = vpop.f32.mrf.mxu0
  %v571 = vadd.f32 %v43, %v570
  %v572 = vpop.f32.mrf.mxu0
  %573 = vdwg.mxu0
  %vm574 = vcmask 343040
  %v575 = vsel %vm574, %v546, -inf
  %576 = vmax.xlane.f32.xlu0 %v575
  %v577 = vpop.xlane.xlu0 %576
  %v578 = vsel %vm574, %v551, -inf
  %579 = vmax.xlane.f32.xlu0 %v578
  %v580 = vpop.xlane.xlu0 %579
  %v581 = vsel %vm574, %v556, -inf
  %582 = vmax.xlane.f32.xlu0 %v581
  %v583 = vpop.xlane.xlu0 %582
  %v584 = vsel %vm574, %v561, -inf
  %585 = vmax.xlane.f32.xlu0 %v584
  %v586 = vpop.xlane.xlu0 %585
  %v587 = vsel %vm574, %v566, -inf
  %588 = vmax.xlane.f32.xlu0 %v587
  %v589 = vpop.xlane.xlu0 %588
  %vm590 = vcmask 336896
  %v591 = vsel %vm590, %v571, -inf
  %592 = vmax.xlane.f32.xlu0 %v591
  %v593 = vpop.xlane.xlu0 %592
  %v594 = vsub.f32 %v546, %v577
  %v595 = vsub.f32 %v551, %v580
  %v596 = vsub.f32 %v556, %v583
  %v597 = vsub.f32 %v561, %v586
  %v598 = vsub.f32 %v566, %v589
  %v599 = vsub.f32 %v571, %v593
  %v600 = vmul.f32 %v594, 1.442695
  %v601 = vpow.pop %v600
  %v602 = vmul.f32 %v595, 1.442695
  %v603 = vpow.pop %v602
  %v604 = vmul.f32 %v596, 1.442695
  %v605 = vpow.pop %v604
  %v606 = vmul.f32 %v597, 1.442695
  %v607 = vpow.pop %v606
  %v608 = vmul.f32 %v598, 1.442695
  %v609 = vpow.pop %v608
  %v610 = vmul.f32 %v599, 1.442695
  %v611 = vpow.pop %v610
  %v612 = vsel %vm574, %v601, 0.0
  %613 = vadd.xlane.f32.xlu0 %v612
  %v614 = vpop.xlane.xlu0 %613
  %v615 = vsel %vm574, %v603, 0.0
  %616 = vadd.xlane.f32.xlu0 %v615
  %v617 = vpop.xlane.xlu0 %616
  %v618 = vsel %vm574, %v605, 0.0
  %619 = vadd.xlane.f32.xlu0 %v618
  %v620 = vpop.xlane.xlu0 %619
  %v621 = vsel %vm574, %v607, 0.0
  %622 = vadd.xlane.f32.xlu0 %v621
  %v623 = vpop.xlane.xlu0 %622
  %v624 = vsel %vm574, %v609, 0.0
  %625 = vadd.xlane.f32.xlu0 %v624
  %v626 = vpop.xlane.xlu0 %625
  %v627 = vsel %vm590, %v611, 0.0
  %628 = vadd.xlane.f32.xlu0 %v627
  %v629 = vpop.xlane.xlu0 %628
  %v630 = vrcp.pop %v614
  %v631 = vrcp.pop %v617
  %v632 = vrcp.pop %v620
  %v633 = vrcp.pop %v623
  %v634 = vrcp.pop %v626
  %v635 = vrcp.pop %v629
  %v636 = vmul.f32 %v601, %v630
  %v637 = vmul.f32 %v603, %v631
  %v638 = vmul.f32 %v605, %v632
  %v639 = vmul.f32 %v607, %v633
  %v640 = vmul.f32 %v609, %v634
  %v641 = vmul.f32 %v611, %v635
  %v643 = vsel %vm574, %v636, 0
  %v646 = vsel %vm574, %v637, 0
  %v649 = vsel %vm574, %v638, 0
  %v652 = vsel %vm574, %v639, 0
  %v655 = vsel %vm574, %v640, 0
  %v658 = vsel %vm574, %v641, 0
  %vm660 = vcmask 1041408
  %v662 = vsel %vm660, %v418, 0
  %664 = vmatprep.subr.mxu0 0.0
  %665 = vmatpush1.msra.mxu0 0.0
  %666 = vmatprep.subr.mxu0 0.0
  %667 = vmatpush1.msra.mxu0 0.0
  %668 = vmatprep.subr.mxu0 0.0
  %669 = vmatpush1.msra.mxu0 0.0
  %670 = vmatprep.subr.mxu0 0.0
  %671 = vmatpush1.msra.mxu0 0.0
  %672 = vmatprep.subr.mxu0 0.0
  %673 = vmatpush1.msra.mxu0 0.0
  %674 = vmatprep.subr.mxu0 0.0
  %675 = vmatpush1.msra.mxu0 0.0
  %676 = vmatprep.subr.mxu0 0.0
  %677 = vmatpush1.msra.mxu0 0.0
  %678 = vmatprep.subr.mxu0 0.0
  %679 = vmatpush1.msra.mxu0 0.0
  %680 = vmatprep.subr.mxu0 0.0
  %681 = vmatpush1.msra.mxu0 0.0
  %682 = vmatprep.subr.mxu0 0.0
  %683 = vmatpush1.msra.mxu0 0.0
  %684 = vmatprep.subr.mxu0 0.0
  %685 = vmatpush1.msra.mxu0 %v662
  %686 = vmatprep.subr.mxu0 0.0
  %687 = vmatpush1.msra.mxu0 %v413
  %688 = vmatprep.subr.mxu0 0.0
  %689 = vmatpush1.msra.mxu0 %v408
  %690 = vmatprep.subr.mxu0 0.0
  %691 = vmatpush1.msra.mxu0 %v403
  %692 = vmatprep.subr.mxu0 0.0
  %693 = vmatpush1.msra.mxu0 %v398
  %694 = vmatprep.subr.mxu0 0.0
  %695 = vmatpush1.msra.mxu0 %v393
  %696 = vmatprep.subr.mxu0 0.0
  %697 = vmatpush2.msra.mxu0 0.0
  %698 = vmatprep.subr.mxu0 0.0
  %699 = vmatpush2.msra.mxu0 0.0
  %700 = vmatprep.subr.mxu0 0.0
  %701 = vmatpush2.msra.mxu0 0.0
  %702 = vmatprep.subr.mxu0 0.0
  %703 = vmatpush2.msra.mxu0 0.0
  %704 = vmatprep.subr.mxu0 0.0
  %705 = vmatpush2.msra.mxu0 0.0
  %706 = vmatprep.subr.mxu0 0.0
  %707 = vmatpush2.msra.mxu0 0.0
  %708 = vmatprep.subr.mxu0 0.0
  %709 = vmatpush2.msra.mxu0 0.0
  %710 = vmatprep.subr.mxu0 0.0
  %711 = vmatpush2.msra.mxu0 0.0
  %712 = vmatprep.subr.mxu0 0.0
  %713 = vmatpush2.msra.mxu0 0.0
  %714 = vmatprep.subr.mxu0 0.0
  %715 = vmatpush2.msra.mxu0 0.0
  %716 = vmatprep.subr.mxu0 0.0
  %717 = vmatpush2.msra.mxu0 0.0
  %718 = vmatprep.subr.mxu0 0.0
  %719 = vmatpush2.msra.mxu0 0.0
  %720 = vmatprep.subr.mxu0 0.0
  %721 = vmatpush2.msra.mxu0 0.0
  %722 = vmatprep.subr.mxu0 0.0
  %723 = vmatpush2.msra.mxu0 0.0
  %724 = vmatprep.subr.mxu0 0.0
  %725 = vmatpush2.msra.mxu0 0.0
  %726 = vmatprep.subr.mxu0 0.0
  %727 = vmatpush2.msra.mxu0 0.0
  %728 = vmatprep.mubr.f32.mxu0 0.0
  %729 = vmatmul.mubr.f32.gmra.mxu0 %v643
  %v730 = vpop.f32.mrf.mxu0
  %v731 = vadd.f32 0.0, %v730
  %v732 = vpop.f32.mrf.mxu0
  %733 = vmatprep.mubr.f32.mxu0 0.0
  %734 = vmatmul.mubr.f32.gmra.mxu0 %v646
  %v735 = vpop.f32.mrf.mxu0
  %v736 = vadd.f32 0.0, %v735
  %v737 = vpop.f32.mrf.mxu0
  %738 = vmatprep.mubr.f32.mxu0 0.0
  %739 = vmatmul.mubr.f32.gmra.mxu0 %v649
  %v740 = vpop.f32.mrf.mxu0
  %v741 = vadd.f32 0.0, %v740
  %v742 = vpop.f32.mrf.mxu0
  %743 = vmatprep.mubr.f32.mxu0 0.0
  %744 = vmatmul.mubr.f32.gmra.mxu0 %v652
  %v745 = vpop.f32.mrf.mxu0
  %v746 = vadd.f32 0.0, %v745
  %v747 = vpop.f32.mrf.mxu0
  %748 = vmatprep.mubr.f32.mxu0 0.0
  %749 = vmatmul.mubr.f32.gmra.mxu0 %v655
  %v750 = vpop.f32.mrf.mxu0
  %v751 = vadd.f32 0.0, %v750
  %v752 = vpop.f32.mrf.mxu0
  %753 = vmatprep.mubr.f32.mxu0 0.0
  %754 = vmatmul.mubr.f32.gmra.mxu0 %v658
  %v755 = vpop.f32.mrf.mxu0
  %v756 = vadd.f32 0.0, %v755
  %v757 = vpop.f32.mrf.mxu0
  %758 = vdwg.mxu0
  %v760 = vsel %vm206, %v731, 0
  %v763 = vsel %vm206, %v736, 0
  %v766 = vsel %vm206, %v741, 0
  %v769 = vsel %vm206, %v746, 0
  %v772 = vsel %vm206, %v751, 0
  %v775 = vsel %vm206, %v756, 0
  %777 = vmatprep.subr.mxu0 0.0
  %778 = vmatpush1.msra.mxu0 0.0
  %779 = vmatprep.subr.mxu0 0.0
  %780 = vmatpush1.msra.mxu0 0.0
  %781 = vmatprep.subr.mxu0 0.0
  %782 = vmatpush1.msra.mxu0 0.0
  %783 = vmatprep.subr.mxu0 0.0
  %784 = vmatpush1.msra.mxu0 0.0
  %785 = vmatprep.subr.mxu0 0.0
  %786 = vmatpush1.msra.mxu0 0.0
  %787 = vmatprep.subr.mxu0 0.0
  %788 = vmatpush1.msra.mxu0 0.0
  %789 = vmatprep.subr.mxu0 0.0
  %790 = vmatpush1.msra.mxu0 0.0
  %791 = vmatprep.subr.mxu0 0.0
  %792 = vmatpush1.msra.mxu0 0.0
  %793 = vmatprep.subr.mxu0 0.0
  %794 = vmatpush1.msra.mxu0 0.0
  %795 = vmatprep.subr.mxu0 0.0
  %796 = vmatpush1.msra.mxu0 0.0
  %797 = vmatprep.subr.mxu0 0.0
  %798 = vmatpush1.msra.mxu0 0.0
  %799 = vmatprep.subr.mxu0 0.0
  %800 = vmatpush1.msra.mxu0 0.0
  %801 = vmatprep.subr.mxu0 0.0
  %802 = vmatpush1.msra.mxu0 %v181
  %803 = vmatprep.subr.mxu0 0.0
  %804 = vmatpush1.msra.mxu0 %v180
  %805 = vmatprep.subr.mxu0 0.0
  %806 = vmatpush1.msra.mxu0 %v179
  %807 = vmatprep.subr.mxu0 0.0
  %808 = vmatpush1.msra.mxu0 %v178
  %809 = vmatprep.subr.mxu0 0.0
  %810 = vmatpush2.msra.mxu0 0.0
  %811 = vmatprep.subr.mxu0 0.0
  %812 = vmatpush2.msra.mxu0 0.0
  %813 = vmatprep.subr.mxu0 0.0
  %814 = vmatpush2.msra.mxu0 0.0
  %815 = vmatprep.subr.mxu0 0.0
  %816 = vmatpush2.msra.mxu0 0.0
  %817 = vmatprep.subr.mxu0 0.0
  %818 = vmatpush2.msra.mxu0 0.0
  %819 = vmatprep.subr.mxu0 0.0
  %820 = vmatpush2.msra.mxu0 0.0
  %821 = vmatprep.subr.mxu0 0.0
  %822 = vmatpush2.msra.mxu0 0.0
  %823 = vmatprep.subr.mxu0 0.0
  %824 = vmatpush2.msra.mxu0 0.0
  %825 = vmatprep.subr.mxu0 0.0
  %826 = vmatpush2.msra.mxu0 0.0
  %827 = vmatprep.subr.mxu0 0.0
  %828 = vmatpush2.msra.mxu0 0.0
  %829 = vmatprep.subr.mxu0 0.0
  %830 = vmatpush2.msra.mxu0 0.0
  %831 = vmatprep.subr.mxu0 0.0
  %832 = vmatpush2.msra.mxu0 0.0
  %833 = vmatprep.subr.mxu0 0.0
  %834 = vmatpush2.msra.mxu0 0.0
  %835 = vmatprep.subr.mxu0 0.0
  %836 = vmatpush2.msra.mxu0 0.0
  %837 = vmatprep.subr.mxu0 0.0
  %838 = vmatpush2.msra.mxu0 0.0
  %839 = vmatprep.subr.mxu0 0.0
  %840 = vmatpush2.msra.mxu0 0.0
  %841 = vmatprep.mubr.f32.mxu0 0.0
  %842 = vmatmul.mubr.f32.gmra.mxu0 %v760
  %v843 = vpop.f32.mrf.mxu0
  %v844 = vadd.f32 0.0, %v843
  %v845 = vpop.f32.mrf.mxu0
  %846 = vmatprep.mubr.f32.mxu0 0.0
  %847 = vmatmul.mubr.f32.gmra.mxu0 %v763
  %v848 = vpop.f32.mrf.mxu0
  %v849 = vadd.f32 0.0, %v848
  %v850 = vpop.f32.mrf.mxu0
  %851 = vmatprep.mubr.f32.mxu0 0.0
  %852 = vmatmul.mubr.f32.gmra.mxu0 %v766
  %v853 = vpop.f32.mrf.mxu0
  %v854 = vadd.f32 0.0, %v853
  %v855 = vpop.f32.mrf.mxu0
  %856 = vmatprep.mubr.f32.mxu0 0.0
  %857 = vmatmul.mubr.f32.gmra.mxu0 %v769
  %v858 = vpop.f32.mrf.mxu0
  %v859 = vadd.f32 0.0, %v858
  %v860 = vpop.f32.mrf.mxu0
  %861 = vmatprep.mubr.f32.mxu0 0.0
  %862 = vmatmul.mubr.f32.gmra.mxu0 %v772
  %v863 = vpop.f32.mrf.mxu0
  %v864 = vadd.f32 0.0, %v863
  %v865 = vpop.f32.mrf.mxu0
  %866 = vmatprep.mubr.f32.mxu0 0.0
  %867 = vmatmul.mubr.f32.gmra.mxu0 %v775
  %v868 = vpop.f32.mrf.mxu0
  %v869 = vadd.f32 0.0, %v868
  %v870 = vpop.f32.mrf.mxu0
  %871 = vdwg.mxu0
  %v872 = vadd.f32 %v425, %v844
  %v873 = vadd.f32 %v426, %v849
  %v874 = vadd.f32 %v427, %v854
  %v875 = vadd.f32 %v428, %v859
  %v876 = vadd.f32 %v429, %v864
  %v877 = vadd.f32 %v430, %v869
  %878 = vrot.lane.b32.xlu0 %v431, 96
  %v879 = vpop.permute.xlu0 %878
  %880 = vrot.lane.b32.xlu0 %v432, 96
  %v881 = vpop.permute.xlu0 %880
  %882 = vrot.lane.b32.xlu0 %v433, 96
  %v883 = vpop.permute.xlu0 %882
  %884 = vrot.lane.b32.xlu0 %v434, 96
  %v885 = vpop.permute.xlu0 %884
  %886 = vrot.lane.b32.xlu0 %v435, 96
  %v887 = vpop.permute.xlu0 %886
  %888 = vrot.lane.b32.xlu0 %v436, 96
  %v889 = vpop.permute.xlu0 %888
  %890 = vrot.lane.b32.xlu0 %v437, 96
  %v891 = vpop.permute.xlu0 %890
  %892 = vrot.lane.b32.xlu0 %v438, 96
  %v893 = vpop.permute.xlu0 %892
  %894 = vrot.lane.b32.xlu0 %v439, 96
  %v895 = vpop.permute.xlu0 %894
  %896 = vrot.lane.b32.xlu0 %v440, 96
  %v897 = vpop.permute.xlu0 %896
  %898 = vrot.lane.b32.xlu0 %v441, 96
  %v899 = vpop.permute.xlu0 %898
  %900 = vrot.lane.b32.xlu0 %v442, 96
  %v901 = vpop.permute.xlu0 %900
  %v902 = vsel %vm206, %v879, 0
  %v904 = vsel %vm206, %v881, 0
  %v906 = vsel %vm206, %v883, 0
  %v908 = vsel %vm206, %v885, 0
  %v910 = vsel %vm206, %v887, 0
  %v912 = vsel %vm206, %v889, 0
  %v914 = vsel %vm206, %v891, 0
  %v916 = vsel %vm206, %v893, 0
  %v918 = vsel %vm206, %v895, 0
  %v920 = vsel %vm206, %v897, 0
  %v922 = vsel %vm206, %v899, 0
  %v924 = vsel %vm206, %v901, 0
  %926 = vmatprep.subr.mxu0 0.0
  %927 = vmatpush1.xpose.msra.mxu0 0.0
  %928 = vmatprep.subr.mxu0 0.0
  %929 = vmatpush1.xpose.msra.mxu0 0.0
  %930 = vmatprep.subr.mxu0 0.0
  %931 = vmatpush1.xpose.msra.mxu0 0.0
  %932 = vmatprep.subr.mxu0 0.0
  %933 = vmatpush1.xpose.msra.mxu0 0.0
  %934 = vmatprep.subr.mxu0 0.0
  %935 = vmatpush1.xpose.msra.mxu0 0.0
  %936 = vmatprep.subr.mxu0 0.0
  %937 = vmatpush1.xpose.msra.mxu0 0.0
  %938 = vmatprep.subr.mxu0 0.0
  %939 = vmatpush1.xpose.msra.mxu0 0.0
  %940 = vmatprep.subr.mxu0 0.0
  %941 = vmatpush1.xpose.msra.mxu0 0.0
  %942 = vmatprep.subr.mxu0 0.0
  %943 = vmatpush1.xpose.msra.mxu0 0.0
  %944 = vmatprep.subr.mxu0 0.0
  %945 = vmatpush1.xpose.msra.mxu0 0.0
  %946 = vmatprep.subr.mxu0 0.0
  %947 = vmatpush1.xpose.msra.mxu0 %v924
  %948 = vmatprep.subr.mxu0 0.0
  %949 = vmatpush1.xpose.msra.mxu0 %v922
  %950 = vmatprep.subr.mxu0 0.0
  %951 = vmatpush1.xpose.msra.mxu0 %v920
  %952 = vmatprep.subr.mxu0 0.0
  %953 = vmatpush1.xpose.msra.mxu0 %v918
  %954 = vmatprep.subr.mxu0 0.0
  %955 = vmatpush1.xpose.msra.mxu0 %v916
  %956 = vmatprep.subr.mxu0 0.0
  %957 = vmatpush1.xpose.msra.mxu0 %v914
  %958 = vmatprep.subr.mxu0 0.0
  %959 = vmatpush2.xpose.msra.mxu0 0.0
  %960 = vmatprep.subr.mxu0 0.0
  %961 = vmatpush2.xpose.msra.mxu0 0.0
  %962 = vmatprep.subr.mxu0 0.0
  %963 = vmatpush2.xpose.msra.mxu0 0.0
  %964 = vmatprep.subr.mxu0 0.0
  %965 = vmatpush2.xpose.msra.mxu0 0.0
  %966 = vmatprep.subr.mxu0 0.0
  %967 = vmatpush2.xpose.msra.mxu0 0.0
  %968 = vmatprep.subr.mxu0 0.0
  %969 = vmatpush2.xpose.msra.mxu0 0.0
  %970 = vmatprep.subr.mxu0 0.0
  %971 = vmatpush2.xpose.msra.mxu0 0.0
  %972 = vmatprep.subr.mxu0 0.0
  %973 = vmatpush2.xpose.msra.mxu0 0.0
  %974 = vmatprep.subr.mxu0 0.0
  %975 = vmatpush2.xpose.msra.mxu0 0.0
  %976 = vmatprep.subr.mxu0 0.0
  %977 = vmatpush2.xpose.msra.mxu0 0.0
  %978 = vmatprep.subr.mxu0 0.0
  %979 = vmatpush2.xpose.msra.mxu0 0.0
  %980 = vmatprep.subr.mxu0 0.0
  %981 = vmatpush2.xpose.msra.mxu0 0.0
  %982 = vmatprep.subr.mxu0 0.0
  %983 = vmatpush2.xpose.msra.mxu0 0.0
  %984 = vmatprep.subr.mxu0 0.0
  %985 = vmatpush2.xpose.msra.mxu0 0.0
  %986 = vmatprep.subr.mxu0 0.0
  %987 = vmatpush2.xpose.msra.mxu0 0.0
  %988 = vmatprep.subr.mxu0 0.0
  %989 = vmatpush2.xpose.msra.mxu0 0.0
  %990 = vmatprep.mubr.f32.mxu0 0.0
  %991 = vmatmul.mubr.f32.gmra.mxu0 %v902
  %v992 = vpop.f32.mrf.mxu0
  %v993 = vadd.f32 %v38, %v992
  %v994 = vpop.f32.mrf.mxu0
  %995 = vmatprep.mubr.f32.mxu0 0.0
  %996 = vmatmul.mubr.f32.gmra.mxu0 %v904
  %v997 = vpop.f32.mrf.mxu0
  %v998 = vadd.f32 %v39, %v997
  %v999 = vpop.f32.mrf.mxu0
  %1000 = vmatprep.mubr.f32.mxu0 0.0
  %1001 = vmatmul.mubr.f32.gmra.mxu0 %v906
  %v1002 = vpop.f32.mrf.mxu0
  %v1003 = vadd.f32 %v40, %v1002
  %v1004 = vpop.f32.mrf.mxu0
  %1005 = vmatprep.mubr.f32.mxu0 0.0
  %1006 = vmatmul.mubr.f32.gmra.mxu0 %v908
  %v1007 = vpop.f32.mrf.mxu0
  %v1008 = vadd.f32 %v41, %v1007
  %v1009 = vpop.f32.mrf.mxu0
  %1010 = vmatprep.mubr.f32.mxu0 0.0
  %1011 = vmatmul.mubr.f32.gmra.mxu0 %v910
  %v1012 = vpop.f32.mrf.mxu0
  %v1013 = vadd.f32 %v42, %v1012
  %v1014 = vpop.f32.mrf.mxu0
  %1015 = vmatprep.mubr.f32.mxu0 0.0
  %1016 = vmatmul.mubr.f32.gmra.mxu0 %v912
  %v1017 = vpop.f32.mrf.mxu0
  %v1018 = vadd.f32 %v43, %v1017
  %v1019 = vpop.f32.mrf.mxu0
  %1020 = vdwg.mxu0
  %v1021 = vsel %vm574, %v993, -inf
  %1022 = vmax.xlane.f32.xlu0 %v1021
  %v1023 = vpop.xlane.xlu0 %1022
  %v1024 = vsel %vm574, %v998, -inf
  %1025 = vmax.xlane.f32.xlu0 %v1024
  %v1026 = vpop.xlane.xlu0 %1025
  %v1027 = vsel %vm574, %v1003, -inf
  %1028 = vmax.xlane.f32.xlu0 %v1027
  %v1029 = vpop.xlane.xlu0 %1028
  %v1030 = vsel %vm574, %v1008, -inf
  %1031 = vmax.xlane.f32.xlu0 %v1030
  %v1032 = vpop.xlane.xlu0 %1031
  %v1033 = vsel %vm574, %v1013, -inf
  %1034 = vmax.xlane.f32.xlu0 %v1033
  %v1035 = vpop.xlane.xlu0 %1034
  %v1036 = vsel %vm590, %v1018, -inf
  %1037 = vmax.xlane.f32.xlu0 %v1036
  %v1038 = vpop.xlane.xlu0 %1037
  %v1039 = vsub.f32 %v993, %v1023
  %v1040 = vsub.f32 %v998, %v1026
  %v1041 = vsub.f32 %v1003, %v1029
  %v1042 = vsub.f32 %v1008, %v1032
  %v1043 = vsub.f32 %v1013, %v1035
  %v1044 = vsub.f32 %v1018, %v1038
  %v1045 = vmul.f32 %v1039, 1.442695
  %v1046 = vpow.pop %v1045
  %v1047 = vmul.f32 %v1040, 1.442695
  %v1048 = vpow.pop %v1047
  %v1049 = vmul.f32 %v1041, 1.442695
  %v1050 = vpow.pop %v1049
  %v1051 = vmul.f32 %v1042, 1.442695
  %v1052 = vpow.pop %v1051
  %v1053 = vmul.f32 %v1043, 1.442695
  %v1054 = vpow.pop %v1053
  %v1055 = vmul.f32 %v1044, 1.442695
  %v1056 = vpow.pop %v1055
  %v1057 = vsel %vm574, %v1046, 0.0
  %1058 = vadd.xlane.f32.xlu0 %v1057
  %v1059 = vpop.xlane.xlu0 %1058
  %v1060 = vsel %vm574, %v1048, 0.0
  %1061 = vadd.xlane.f32.xlu0 %v1060
  %v1062 = vpop.xlane.xlu0 %1061
  %v1063 = vsel %vm574, %v1050, 0.0
  %1064 = vadd.xlane.f32.xlu0 %v1063
  %v1065 = vpop.xlane.xlu0 %1064
  %v1066 = vsel %vm574, %v1052, 0.0
  %1067 = vadd.xlane.f32.xlu0 %v1066
  %v1068 = vpop.xlane.xlu0 %1067
  %v1069 = vsel %vm574, %v1054, 0.0
  %1070 = vadd.xlane.f32.xlu0 %v1069
  %v1071 = vpop.xlane.xlu0 %1070
  %v1072 = vsel %vm590, %v1056, 0.0
  %1073 = vadd.xlane.f32.xlu0 %v1072
  %v1074 = vpop.xlane.xlu0 %1073
  %v1075 = vrcp.pop %v1059
  %v1076 = vrcp.pop %v1062
  %v1077 = vrcp.pop %v1065
  %v1078 = vrcp.pop %v1068
  %v1079 = vrcp.pop %v1071
  %v1080 = vrcp.pop %v1074
  %v1081 = vmul.f32 %v1046, %v1075
  %v1082 = vmul.f32 %v1048, %v1076
  %v1083 = vmul.f32 %v1050, %v1077
  %v1084 = vmul.f32 %v1052, %v1078
  %v1085 = vmul.f32 %v1054, %v1079
  %v1086 = vmul.f32 %v1056, %v1080
  %1092 = vrot.lane.b32.xlu0 %v393, 96
  %v1093 = vpop.permute.xlu0 %1092
  %1094 = vrot.lane.b32.xlu0 %v398, 96
  %v1095 = vpop.permute.xlu0 %1094
  %1096 = vrot.lane.b32.xlu0 %v403, 96
  %v1097 = vpop.permute.xlu0 %1096
  %1098 = vrot.lane.b32.xlu0 %v408, 96
  %v1099 = vpop.permute.xlu0 %1098
  %1100 = vrot.lane.b32.xlu0 %v413, 96
  %v1101 = vpop.permute.xlu0 %1100
  %1102 = vrot.lane.b32.xlu0 %v418, 96
  %v1103 = vpop.permute.xlu0 %1102
  %v1110 = vsel %vm574, %v1081, 0
  %v1113 = vsel %vm574, %v1082, 0
  %v1116 = vsel %vm574, %v1083, 0
  %v1119 = vsel %vm574, %v1084, 0
  %v1122 = vsel %vm574, %v1085, 0
  %v1125 = vsel %vm574, %v1086, 0
  %v1127 = vsel %vm660, %v1103, 0
  %1129 = vmatprep.subr.mxu0 0.0
  %1130 = vmatpush1.msra.mxu0 0.0
  %1131 = vmatprep.subr.mxu0 0.0
  %1132 = vmatpush1.msra.mxu0 0.0
  %1133 = vmatprep.subr.mxu0 0.0
  %1134 = vmatpush1.msra.mxu0 0.0
  %1135 = vmatprep.subr.mxu0 0.0
  %1136 = vmatpush1.msra.mxu0 0.0
  %1137 = vmatprep.subr.mxu0 0.0
  %1138 = vmatpush1.msra.mxu0 0.0
  %1139 = vmatprep.subr.mxu0 0.0
  %1140 = vmatpush1.msra.mxu0 0.0
  %1141 = vmatprep.subr.mxu0 0.0
  %1142 = vmatpush1.msra.mxu0 0.0
  %1143 = vmatprep.subr.mxu0 0.0
  %1144 = vmatpush1.msra.mxu0 0.0
  %1145 = vmatprep.subr.mxu0 0.0
  %1146 = vmatpush1.msra.mxu0 0.0
  %1147 = vmatprep.subr.mxu0 0.0
  %1148 = vmatpush1.msra.mxu0 0.0
  %1149 = vmatprep.subr.mxu0 0.0
  %1150 = vmatpush1.msra.mxu0 %v1127
  %1151 = vmatprep.subr.mxu0 0.0
  %1152 = vmatpush1.msra.mxu0 %v1101
  %1153 = vmatprep.subr.mxu0 0.0
  %1154 = vmatpush1.msra.mxu0 %v1099
  %1155 = vmatprep.subr.mxu0 0.0
  %1156 = vmatpush1.msra.mxu0 %v1097
  %1157 = vmatprep.subr.mxu0 0.0
  %1158 = vmatpush1.msra.mxu0 %v1095
  %1159 = vmatprep.subr.mxu0 0.0
  %1160 = vmatpush1.msra.mxu0 %v1093
  %1161 = vmatprep.subr.mxu0 0.0
  %1162 = vmatpush2.msra.mxu0 0.0
  %1163 = vmatprep.subr.mxu0 0.0
  %1164 = vmatpush2.msra.mxu0 0.0
  %1165 = vmatprep.subr.mxu0 0.0
  %1166 = vmatpush2.msra.mxu0 0.0
  %1167 = vmatprep.subr.mxu0 0.0
  %1168 = vmatpush2.msra.mxu0 0.0
  %1169 = vmatprep.subr.mxu0 0.0
  %1170 = vmatpush2.msra.mxu0 0.0
  %1171 = vmatprep.subr.mxu0 0.0
  %1172 = vmatpush2.msra.mxu0 0.0
  %1173 = vmatprep.subr.mxu0 0.0
  %1174 = vmatpush2.msra.mxu0 0.0
  %1175 = vmatprep.subr.mxu0 0.0
  %1176 = vmatpush2.msra.mxu0 0.0
  %1177 = vmatprep.subr.mxu0 0.0
  %1178 = vmatpush2.msra.mxu0 0.0
  %1179 = vmatprep.subr.mxu0 0.0
  %1180 = vmatpush2.msra.mxu0 0.0
  %1181 = vmatprep.subr.mxu0 0.0
  %1182 = vmatpush2.msra.mxu0 0.0
  %1183 = vmatprep.subr.mxu0 0.0
  %1184 = vmatpush2.msra.mxu0 0.0
  %1185 = vmatprep.subr.mxu0 0.0
  %1186 = vmatpush2.msra.mxu0 0.0
  %1187 = vmatprep.subr.mxu0 0.0
  %1188 = vmatpush2.msra.mxu0 0.0
  %1189 = vmatprep.subr.mxu0 0.0
  %1190 = vmatpush2.msra.mxu0 0.0
  %1191 = vmatprep.subr.mxu0 0.0
  %1192 = vmatpush2.msra.mxu0 0.0
  %1193 = vmatprep.mubr.f32.mxu0 0.0
  %1194 = vmatmul.mubr.f32.gmra.mxu0 %v1110
  %v1195 = vpop.f32.mrf.mxu0
  %v1196 = vadd.f32 0.0, %v1195
  %v1197 = vpop.f32.mrf.mxu0
  %1198 = vmatprep.mubr.f32.mxu0 0.0
  %1199 = vmatmul.mubr.f32.gmra.mxu0 %v1113
  %v1200 = vpop.f32.mrf.mxu0
  %v1201 = vadd.f32 0.0, %v1200
  %v1202 = vpop.f32.mrf.mxu0
  %1203 = vmatprep.mubr.f32.mxu0 0.0
  %1204 = vmatmul.mubr.f32.gmra.mxu0 %v1116
  %v1205 = vpop.f32.mrf.mxu0
  %v1206 = vadd.f32 0.0, %v1205
  %v1207 = vpop.f32.mrf.mxu0
  %1208 = vmatprep.mubr.f32.mxu0 0.0
  %1209 = vmatmul.mubr.f32.gmra.mxu0 %v1119
  %v1210 = vpop.f32.mrf.mxu0
  %v1211 = vadd.f32 0.0, %v1210
  %v1212 = vpop.f32.mrf.mxu0
  %1213 = vmatprep.mubr.f32.mxu0 0.0
  %1214 = vmatmul.mubr.f32.gmra.mxu0 %v1122
  %v1215 = vpop.f32.mrf.mxu0
  %v1216 = vadd.f32 0.0, %v1215
  %v1217 = vpop.f32.mrf.mxu0
  %1218 = vmatprep.mubr.f32.mxu0 0.0
  %1219 = vmatmul.mubr.f32.gmra.mxu0 %v1125
  %v1220 = vpop.f32.mrf.mxu0
  %v1221 = vadd.f32 0.0, %v1220
  %v1222 = vpop.f32.mrf.mxu0
  %1223 = vdwg.mxu0
  %v1225 = vsel %vm206, %v1196, 0
  %v1228 = vsel %vm206, %v1201, 0
  %v1231 = vsel %vm206, %v1206, 0
  %v1234 = vsel %vm206, %v1211, 0
  %v1237 = vsel %vm206, %v1216, 0
  %v1240 = vsel %vm206, %v1221, 0
  %1242 = vmatprep.subr.mxu0 0.0
  %1243 = vmatpush1.msra.mxu0 0.0
  %1244 = vmatprep.subr.mxu0 0.0
  %1245 = vmatpush1.msra.mxu0 0.0
  %1246 = vmatprep.subr.mxu0 0.0
  %1247 = vmatpush1.msra.mxu0 0.0
  %1248 = vmatprep.subr.mxu0 0.0
  %1249 = vmatpush1.msra.mxu0 0.0
  %1250 = vmatprep.subr.mxu0 0.0
  %1251 = vmatpush1.msra.mxu0 0.0
  %1252 = vmatprep.subr.mxu0 0.0
  %1253 = vmatpush1.msra.mxu0 0.0
  %1254 = vmatprep.subr.mxu0 0.0
  %1255 = vmatpush1.msra.mxu0 0.0
  %1256 = vmatprep.subr.mxu0 0.0
  %1257 = vmatpush1.msra.mxu0 0.0
  %1258 = vmatprep.subr.mxu0 0.0
  %1259 = vmatpush1.msra.mxu0 0.0
  %1260 = vmatprep.subr.mxu0 0.0
  %1261 = vmatpush1.msra.mxu0 0.0
  %1262 = vmatprep.subr.mxu0 0.0
  %1263 = vmatpush1.msra.mxu0 0.0
  %1264 = vmatprep.subr.mxu0 0.0
  %1265 = vmatpush1.msra.mxu0 0.0
  %1266 = vmatprep.subr.mxu0 0.0
  %1267 = vmatpush1.msra.mxu0 %v185
  %1268 = vmatprep.subr.mxu0 0.0
  %1269 = vmatpush1.msra.mxu0 %v184
  %1270 = vmatprep.subr.mxu0 0.0
  %1271 = vmatpush1.msra.mxu0 %v183
  %1272 = vmatprep.subr.mxu0 0.0
  %1273 = vmatpush1.msra.mxu0 %v182
  %1274 = vmatprep.subr.mxu0 0.0
  %1275 = vmatpush2.msra.mxu0 0.0
  %1276 = vmatprep.subr.mxu0 0.0
  %1277 = vmatpush2.msra.mxu0 0.0
  %1278 = vmatprep.subr.mxu0 0.0
  %1279 = vmatpush2.msra.mxu0 0.0
  %1280 = vmatprep.subr.mxu0 0.0
  %1281 = vmatpush2.msra.mxu0 0.0
  %1282 = vmatprep.subr.mxu0 0.0
  %1283 = vmatpush2.msra.mxu0 0.0
  %1284 = vmatprep.subr.mxu0 0.0
  %1285 = vmatpush2.msra.mxu0 0.0
  %1286 = vmatprep.subr.mxu0 0.0
  %1287 = vmatpush2.msra.mxu0 0.0
  %1288 = vmatprep.subr.mxu0 0.0
  %1289 = vmatpush2.msra.mxu0 0.0
  %1290 = vmatprep.subr.mxu0 0.0
  %1291 = vmatpush2.msra.mxu0 0.0
  %1292 = vmatprep.subr.mxu0 0.0
  %1293 = vmatpush2.msra.mxu0 0.0
  %1294 = vmatprep.subr.mxu0 0.0
  %1295 = vmatpush2.msra.mxu0 0.0
  %1296 = vmatprep.subr.mxu0 0.0
  %1297 = vmatpush2.msra.mxu0 0.0
  %1298 = vmatprep.subr.mxu0 0.0
  %1299 = vmatpush2.msra.mxu0 0.0
  %1300 = vmatprep.subr.mxu0 0.0
  %1301 = vmatpush2.msra.mxu0 0.0
  %1302 = vmatprep.subr.mxu0 0.0
  %1303 = vmatpush2.msra.mxu0 0.0
  %1304 = vmatprep.subr.mxu0 0.0
  %1305 = vmatpush2.msra.mxu0 0.0
  %1306 = vmatprep.mubr.f32.mxu0 0.0
  %1307 = vmatmul.mubr.f32.gmra.mxu0 %v1225
  %v1308 = vpop.f32.mrf.mxu0
  %v1309 = vadd.f32 0.0, %v1308
  %v1310 = vpop.f32.mrf.mxu0
  %1311 = vmatprep.mubr.f32.mxu0 0.0
  %1312 = vmatmul.mubr.f32.gmra.mxu0 %v1228
  %v1313 = vpop.f32.mrf.mxu0
  %v1314 = vadd.f32 0.0, %v1313
  %v1315 = vpop.f32.mrf.mxu0
  %1316 = vmatprep.mubr.f32.mxu0 0.0
  %1317 = vmatmul.mubr.f32.gmra.mxu0 %v1231
  %v1318 = vpop.f32.mrf.mxu0
  %v1319 = vadd.f32 0.0, %v1318
  %v1320 = vpop.f32.mrf.mxu0
  %1321 = vmatprep.mubr.f32.mxu0 0.0
  %1322 = vmatmul.mubr.f32.gmra.mxu0 %v1234
  %v1323 = vpop.f32.mrf.mxu0
  %v1324 = vadd.f32 0.0, %v1323
  %v1325 = vpop.f32.mrf.mxu0
  %1326 = vmatprep.mubr.f32.mxu0 0.0
  %1327 = vmatmul.mubr.f32.gmra.mxu0 %v1237
  %v1328 = vpop.f32.mrf.mxu0
  %v1329 = vadd.f32 0.0, %v1328
  %v1330 = vpop.f32.mrf.mxu0
  %1331 = vmatprep.mubr.f32.mxu0 0.0
  %1332 = vmatmul.mubr.f32.gmra.mxu0 %v1240
  %v1333 = vpop.f32.mrf.mxu0
  %v1334 = vadd.f32 0.0, %v1333
  %v1335 = vpop.f32.mrf.mxu0
  %1336 = vdwg.mxu0
  %v1337 = vadd.f32 %v872, %v1309
  %v1338 = vadd.f32 %v873, %v1314
  %v1339 = vadd.f32 %v874, %v1319
  %v1340 = vadd.f32 %v875, %v1324
  %v1341 = vadd.f32 %v876, %v1329
  %v1342 = vadd.f32 %v877, %v1334
  %1343 = vrot.lane.b32.xlu0 %v431, 64
  %v1344 = vpop.permute.xlu0 %1343
  %1345 = vrot.lane.b32.xlu0 %v432, 64
  %v1346 = vpop.permute.xlu0 %1345
  %1347 = vrot.lane.b32.xlu0 %v433, 64
  %v1348 = vpop.permute.xlu0 %1347
  %1349 = vrot.lane.b32.xlu0 %v434, 64
  %v1350 = vpop.permute.xlu0 %1349
  %1351 = vrot.lane.b32.xlu0 %v435, 64
  %v1352 = vpop.permute.xlu0 %1351
  %1353 = vrot.lane.b32.xlu0 %v436, 64
  %v1354 = vpop.permute.xlu0 %1353
  %1355 = vrot.lane.b32.xlu0 %v437, 64
  %v1356 = vpop.permute.xlu0 %1355
  %1357 = vrot.lane.b32.xlu0 %v438, 64
  %v1358 = vpop.permute.xlu0 %1357
  %1359 = vrot.lane.b32.xlu0 %v439, 64
  %v1360 = vpop.permute.xlu0 %1359
  %1361 = vrot.lane.b32.xlu0 %v440, 64
  %v1362 = vpop.permute.xlu0 %1361
  %1363 = vrot.lane.b32.xlu0 %v441, 64
  %v1364 = vpop.permute.xlu0 %1363
  %1365 = vrot.lane.b32.xlu0 %v442, 64
  %v1366 = vpop.permute.xlu0 %1365
  %v1367 = vsel %vm206, %v1344, 0
  %v1369 = vsel %vm206, %v1346, 0
  %v1371 = vsel %vm206, %v1348, 0
  %v1373 = vsel %vm206, %v1350, 0
  %v1375 = vsel %vm206, %v1352, 0
  %v1377 = vsel %vm206, %v1354, 0
  %v1379 = vsel %vm206, %v1356, 0
  %v1381 = vsel %vm206, %v1358, 0
  %v1383 = vsel %vm206, %v1360, 0
  %v1385 = vsel %vm206, %v1362, 0
  %v1387 = vsel %vm206, %v1364, 0
  %v1389 = vsel %vm206, %v1366, 0
  %1391 = vmatprep.subr.mxu0 0.0
  %1392 = vmatpush1.xpose.msra.mxu0 0.0
  %1393 = vmatprep.subr.mxu0 0.0
  %1394 = vmatpush1.xpose.msra.mxu0 0.0
  %1395 = vmatprep.subr.mxu0 0.0
  %1396 = vmatpush1.xpose.msra.mxu0 0.0
  %1397 = vmatprep.subr.mxu0 0.0
  %1398 = vmatpush1.xpose.msra.mxu0 0.0
  %1399 = vmatprep.subr.mxu0 0.0
  %1400 = vmatpush1.xpose.msra.mxu0 0.0
  %1401 = vmatprep.subr.mxu0 0.0
  %1402 = vmatpush1.xpose.msra.mxu0 0.0
  %1403 = vmatprep.subr.mxu0 0.0
  %1404 = vmatpush1.xpose.msra.mxu0 0.0
  %1405 = vmatprep.subr.mxu0 0.0
  %1406 = vmatpush1.xpose.msra.mxu0 0.0
  %1407 = vmatprep.subr.mxu0 0.0
  %1408 = vmatpush1.xpose.msra.mxu0 0.0
  %1409 = vmatprep.subr.mxu0 0.0
  %1410 = vmatpush1.xpose.msra.mxu0 0.0
  %1411 = vmatprep.subr.mxu0 0.0
  %1412 = vmatpush1.xpose.msra.mxu0 %v1389
  %1413 = vmatprep.subr.mxu0 0.0
  %1414 = vmatpush1.xpose.msra.mxu0 %v1387
  %1415 = vmatprep.subr.mxu0 0.0
  %1416 = vmatpush1.xpose.msra.mxu0 %v1385
  %1417 = vmatprep.subr.mxu0 0.0
  %1418 = vmatpush1.xpose.msra.mxu0 %v1383
  %1419 = vmatprep.subr.mxu0 0.0
  %1420 = vmatpush1.xpose.msra.mxu0 %v1381
  %1421 = vmatprep.subr.mxu0 0.0
  %1422 = vmatpush1.xpose.msra.mxu0 %v1379
  %1423 = vmatprep.subr.mxu0 0.0
  %1424 = vmatpush2.xpose.msra.mxu0 0.0
  %1425 = vmatprep.subr.mxu0 0.0
  %1426 = vmatpush2.xpose.msra.mxu0 0.0
  %1427 = vmatprep.subr.mxu0 0.0
  %1428 = vmatpush2.xpose.msra.mxu0 0.0
  %1429 = vmatprep.subr.mxu0 0.0
  %1430 = vmatpush2.xpose.msra.mxu0 0.0
  %1431 = vmatprep.subr.mxu0 0.0
  %1432 = vmatpush2.xpose.msra.mxu0 0.0
  %1433 = vmatprep.subr.mxu0 0.0
  %1434 = vmatpush2.xpose.msra.mxu0 0.0
  %1435 = vmatprep.subr.mxu0 0.0
  %1436 = vmatpush2.xpose.msra.mxu0 0.0
  %1437 = vmatprep.subr.mxu0 0.0
  %1438 = vmatpush2.xpose.msra.mxu0 0.0
  %1439 = vmatprep.subr.mxu0 0.0
  %1440 = vmatpush2.xpose.msra.mxu0 0.0
  %1441 = vmatprep.subr.mxu0 0.0
  %1442 = vmatpush2.xpose.msra.mxu0 0.0
  %1443 = vmatprep.subr.mxu0 0.0
  %1444 = vmatpush2.xpose.msra.mxu0 0.0
  %1445 = vmatprep.subr.mxu0 0.0
  %1446 = vmatpush2.xpose.msra.mxu0 0.0
  %1447 = vmatprep.subr.mxu0 0.0
  %1448 = vmatpush2.xpose.msra.mxu0 0.0
  %1449 = vmatprep.subr.mxu0 0.0
  %1450 = vmatpush2.xpose.msra.mxu0 0.0
  %1451 = vmatprep.subr.mxu0 0.0
  %1452 = vmatpush2.xpose.msra.mxu0 0.0
  %1453 = vmatprep.subr.mxu0 0.0
  %1454 = vmatpush2.xpose.msra.mxu0 0.0
  %1455 = vmatprep.mubr.f32.mxu0 0.0
  %1456 = vmatmul.mubr.f32.gmra.mxu0 %v1367
  %v1457 = vpop.f32.mrf.mxu0
  %v1458 = vadd.f32 %v38, %v1457
  %v1459 = vpop.f32.mrf.mxu0
  %1460 = vmatprep.mubr.f32.mxu0 0.0
  %1461 = vmatmul.mubr.f32.gmra.mxu0 %v1369
  %v1462 = vpop.f32.mrf.mxu0
  %v1463 = vadd.f32 %v39, %v1462
  %v1464 = vpop.f32.mrf.mxu0
  %1465 = vmatprep.mubr.f32.mxu0 0.0
  %1466 = vmatmul.mubr.f32.gmra.mxu0 %v1371
  %v1467 = vpop.f32.mrf.mxu0
  %v1468 = vadd.f32 %v40, %v1467
  %v1469 = vpop.f32.mrf.mxu0
  %1470 = vmatprep.mubr.f32.mxu0 0.0
  %1471 = vmatmul.mubr.f32.gmra.mxu0 %v1373
  %v1472 = vpop.f32.mrf.mxu0
  %v1473 = vadd.f32 %v41, %v1472
  %v1474 = vpop.f32.mrf.mxu0
  %1475 = vmatprep.mubr.f32.mxu0 0.0
  %1476 = vmatmul.mubr.f32.gmra.mxu0 %v1375
  %v1477 = vpop.f32.mrf.mxu0
  %v1478 = vadd.f32 %v42, %v1477
  %v1479 = vpop.f32.mrf.mxu0
  %1480 = vmatprep.mubr.f32.mxu0 0.0
  %1481 = vmatmul.mubr.f32.gmra.mxu0 %v1377
  %v1482 = vpop.f32.mrf.mxu0
  %v1483 = vadd.f32 %v43, %v1482
  %v1484 = vpop.f32.mrf.mxu0
  %1485 = vdwg.mxu0
  %v1486 = vsel %vm574, %v1458, -inf
  %1487 = vmax.xlane.f32.xlu0 %v1486
  %v1488 = vpop.xlane.xlu0 %1487
  %v1489 = vsel %vm574, %v1463, -inf
  %1490 = vmax.xlane.f32.xlu0 %v1489
  %v1491 = vpop.xlane.xlu0 %1490
  %v1492 = vsel %vm574, %v1468, -inf
  %1493 = vmax.xlane.f32.xlu0 %v1492
  %v1494 = vpop.xlane.xlu0 %1493
  %v1495 = vsel %vm574, %v1473, -inf
  %1496 = vmax.xlane.f32.xlu0 %v1495
  %v1497 = vpop.xlane.xlu0 %1496
  %v1498 = vsel %vm574, %v1478, -inf
  %1499 = vmax.xlane.f32.xlu0 %v1498
  %v1500 = vpop.xlane.xlu0 %1499
  %v1501 = vsel %vm590, %v1483, -inf
  %1502 = vmax.xlane.f32.xlu0 %v1501
  %v1503 = vpop.xlane.xlu0 %1502
  %v1504 = vsub.f32 %v1458, %v1488
  %v1505 = vsub.f32 %v1463, %v1491
  %v1506 = vsub.f32 %v1468, %v1494
  %v1507 = vsub.f32 %v1473, %v1497
  %v1508 = vsub.f32 %v1478, %v1500
  %v1509 = vsub.f32 %v1483, %v1503
  %v1510 = vmul.f32 %v1504, 1.442695
  %v1511 = vpow.pop %v1510
  %v1512 = vmul.f32 %v1505, 1.442695
  %v1513 = vpow.pop %v1512
  %v1514 = vmul.f32 %v1506, 1.442695
  %v1515 = vpow.pop %v1514
  %v1516 = vmul.f32 %v1507, 1.442695
  %v1517 = vpow.pop %v1516
  %v1518 = vmul.f32 %v1508, 1.442695
  %v1519 = vpow.pop %v1518
  %v1520 = vmul.f32 %v1509, 1.442695
  %v1521 = vpow.pop %v1520
  %v1522 = vsel %vm574, %v1511, 0.0
  %1523 = vadd.xlane.f32.xlu0 %v1522
  %v1524 = vpop.xlane.xlu0 %1523
  %v1525 = vsel %vm574, %v1513, 0.0
  %1526 = vadd.xlane.f32.xlu0 %v1525
  %v1527 = vpop.xlane.xlu0 %1526
  %v1528 = vsel %vm574, %v1515, 0.0
  %1529 = vadd.xlane.f32.xlu0 %v1528
  %v1530 = vpop.xlane.xlu0 %1529
  %v1531 = vsel %vm574, %v1517, 0.0
  %1532 = vadd.xlane.f32.xlu0 %v1531
  %v1533 = vpop.xlane.xlu0 %1532
  %v1534 = vsel %vm574, %v1519, 0.0
  %1535 = vadd.xlane.f32.xlu0 %v1534
  %v1536 = vpop.xlane.xlu0 %1535
  %v1537 = vsel %vm590, %v1521, 0.0
  %1538 = vadd.xlane.f32.xlu0 %v1537
  %v1539 = vpop.xlane.xlu0 %1538
  %v1540 = vrcp.pop %v1524
  %v1541 = vrcp.pop %v1527
  %v1542 = vrcp.pop %v1530
  %v1543 = vrcp.pop %v1533
  %v1544 = vrcp.pop %v1536
  %v1545 = vrcp.pop %v1539
  %v1546 = vmul.f32 %v1511, %v1540
  %v1547 = vmul.f32 %v1513, %v1541
  %v1548 = vmul.f32 %v1515, %v1542
  %v1549 = vmul.f32 %v1517, %v1543
  %v1550 = vmul.f32 %v1519, %v1544
  %v1551 = vmul.f32 %v1521, %v1545
  %1552 = vrot.lane.b32.xlu0 %v393, 64
  %v1553 = vpop.permute.xlu0 %1552
  %1554 = vrot.lane.b32.xlu0 %v398, 64
  %v1555 = vpop.permute.xlu0 %1554
  %1556 = vrot.lane.b32.xlu0 %v403, 64
  %v1557 = vpop.permute.xlu0 %1556
  %1558 = vrot.lane.b32.xlu0 %v408, 64
  %v1559 = vpop.permute.xlu0 %1558
  %1560 = vrot.lane.b32.xlu0 %v413, 64
  %v1561 = vpop.permute.xlu0 %1560
  %1562 = vrot.lane.b32.xlu0 %v418, 64
  %v1563 = vpop.permute.xlu0 %1562
  %v1570 = vsel %vm574, %v1546, 0
  %v1573 = vsel %vm574, %v1547, 0
  %v1576 = vsel %vm574, %v1548, 0
  %v1579 = vsel %vm574, %v1549, 0
  %v1582 = vsel %vm574, %v1550, 0
  %v1585 = vsel %vm574, %v1551, 0
  %v1587 = vsel %vm660, %v1563, 0
  %1589 = vmatprep.subr.mxu0 0.0
  %1590 = vmatpush1.msra.mxu0 0.0
  %1591 = vmatprep.subr.mxu0 0.0
  %1592 = vmatpush1.msra.mxu0 0.0
  %1593 = vmatprep.subr.mxu0 0.0
  %1594 = vmatpush1.msra.mxu0 0.0
  %1595 = vmatprep.subr.mxu0 0.0
  %1596 = vmatpush1.msra.mxu0 0.0
  %1597 = vmatprep.subr.mxu0 0.0
  %1598 = vmatpush1.msra.mxu0 0.0
  %1599 = vmatprep.subr.mxu0 0.0
  %1600 = vmatpush1.msra.mxu0 0.0
  %1601 = vmatprep.subr.mxu0 0.0
  %1602 = vmatpush1.msra.mxu0 0.0
  %1603 = vmatprep.subr.mxu0 0.0
  %1604 = vmatpush1.msra.mxu0 0.0
  %1605 = vmatprep.subr.mxu0 0.0
  %1606 = vmatpush1.msra.mxu0 0.0
  %1607 = vmatprep.subr.mxu0 0.0
  %1608 = vmatpush1.msra.mxu0 0.0
  %1609 = vmatprep.subr.mxu0 0.0
  %1610 = vmatpush1.msra.mxu0 %v1587
  %1611 = vmatprep.subr.mxu0 0.0
  %1612 = vmatpush1.msra.mxu0 %v1561
  %1613 = vmatprep.subr.mxu0 0.0
  %1614 = vmatpush1.msra.mxu0 %v1559
  %1615 = vmatprep.subr.mxu0 0.0
  %1616 = vmatpush1.msra.mxu0 %v1557
  %1617 = vmatprep.subr.mxu0 0.0
  %1618 = vmatpush1.msra.mxu0 %v1555
  %1619 = vmatprep.subr.mxu0 0.0
  %1620 = vmatpush1.msra.mxu0 %v1553
  %1621 = vmatprep.subr.mxu0 0.0
  %1622 = vmatpush2.msra.mxu0 0.0
  %1623 = vmatprep.subr.mxu0 0.0
  %1624 = vmatpush2.msra.mxu0 0.0
  %1625 = vmatprep.subr.mxu0 0.0
  %1626 = vmatpush2.msra.mxu0 0.0
  %1627 = vmatprep.subr.mxu0 0.0
  %1628 = vmatpush2.msra.mxu0 0.0
  %1629 = vmatprep.subr.mxu0 0.0
  %1630 = vmatpush2.msra.mxu0 0.0
  %1631 = vmatprep.subr.mxu0 0.0
  %1632 = vmatpush2.msra.mxu0 0.0
  %1633 = vmatprep.subr.mxu0 0.0
  %1634 = vmatpush2.msra.mxu0 0.0
  %1635 = vmatprep.subr.mxu0 0.0
  %1636 = vmatpush2.msra.mxu0 0.0
  %1637 = vmatprep.subr.mxu0 0.0
  %1638 = vmatpush2.msra.mxu0 0.0
  %1639 = vmatprep.subr.mxu0 0.0
  %1640 = vmatpush2.msra.mxu0 0.0
  %1641 = vmatprep.subr.mxu0 0.0
  %1642 = vmatpush2.msra.mxu0 0.0
  %1643 = vmatprep.subr.mxu0 0.0
  %1644 = vmatpush2.msra.mxu0 0.0
  %1645 = vmatprep.subr.mxu0 0.0
  %1646 = vmatpush2.msra.mxu0 0.0
  %1647 = vmatprep.subr.mxu0 0.0
  %1648 = vmatpush2.msra.mxu0 0.0
  %1649 = vmatprep.subr.mxu0 0.0
  %1650 = vmatpush2.msra.mxu0 0.0
  %1651 = vmatprep.subr.mxu0 0.0
  %1652 = vmatpush2.msra.mxu0 0.0
  %1653 = vmatprep.mubr.f32.mxu0 0.0
  %1654 = vmatmul.mubr.f32.gmra.mxu0 %v1570
  %v1655 = vpop.f32.mrf.mxu0
  %v1656 = vadd.f32 0.0, %v1655
  %v1657 = vpop.f32.mrf.mxu0
  %1658 = vmatprep.mubr.f32.mxu0 0.0
  %1659 = vmatmul.mubr.f32.gmra.mxu0 %v1573
  %v1660 = vpop.f32.mrf.mxu0
  %v1661 = vadd.f32 0.0, %v1660
  %v1662 = vpop.f32.mrf.mxu0
  %1663 = vmatprep.mubr.f32.mxu0 0.0
  %1664 = vmatmul.mubr.f32.gmra.mxu0 %v1576
  %v1665 = vpop.f32.mrf.mxu0
  %v1666 = vadd.f32 0.0, %v1665
  %v1667 = vpop.f32.mrf.mxu0
  %1668 = vmatprep.mubr.f32.mxu0 0.0
  %1669 = vmatmul.mubr.f32.gmra.mxu0 %v1579
  %v1670 = vpop.f32.mrf.mxu0
  %v1671 = vadd.f32 0.0, %v1670
  %v1672 = vpop.f32.mrf.mxu0
  %1673 = vmatprep.mubr.f32.mxu0 0.0
  %1674 = vmatmul.mubr.f32.gmra.mxu0 %v1582
  %v1675 = vpop.f32.mrf.mxu0
  %v1676 = vadd.f32 0.0, %v1675
  %v1677 = vpop.f32.mrf.mxu0
  %1678 = vmatprep.mubr.f32.mxu0 0.0
  %1679 = vmatmul.mubr.f32.gmra.mxu0 %v1585
  %v1680 = vpop.f32.mrf.mxu0
  %v1681 = vadd.f32 0.0, %v1680
  %v1682 = vpop.f32.mrf.mxu0
  %1683 = vdwg.mxu0
  %v1685 = vsel %vm206, %v1656, 0
  %v1688 = vsel %vm206, %v1661, 0
  %v1691 = vsel %vm206, %v1666, 0
  %v1694 = vsel %vm206, %v1671, 0
  %v1697 = vsel %vm206, %v1676, 0
  %v1700 = vsel %vm206, %v1681, 0
  %1702 = vmatprep.subr.mxu0 0.0
  %1703 = vmatpush1.msra.mxu0 0.0
  %1704 = vmatprep.subr.mxu0 0.0
  %1705 = vmatpush1.msra.mxu0 0.0
  %1706 = vmatprep.subr.mxu0 0.0
  %1707 = vmatpush1.msra.mxu0 0.0
  %1708 = vmatprep.subr.mxu0 0.0
  %1709 = vmatpush1.msra.mxu0 0.0
  %1710 = vmatprep.subr.mxu0 0.0
  %1711 = vmatpush1.msra.mxu0 0.0
  %1712 = vmatprep.subr.mxu0 0.0
  %1713 = vmatpush1.msra.mxu0 0.0
  %1714 = vmatprep.subr.mxu0 0.0
  %1715 = vmatpush1.msra.mxu0 0.0
  %1716 = vmatprep.subr.mxu0 0.0
  %1717 = vmatpush1.msra.mxu0 0.0
  %1718 = vmatprep.subr.mxu0 0.0
  %1719 = vmatpush1.msra.mxu0 0.0
  %1720 = vmatprep.subr.mxu0 0.0
  %1721 = vmatpush1.msra.mxu0 0.0
  %1722 = vmatprep.subr.mxu0 0.0
  %1723 = vmatpush1.msra.mxu0 0.0
  %1724 = vmatprep.subr.mxu0 0.0
  %1725 = vmatpush1.msra.mxu0 0.0
  %1726 = vmatprep.subr.mxu0 0.0
  %1727 = vmatpush1.msra.mxu0 %v189
  %1728 = vmatprep.subr.mxu0 0.0
  %1729 = vmatpush1.msra.mxu0 %v188
  %1730 = vmatprep.subr.mxu0 0.0
  %1731 = vmatpush1.msra.mxu0 %v187
  %1732 = vmatprep.subr.mxu0 0.0
  %1733 = vmatpush1.msra.mxu0 %v186
  %1734 = vmatprep.subr.mxu0 0.0
  %1735 = vmatpush2.msra.mxu0 0.0
  %1736 = vmatprep.subr.mxu0 0.0
  %1737 = vmatpush2.msra.mxu0 0.0
  %1738 = vmatprep.subr.mxu0 0.0
  %1739 = vmatpush2.msra.mxu0 0.0
  %1740 = vmatprep.subr.mxu0 0.0
  %1741 = vmatpush2.msra.mxu0 0.0
  %1742 = vmatprep.subr.mxu0 0.0
  %1743 = vmatpush2.msra.mxu0 0.0
  %1744 = vmatprep.subr.mxu0 0.0
  %1745 = vmatpush2.msra.mxu0 0.0
  %1746 = vmatprep.subr.mxu0 0.0
  %1747 = vmatpush2.msra.mxu0 0.0
  %1748 = vmatprep.subr.mxu0 0.0
  %1749 = vmatpush2.msra.mxu0 0.0
  %1750 = vmatprep.subr.mxu0 0.0
  %1751 = vmatpush2.msra.mxu0 0.0
  %1752 = vmatprep.subr.mxu0 0.0
  %1753 = vmatpush2.msra.mxu0 0.0
  %1754 = vmatprep.subr.mxu0 0.0
  %1755 = vmatpush2.msra.mxu0 0.0
  %1756 = vmatprep.subr.mxu0 0.0
  %1757 = vmatpush2.msra.mxu0 0.0
  %1758 = vmatprep.subr.mxu0 0.0
  %1759 = vmatpush2.msra.mxu0 0.0
  %1760 = vmatprep.subr.mxu0 0.0
  %1761 = vmatpush2.msra.mxu0 0.0
  %1762 = vmatprep.subr.mxu0 0.0
  %1763 = vmatpush2.msra.mxu0 0.0
  %1764 = vmatprep.subr.mxu0 0.0
  %1765 = vmatpush2.msra.mxu0 0.0
  %1766 = vmatprep.mubr.f32.mxu0 0.0
  %1767 = vmatmul.mubr.f32.gmra.mxu0 %v1685
  %v1768 = vpop.f32.mrf.mxu0
  %v1769 = vadd.f32 0.0, %v1768
  %v1770 = vpop.f32.mrf.mxu0
  %1771 = vmatprep.mubr.f32.mxu0 0.0
  %1772 = vmatmul.mubr.f32.gmra.mxu0 %v1688
  %v1773 = vpop.f32.mrf.mxu0
  %v1774 = vadd.f32 0.0, %v1773
  %v1775 = vpop.f32.mrf.mxu0
  %1776 = vmatprep.mubr.f32.mxu0 0.0
  %1777 = vmatmul.mubr.f32.gmra.mxu0 %v1691
  %v1778 = vpop.f32.mrf.mxu0
  %v1779 = vadd.f32 0.0, %v1778
  %v1780 = vpop.f32.mrf.mxu0
  %1781 = vmatprep.mubr.f32.mxu0 0.0
  %1782 = vmatmul.mubr.f32.gmra.mxu0 %v1694
  %v1783 = vpop.f32.mrf.mxu0
  %v1784 = vadd.f32 0.0, %v1783
  %v1785 = vpop.f32.mrf.mxu0
  %1786 = vmatprep.mubr.f32.mxu0 0.0
  %1787 = vmatmul.mubr.f32.gmra.mxu0 %v1697
  %v1788 = vpop.f32.mrf.mxu0
  %v1789 = vadd.f32 0.0, %v1788
  %v1790 = vpop.f32.mrf.mxu0
  %1791 = vmatprep.mubr.f32.mxu0 0.0
  %1792 = vmatmul.mubr.f32.gmra.mxu0 %v1700
  %v1793 = vpop.f32.mrf.mxu0
  %v1794 = vadd.f32 0.0, %v1793
  %v1795 = vpop.f32.mrf.mxu0
  %1796 = vdwg.mxu0
  %v1797 = vadd.f32 %v1337, %v1769
  %v1798 = vadd.f32 %v1338, %v1774
  %v1799 = vadd.f32 %v1339, %v1779
  %v1800 = vadd.f32 %v1340, %v1784
  %v1801 = vadd.f32 %v1341, %v1789
  %v1802 = vadd.f32 %v1342, %v1794
  %1803 = vrot.lane.b32.xlu0 %v431, 32
  %v1804 = vpop.permute.xlu0 %1803
  %1805 = vrot.lane.b32.xlu0 %v432, 32
  %v1806 = vpop.permute.xlu0 %1805
  %1807 = vrot.lane.b32.xlu0 %v433, 32
  %v1808 = vpop.permute.xlu0 %1807
  %1809 = vrot.lane.b32.xlu0 %v434, 32
  %v1810 = vpop.permute.xlu0 %1809
  %1811 = vrot.lane.b32.xlu0 %v435, 32
  %v1812 = vpop.permute.xlu0 %1811
  %1813 = vrot.lane.b32.xlu0 %v436, 32
  %v1814 = vpop.permute.xlu0 %1813
  %1815 = vrot.lane.b32.xlu0 %v437, 32
  %v1816 = vpop.permute.xlu0 %1815
  %1817 = vrot.lane.b32.xlu0 %v438, 32
  %v1818 = vpop.permute.xlu0 %1817
  %1819 = vrot.lane.b32.xlu0 %v439, 32
  %v1820 = vpop.permute.xlu0 %1819
  %1821 = vrot.lane.b32.xlu0 %v440, 32
  %v1822 = vpop.permute.xlu0 %1821
  %1823 = vrot.lane.b32.xlu0 %v441, 32
  %v1824 = vpop.permute.xlu0 %1823
  %1825 = vrot.lane.b32.xlu0 %v442, 32
  %v1826 = vpop.permute.xlu0 %1825
  %v1827 = vsel %vm206, %v1804, 0
  %v1829 = vsel %vm206, %v1806, 0
  %v1831 = vsel %vm206, %v1808, 0
  %v1833 = vsel %vm206, %v1810, 0
  %v1835 = vsel %vm206, %v1812, 0
  %v1837 = vsel %vm206, %v1814, 0
  %v1839 = vsel %vm206, %v1816, 0
  %v1841 = vsel %vm206, %v1818, 0
  %v1843 = vsel %vm206, %v1820, 0
  %v1845 = vsel %vm206, %v1822, 0
  %v1847 = vsel %vm206, %v1824, 0
  %v1849 = vsel %vm206, %v1826, 0
  %1851 = vmatprep.subr.mxu0 0.0
  %1852 = vmatpush1.xpose.msra.mxu0 0.0
  %1853 = vmatprep.subr.mxu0 0.0
  %1854 = vmatpush1.xpose.msra.mxu0 0.0
  %1855 = vmatprep.subr.mxu0 0.0
  %1856 = vmatpush1.xpose.msra.mxu0 0.0
  %1857 = vmatprep.subr.mxu0 0.0
  %1858 = vmatpush1.xpose.msra.mxu0 0.0
  %1859 = vmatprep.subr.mxu0 0.0
  %1860 = vmatpush1.xpose.msra.mxu0 0.0
  %1861 = vmatprep.subr.mxu0 0.0
  %1862 = vmatpush1.xpose.msra.mxu0 0.0
  %1863 = vmatprep.subr.mxu0 0.0
  %1864 = vmatpush1.xpose.msra.mxu0 0.0
  %1865 = vmatprep.subr.mxu0 0.0
  %1866 = vmatpush1.xpose.msra.mxu0 0.0
  %1867 = vmatprep.subr.mxu0 0.0
  %1868 = vmatpush1.xpose.msra.mxu0 0.0
  %1869 = vmatprep.subr.mxu0 0.0
  %1870 = vmatpush1.xpose.msra.mxu0 0.0
  %1871 = vmatprep.subr.mxu0 0.0
  %1872 = vmatpush1.xpose.msra.mxu0 %v1849
  %1873 = vmatprep.subr.mxu0 0.0
  %1874 = vmatpush1.xpose.msra.mxu0 %v1847
  %1875 = vmatprep.subr.mxu0 0.0
  %1876 = vmatpush1.xpose.msra.mxu0 %v1845
  %1877 = vmatprep.subr.mxu0 0.0
  %1878 = vmatpush1.xpose.msra.mxu0 %v1843
  %1879 = vmatprep.subr.mxu0 0.0
  %1880 = vmatpush1.xpose.msra.mxu0 %v1841
  %1881 = vmatprep.subr.mxu0 0.0
  %1882 = vmatpush1.xpose.msra.mxu0 %v1839
  %1883 = vmatprep.subr.mxu0 0.0
  %1884 = vmatpush2.xpose.msra.mxu0 0.0
  %1885 = vmatprep.subr.mxu0 0.0
  %1886 = vmatpush2.xpose.msra.mxu0 0.0
  %1887 = vmatprep.subr.mxu0 0.0
  %1888 = vmatpush2.xpose.msra.mxu0 0.0
  %1889 = vmatprep.subr.mxu0 0.0
  %1890 = vmatpush2.xpose.msra.mxu0 0.0
  %1891 = vmatprep.subr.mxu0 0.0
  %1892 = vmatpush2.xpose.msra.mxu0 0.0
  %1893 = vmatprep.subr.mxu0 0.0
  %1894 = vmatpush2.xpose.msra.mxu0 0.0
  %1895 = vmatprep.subr.mxu0 0.0
  %1896 = vmatpush2.xpose.msra.mxu0 0.0
  %1897 = vmatprep.subr.mxu0 0.0
  %1898 = vmatpush2.xpose.msra.mxu0 0.0
  %1899 = vmatprep.subr.mxu0 0.0
  %1900 = vmatpush2.xpose.msra.mxu0 0.0
  %1901 = vmatprep.subr.mxu0 0.0
  %1902 = vmatpush2.xpose.msra.mxu0 0.0
  %1903 = vmatprep.subr.mxu0 0.0
  %1904 = vmatpush2.xpose.msra.mxu0 0.0
  %1905 = vmatprep.subr.mxu0 0.0
  %1906 = vmatpush2.xpose.msra.mxu0 0.0
  %1907 = vmatprep.subr.mxu0 0.0
  %1908 = vmatpush2.xpose.msra.mxu0 0.0
  %1909 = vmatprep.subr.mxu0 0.0
  %1910 = vmatpush2.xpose.msra.mxu0 0.0
  %1911 = vmatprep.subr.mxu0 0.0
  %1912 = vmatpush2.xpose.msra.mxu0 0.0
  %1913 = vmatprep.subr.mxu0 0.0
  %1914 = vmatpush2.xpose.msra.mxu0 0.0
  %1915 = vmatprep.mubr.f32.mxu0 0.0
  %1916 = vmatmul.mubr.f32.gmra.mxu0 %v1827
  %v1917 = vpop.f32.mrf.mxu0
  %v1918 = vadd.f32 %v38, %v1917
  %v1919 = vpop.f32.mrf.mxu0
  %1920 = vmatprep.mubr.f32.mxu0 0.0
  %1921 = vmatmul.mubr.f32.gmra.mxu0 %v1829
  %v1922 = vpop.f32.mrf.mxu0
  %v1923 = vadd.f32 %v39, %v1922
  %v1924 = vpop.f32.mrf.mxu0
  %1925 = vmatprep.mubr.f32.mxu0 0.0
  %1926 = vmatmul.mubr.f32.gmra.mxu0 %v1831
  %v1927 = vpop.f32.mrf.mxu0
  %v1928 = vadd.f32 %v40, %v1927
  %v1929 = vpop.f32.mrf.mxu0
  %1930 = vmatprep.mubr.f32.mxu0 0.0
  %1931 = vmatmul.mubr.f32.gmra.mxu0 %v1833
  %v1932 = vpop.f32.mrf.mxu0
  %v1933 = vadd.f32 %v41, %v1932
  %v1934 = vpop.f32.mrf.mxu0
  %1935 = vmatprep.mubr.f32.mxu0 0.0
  %1936 = vmatmul.mubr.f32.gmra.mxu0 %v1835
  %v1937 = vpop.f32.mrf.mxu0
  %v1938 = vadd.f32 %v42, %v1937
  %v1939 = vpop.f32.mrf.mxu0
  %1940 = vmatprep.mubr.f32.mxu0 0.0
  %1941 = vmatmul.mubr.f32.gmra.mxu0 %v1837
  %v1942 = vpop.f32.mrf.mxu0
  %v1943 = vadd.f32 %v43, %v1942
  %v1944 = vpop.f32.mrf.mxu0
  %1945 = vdwg.mxu0
  %v1946 = vsel %vm574, %v1918, -inf
  %1947 = vmax.xlane.f32.xlu0 %v1946
  %v1948 = vpop.xlane.xlu0 %1947
  %v1949 = vsel %vm574, %v1923, -inf
  %1950 = vmax.xlane.f32.xlu0 %v1949
  %v1951 = vpop.xlane.xlu0 %1950
  %v1952 = vsel %vm574, %v1928, -inf
  %1953 = vmax.xlane.f32.xlu0 %v1952
  %v1954 = vpop.xlane.xlu0 %1953
  %v1955 = vsel %vm574, %v1933, -inf
  %1956 = vmax.xlane.f32.xlu0 %v1955
  %v1957 = vpop.xlane.xlu0 %1956
  %v1958 = vsel %vm574, %v1938, -inf
  %1959 = vmax.xlane.f32.xlu0 %v1958
  %v1960 = vpop.xlane.xlu0 %1959
  %v1961 = vsel %vm590, %v1943, -inf
  %1962 = vmax.xlane.f32.xlu0 %v1961
  %v1963 = vpop.xlane.xlu0 %1962
  %v1964 = vsub.f32 %v1918, %v1948
  %v1965 = vsub.f32 %v1923, %v1951
  %v1966 = vsub.f32 %v1928, %v1954
  %v1967 = vsub.f32 %v1933, %v1957
  %v1968 = vsub.f32 %v1938, %v1960
  %v1969 = vsub.f32 %v1943, %v1963
  %v1970 = vmul.f32 %v1964, 1.442695
  %v1971 = vpow.pop %v1970
  %v1972 = vmul.f32 %v1965, 1.442695
  %v1973 = vpow.pop %v1972
  %v1974 = vmul.f32 %v1966, 1.442695
  %v1975 = vpow.pop %v1974
  %v1976 = vmul.f32 %v1967, 1.442695
  %v1977 = vpow.pop %v1976
  %v1978 = vmul.f32 %v1968, 1.442695
  %v1979 = vpow.pop %v1978
  %v1980 = vmul.f32 %v1969, 1.442695
  %v1981 = vpow.pop %v1980
  %v1982 = vsel %vm574, %v1971, 0.0
  %1983 = vadd.xlane.f32.xlu0 %v1982
  %v1984 = vpop.xlane.xlu0 %1983
  %v1985 = vsel %vm574, %v1973, 0.0
  %1986 = vadd.xlane.f32.xlu0 %v1985
  %v1987 = vpop.xlane.xlu0 %1986
  %v1988 = vsel %vm574, %v1975, 0.0
  %1989 = vadd.xlane.f32.xlu0 %v1988
  %v1990 = vpop.xlane.xlu0 %1989
  %v1991 = vsel %vm574, %v1977, 0.0
  %1992 = vadd.xlane.f32.xlu0 %v1991
  %v1993 = vpop.xlane.xlu0 %1992
  %v1994 = vsel %vm574, %v1979, 0.0
  %1995 = vadd.xlane.f32.xlu0 %v1994
  %v1996 = vpop.xlane.xlu0 %1995
  %v1997 = vsel %vm590, %v1981, 0.0
  %1998 = vadd.xlane.f32.xlu0 %v1997
  %v1999 = vpop.xlane.xlu0 %1998
  %v2000 = vrcp.pop %v1984
  %v2001 = vrcp.pop %v1987
  %v2002 = vrcp.pop %v1990
  %v2003 = vrcp.pop %v1993
  %v2004 = vrcp.pop %v1996
  %v2005 = vrcp.pop %v1999
  %v2006 = vmul.f32 %v1971, %v2000
  %v2007 = vmul.f32 %v1973, %v2001
  %v2008 = vmul.f32 %v1975, %v2002
  %v2009 = vmul.f32 %v1977, %v2003
  %v2010 = vmul.f32 %v1979, %v2004
  %v2011 = vmul.f32 %v1981, %v2005
  %2012 = vrot.lane.b32.xlu0 %v393, 32
  %v2013 = vpop.permute.xlu0 %2012
  %2014 = vrot.lane.b32.xlu0 %v398, 32
  %v2015 = vpop.permute.xlu0 %2014
  %2016 = vrot.lane.b32.xlu0 %v403, 32
  %v2017 = vpop.permute.xlu0 %2016
  %2018 = vrot.lane.b32.xlu0 %v408, 32
  %v2019 = vpop.permute.xlu0 %2018
  %2020 = vrot.lane.b32.xlu0 %v413, 32
  %v2021 = vpop.permute.xlu0 %2020
  %2022 = vrot.lane.b32.xlu0 %v418, 32
  %v2023 = vpop.permute.xlu0 %2022
  %v2030 = vsel %vm574, %v2006, 0
  %v2033 = vsel %vm574, %v2007, 0
  %v2036 = vsel %vm574, %v2008, 0
  %v2039 = vsel %vm574, %v2009, 0
  %v2042 = vsel %vm574, %v2010, 0
  %v2045 = vsel %vm574, %v2011, 0
  %v2047 = vsel %vm660, %v2023, 0
  %2049 = vmatprep.subr.mxu0 0.0
  %2050 = vmatpush1.msra.mxu0 0.0
  %2051 = vmatprep.subr.mxu0 0.0
  %2052 = vmatpush1.msra.mxu0 0.0
  %2053 = vmatprep.subr.mxu0 0.0
  %2054 = vmatpush1.msra.mxu0 0.0
  %2055 = vmatprep.subr.mxu0 0.0
  %2056 = vmatpush1.msra.mxu0 0.0
  %2057 = vmatprep.subr.mxu0 0.0
  %2058 = vmatpush1.msra.mxu0 0.0
  %2059 = vmatprep.subr.mxu0 0.0
  %2060 = vmatpush1.msra.mxu0 0.0
  %2061 = vmatprep.subr.mxu0 0.0
  %2062 = vmatpush1.msra.mxu0 0.0
  %2063 = vmatprep.subr.mxu0 0.0
  %2064 = vmatpush1.msra.mxu0 0.0
  %2065 = vmatprep.subr.mxu0 0.0
  %2066 = vmatpush1.msra.mxu0 0.0
  %2067 = vmatprep.subr.mxu0 0.0
  %2068 = vmatpush1.msra.mxu0 0.0
  %2069 = vmatprep.subr.mxu0 0.0
  %2070 = vmatpush1.msra.mxu0 %v2047
  %2071 = vmatprep.subr.mxu0 0.0
  %2072 = vmatpush1.msra.mxu0 %v2021
  %2073 = vmatprep.subr.mxu0 0.0
  %2074 = vmatpush1.msra.mxu0 %v2019
  %2075 = vmatprep.subr.mxu0 0.0
  %2076 = vmatpush1.msra.mxu0 %v2017
  %2077 = vmatprep.subr.mxu0 0.0
  %2078 = vmatpush1.msra.mxu0 %v2015
  %2079 = vmatprep.subr.mxu0 0.0
  %2080 = vmatpush1.msra.mxu0 %v2013
  %2081 = vmatprep.subr.mxu0 0.0
  %2082 = vmatpush2.msra.mxu0 0.0
  %2083 = vmatprep.subr.mxu0 0.0
  %2084 = vmatpush2.msra.mxu0 0.0
  %2085 = vmatprep.subr.mxu0 0.0
  %2086 = vmatpush2.msra.mxu0 0.0
  %2087 = vmatprep.subr.mxu0 0.0
  %2088 = vmatpush2.msra.mxu0 0.0
  %2089 = vmatprep.subr.mxu0 0.0
  %2090 = vmatpush2.msra.mxu0 0.0
  %2091 = vmatprep.subr.mxu0 0.0
  %2092 = vmatpush2.msra.mxu0 0.0
  %2093 = vmatprep.subr.mxu0 0.0
  %2094 = vmatpush2.msra.mxu0 0.0
  %2095 = vmatprep.subr.mxu0 0.0
  %2096 = vmatpush2.msra.mxu0 0.0
  %2097 = vmatprep.subr.mxu0 0.0
  %2098 = vmatpush2.msra.mxu0 0.0
  %2099 = vmatprep.subr.mxu0 0.0
  %2100 = vmatpush2.msra.mxu0 0.0
  %2101 = vmatprep.subr.mxu0 0.0
  %2102 = vmatpush2.msra.mxu0 0.0
  %2103 = vmatprep.subr.mxu0 0.0
  %2104 = vmatpush2.msra.mxu0 0.0
  %2105 = vmatprep.subr.mxu0 0.0
  %2106 = vmatpush2.msra.mxu0 0.0
  %2107 = vmatprep.subr.mxu0 0.0
  %2108 = vmatpush2.msra.mxu0 0.0
  %2109 = vmatprep.subr.mxu0 0.0
  %2110 = vmatpush2.msra.mxu0 0.0
  %2111 = vmatprep.subr.mxu0 0.0
  %2112 = vmatpush2.msra.mxu0 0.0
  %2113 = vmatprep.mubr.f32.mxu0 0.0
  %2114 = vmatmul.mubr.f32.gmra.mxu0 %v2030
  %v2115 = vpop.f32.mrf.mxu0
  %v2116 = vadd.f32 0.0, %v2115
  %v2117 = vpop.f32.mrf.mxu0
  %2118 = vmatprep.mubr.f32.mxu0 0.0
  %2119 = vmatmul.mubr.f32.gmra.mxu0 %v2033
  %v2120 = vpop.f32.mrf.mxu0
  %v2121 = vadd.f32 0.0, %v2120
  %v2122 = vpop.f32.mrf.mxu0
  %2123 = vmatprep.mubr.f32.mxu0 0.0
  %2124 = vmatmul.mubr.f32.gmra.mxu0 %v2036
  %v2125 = vpop.f32.mrf.mxu0
  %v2126 = vadd.f32 0.0, %v2125
  %v2127 = vpop.f32.mrf.mxu0
  %2128 = vmatprep.mubr.f32.mxu0 0.0
  %2129 = vmatmul.mubr.f32.gmra.mxu0 %v2039
  %v2130 = vpop.f32.mrf.mxu0
  %v2131 = vadd.f32 0.0, %v2130
  %v2132 = vpop.f32.mrf.mxu0
  %2133 = vmatprep.mubr.f32.mxu0 0.0
  %2134 = vmatmul.mubr.f32.gmra.mxu0 %v2042
  %v2135 = vpop.f32.mrf.mxu0
  %v2136 = vadd.f32 0.0, %v2135
  %v2137 = vpop.f32.mrf.mxu0
  %2138 = vmatprep.mubr.f32.mxu0 0.0
  %2139 = vmatmul.mubr.f32.gmra.mxu0 %v2045
  %v2140 = vpop.f32.mrf.mxu0
  %v2141 = vadd.f32 0.0, %v2140
  %v2142 = vpop.f32.mrf.mxu0
  %2143 = vdwg.mxu0
  %v2145 = vsel %vm206, %v2116, 0
  %v2148 = vsel %vm206, %v2121, 0
  %v2151 = vsel %vm206, %v2126, 0
  %v2154 = vsel %vm206, %v2131, 0
  %v2157 = vsel %vm206, %v2136, 0
  %v2160 = vsel %vm206, %v2141, 0
  %2162 = vmatprep.subr.mxu0 0.0
  %2163 = vmatpush1.msra.mxu0 0.0
  %2164 = vmatprep.subr.mxu0 0.0
  %2165 = vmatpush1.msra.mxu0 0.0
  %2166 = vmatprep.subr.mxu0 0.0
  %2167 = vmatpush1.msra.mxu0 0.0
  %2168 = vmatprep.subr.mxu0 0.0
  %2169 = vmatpush1.msra.mxu0 0.0
  %2170 = vmatprep.subr.mxu0 0.0
  %2171 = vmatpush1.msra.mxu0 0.0
  %2172 = vmatprep.subr.mxu0 0.0
  %2173 = vmatpush1.msra.mxu0 0.0
  %2174 = vmatprep.subr.mxu0 0.0
  %2175 = vmatpush1.msra.mxu0 0.0
  %2176 = vmatprep.subr.mxu0 0.0
  %2177 = vmatpush1.msra.mxu0 0.0
  %2178 = vmatprep.subr.mxu0 0.0
  %2179 = vmatpush1.msra.mxu0 0.0
  %2180 = vmatprep.subr.mxu0 0.0
  %2181 = vmatpush1.msra.mxu0 0.0
  %2182 = vmatprep.subr.mxu0 0.0
  %2183 = vmatpush1.msra.mxu0 0.0
  %2184 = vmatprep.subr.mxu0 0.0
  %2185 = vmatpush1.msra.mxu0 0.0
  %2186 = vmatprep.subr.mxu0 0.0
  %2187 = vmatpush1.msra.mxu0 %v193
  %2188 = vmatprep.subr.mxu0 0.0
  %2189 = vmatpush1.msra.mxu0 %v192
  %2190 = vmatprep.subr.mxu0 0.0
  %2191 = vmatpush1.msra.mxu0 %v191
  %2192 = vmatprep.subr.mxu0 0.0
  %2193 = vmatpush1.msra.mxu0 %v190
  %2194 = vmatprep.subr.mxu0 0.0
  %2195 = vmatpush2.msra.mxu0 0.0
  %2196 = vmatprep.subr.mxu0 0.0
  %2197 = vmatpush2.msra.mxu0 0.0
  %2198 = vmatprep.subr.mxu0 0.0
  %2199 = vmatpush2.msra.mxu0 0.0
  %2200 = vmatprep.subr.mxu0 0.0
  %2201 = vmatpush2.msra.mxu0 0.0
  %2202 = vmatprep.subr.mxu0 0.0
  %2203 = vmatpush2.msra.mxu0 0.0
  %2204 = vmatprep.subr.mxu0 0.0
  %2205 = vmatpush2.msra.mxu0 0.0
  %2206 = vmatprep.subr.mxu0 0.0
  %2207 = vmatpush2.msra.mxu0 0.0
  %2208 = vmatprep.subr.mxu0 0.0
  %2209 = vmatpush2.msra.mxu0 0.0
  %2210 = vmatprep.subr.mxu0 0.0
  %2211 = vmatpush2.msra.mxu0 0.0
  %2212 = vmatprep.subr.mxu0 0.0
  %2213 = vmatpush2.msra.mxu0 0.0
  %2214 = vmatprep.subr.mxu0 0.0
  %2215 = vmatpush2.msra.mxu0 0.0
  %2216 = vmatprep.subr.mxu0 0.0
  %2217 = vmatpush2.msra.mxu0 0.0
  %2218 = vmatprep.subr.mxu0 0.0
  %2219 = vmatpush2.msra.mxu0 0.0
  %2220 = vmatprep.subr.mxu0 0.0
  %2221 = vmatpush2.msra.mxu0 0.0
  %2222 = vmatprep.subr.mxu0 0.0
  %2223 = vmatpush2.msra.mxu0 0.0
  %2224 = vmatprep.subr.mxu0 0.0
  %2225 = vmatpush2.msra.mxu0 0.0
  %2226 = vmatprep.mubr.f32.mxu0 0.0
  %2227 = vmatmul.mubr.f32.gmra.mxu0 %v2145
  %v2228 = vpop.f32.mrf.mxu0
  %v2229 = vadd.f32 0.0, %v2228
  %v2230 = vpop.f32.mrf.mxu0
  %2231 = vmatprep.mubr.f32.mxu0 0.0
  %2232 = vmatmul.mubr.f32.gmra.mxu0 %v2148
  %v2233 = vpop.f32.mrf.mxu0
  %v2234 = vadd.f32 0.0, %v2233
  %v2235 = vpop.f32.mrf.mxu0
  %2236 = vmatprep.mubr.f32.mxu0 0.0
  %2237 = vmatmul.mubr.f32.gmra.mxu0 %v2151
  %v2238 = vpop.f32.mrf.mxu0
  %v2239 = vadd.f32 0.0, %v2238
  %v2240 = vpop.f32.mrf.mxu0
  %2241 = vmatprep.mubr.f32.mxu0 0.0
  %2242 = vmatmul.mubr.f32.gmra.mxu0 %v2154
  %v2243 = vpop.f32.mrf.mxu0
  %v2244 = vadd.f32 0.0, %v2243
  %v2245 = vpop.f32.mrf.mxu0
  %2246 = vmatprep.mubr.f32.mxu0 0.0
  %2247 = vmatmul.mubr.f32.gmra.mxu0 %v2157
  %v2248 = vpop.f32.mrf.mxu0
  %v2249 = vadd.f32 0.0, %v2248
  %v2250 = vpop.f32.mrf.mxu0
  %2251 = vmatprep.mubr.f32.mxu0 0.0
  %2252 = vmatmul.mubr.f32.gmra.mxu0 %v2160
  %v2253 = vpop.f32.mrf.mxu0
  %v2254 = vadd.f32 0.0, %v2253
  %v2255 = vpop.f32.mrf.mxu0
  %2256 = vdwg.mxu0
  %v2257 = vadd.f32 %v1797, %v2229
  %v2258 = vadd.f32 %v1798, %v2234
  %v2259 = vadd.f32 %v1799, %v2239
  %v2260 = vadd.f32 %v1800, %v2244
  %v2261 = vadd.f32 %v1801, %v2249
  %v2262 = vadd.f32 %v1802, %v2254
  %v2263 = vsel %vm206, %v2257, 0.0
  %2264 = vadd.xlane.f32.xlu0 %v2263
  %v2265 = vpop.xlane.xlu0 %2264
  %v2266 = vsel %vm206, %v2258, 0.0
  %2267 = vadd.xlane.f32.xlu0 %v2266
  %v2268 = vpop.xlane.xlu0 %2267
  %v2269 = vsel %vm206, %v2259, 0.0
  %2270 = vadd.xlane.f32.xlu0 %v2269
  %v2271 = vpop.xlane.xlu0 %2270
  %v2272 = vsel %vm206, %v2260, 0.0
  %2273 = vadd.xlane.f32.xlu0 %v2272
  %v2274 = vpop.xlane.xlu0 %2273
  %v2275 = vsel %vm206, %v2261, 0.0
  %2276 = vadd.xlane.f32.xlu0 %v2275
  %v2277 = vpop.xlane.xlu0 %2276
  %vm2278 = vcmask 254976
  %v2279 = vsel %vm2278, %v2262, 0.0
  %2280 = vadd.xlane.f32.xlu0 %v2279
  %v2281 = vpop.xlane.xlu0 %2280
  %v2282 = vrcp.pop 32.0
  %v2283 = vmul.f32 %v2265, %v2282
  %v2284 = vmul.f32 %v2268, %v2282
  %v2285 = vmul.f32 %v2271, %v2282
  %v2286 = vmul.f32 %v2274, %v2282
  %v2287 = vmul.f32 %v2277, %v2282
  %v2288 = vmul.f32 %v2281, %v2282
  %v2289 = vsub.f32 %v2257, %v2283
  %v2290 = vsub.f32 %v2258, %v2284
  %v2291 = vsub.f32 %v2259, %v2285
  %v2292 = vsub.f32 %v2260, %v2286
  %v2293 = vsub.f32 %v2261, %v2287
  %v2294 = vsub.f32 %v2262, %v2288
  %v2295 = vmul.f32 %v2289, %v2289
  %v2296 = vmul.f32 %v2290, %v2290
  %v2297 = vmul.f32 %v2291, %v2291
  %v2298 = vmul.f32 %v2292, %v2292
  %v2299 = vmul.f32 %v2293, %v2293
  %v2300 = vmul.f32 %v2294, %v2294
  %v2301 = vsel %vm206, %v2295, 0.0
  %2302 = vadd.xlane.f32.xlu0 %v2301
  %v2303 = vpop.xlane.xlu0 %2302
  %v2304 = vsel %vm206, %v2296, 0.0
  %2305 = vadd.xlane.f32.xlu0 %v2304
  %v2306 = vpop.xlane.xlu0 %2305
  %v2307 = vsel %vm206, %v2297, 0.0
  %2308 = vadd.xlane.f32.xlu0 %v2307
  %v2309 = vpop.xlane.xlu0 %2308
  %v2310 = vsel %vm206, %v2298, 0.0
  %2311 = vadd.xlane.f32.xlu0 %v2310
  %v2312 = vpop.xlane.xlu0 %2311
  %v2313 = vsel %vm206, %v2299, 0.0
  %2314 = vadd.xlane.f32.xlu0 %v2313
  %v2315 = vpop.xlane.xlu0 %2314
  %v2316 = vsel %vm2278, %v2300, 0.0
  %2317 = vadd.xlane.f32.xlu0 %v2316
  %v2318 = vpop.xlane.xlu0 %2317
  %v2319 = vmul.f32 %v2303, %v2282
  %v2320 = vmul.f32 %v2306, %v2282
  %v2321 = vmul.f32 %v2309, %v2282
  %v2322 = vmul.f32 %v2312, %v2282
  %v2323 = vmul.f32 %v2315, %v2282
  %v2324 = vmul.f32 %v2318, %v2282
  %v2325 = vadd.f32 %v2319, 1e-05
  %v2326 = vadd.f32 %v2320, 1e-05
  %v2327 = vadd.f32 %v2321, 1e-05
  %v2328 = vadd.f32 %v2322, 1e-05
  %v2329 = vadd.f32 %v2323, 1e-05
  %v2330 = vadd.f32 %v2324, 1e-05
  %v2331 = vrsqrt.pop %v2325
  %v2332 = vrsqrt.pop %v2326
  %v2333 = vrsqrt.pop %v2327
  %v2334 = vrsqrt.pop %v2328
  %v2335 = vrsqrt.pop %v2329
  %v2336 = vrsqrt.pop %v2330
  %v2337 = vmul.f32 %v2289, %v2331
  %v2338 = vmul.f32 %v2290, %v2332
  %v2339 = vmul.f32 %v2291, %v2333
  %v2340 = vmul.f32 %v2292, %v2334
  %v2341 = vmul.f32 %v2293, %v2335
  %v2342 = vmul.f32 %v2294, %v2336
  %v2343 = vlaneseq
  %v2344 = vshrl.u32 %v2343, 7
  %v2345 = vsub.s32 1, %v2344
  %v2346 = vrot.slane %v177, %v2345
  %v2347 = vmul.f32 %v2337, %v2346
  %v2348 = vmul.f32 %v2338, %v2346
  %v2349 = vmul.f32 %v2339, %v2346
  %v2350 = vmul.f32 %v2340, %v2346
  %v2351 = vmul.f32 %v2341, %v2346
  %v2352 = vmul.f32 %v2342, %v2346
  %v2353 = vlaneseq
  %v2354 = vshrl.u32 %v2353, 7
  %v2355 = vsub.s32 2, %v2354
  %v2356 = vrot.slane %v177, %v2355
  %v2357 = vadd.f32 %v2347, %v2356
  %v2358 = vadd.f32 %v2348, %v2356
  %v2359 = vadd.f32 %v2349, %v2356
  %v2360 = vadd.f32 %v2350, %v2356
  %v2361 = vadd.f32 %v2351, %v2356
  %v2362 = vadd.f32 %v2352, %v2356
  %v2363 = vld [vmem:[%s5] sm:$0xff]
  %v2364 = vld [vmem:[%s5 + $0x8] sm:$0xff]
  %v2365 = vld [vmem:[%s5 + $0x10] sm:$0xff]
  %v2366 = vld [vmem:[%s5 + $0x18] sm:$0xff]
  %v2367 = vld [vmem:[%s7] sm:$0x1]
  %v2369 = vlaneseq
  %v2370 = vshrl.u32 %v2369, 7
  %v2371 = vsub.s32 0, %v2370
  %v2372 = vrot.slane %v2367, %v2371
  %v2375 = vsel %vm206, %v2357, 0
  %v2378 = vsel %vm206, %v2358, 0
  %v2381 = vsel %vm206, %v2359, 0
  %v2384 = vsel %vm206, %v2360, 0
  %v2387 = vsel %vm206, %v2361, 0
  %v2390 = vsel %vm206, %v2362, 0
  %2392 = vmatprep.subr.mxu0 0.0
  %2393 = vmatpush1.msra.mxu0 0.0
  %2394 = vmatprep.subr.mxu0 0.0
  %2395 = vmatpush1.msra.mxu0 0.0
  %2396 = vmatprep.subr.mxu0 0.0
  %2397 = vmatpush1.msra.mxu0 0.0
  %2398 = vmatprep.subr.mxu0 0.0
  %2399 = vmatpush1.msra.mxu0 0.0
  %2400 = vmatprep.subr.mxu0 0.0
  %2401 = vmatpush1.msra.mxu0 0.0
  %2402 = vmatprep.subr.mxu0 0.0
  %2403 = vmatpush1.msra.mxu0 0.0
  %2404 = vmatprep.subr.mxu0 0.0
  %2405 = vmatpush1.msra.mxu0 0.0
  %2406 = vmatprep.subr.mxu0 0.0
  %2407 = vmatpush1.msra.mxu0 0.0
  %2408 = vmatprep.subr.mxu0 0.0
  %2409 = vmatpush1.msra.mxu0 0.0
  %2410 = vmatprep.subr.mxu0 0.0
  %2411 = vmatpush1.msra.mxu0 0.0
  %2412 = vmatprep.subr.mxu0 0.0
  %2413 = vmatpush1.msra.mxu0 0.0
  %2414 = vmatprep.subr.mxu0 0.0
  %2415 = vmatpush1.msra.mxu0 0.0
  %2416 = vmatprep.subr.mxu0 0.0
  %2417 = vmatpush1.msra.mxu0 %v2366
  %2418 = vmatprep.subr.mxu0 0.0
  %2419 = vmatpush1.msra.mxu0 %v2365
  %2420 = vmatprep.subr.mxu0 0.0
  %2421 = vmatpush1.msra.mxu0 %v2364
  %2422 = vmatprep.subr.mxu0 0.0
  %2423 = vmatpush1.msra.mxu0 %v2363
  %2424 = vmatprep.subr.mxu0 0.0
  %2425 = vmatpush2.msra.mxu0 0.0
  %2426 = vmatprep.subr.mxu0 0.0
  %2427 = vmatpush2.msra.mxu0 0.0
  %2428 = vmatprep.subr.mxu0 0.0
  %2429 = vmatpush2.msra.mxu0 0.0
  %2430 = vmatprep.subr.mxu0 0.0
  %2431 = vmatpush2.msra.mxu0 0.0
  %2432 = vmatprep.subr.mxu0 0.0
  %2433 = vmatpush2.msra.mxu0 0.0
  %2434 = vmatprep.subr.mxu0 0.0
  %2435 = vmatpush2.msra.mxu0 0.0
  %2436 = vmatprep.subr.mxu0 0.0
  %2437 = vmatpush2.msra.mxu0 0.0
  %2438 = vmatprep.subr.mxu0 0.0
  %2439 = vmatpush2.msra.mxu0 0.0
  %2440 = vmatprep.subr.mxu0 0.0
  %2441 = vmatpush2.msra.mxu0 0.0
  %2442 = vmatprep.subr.mxu0 0.0
  %2443 = vmatpush2.msra.mxu0 0.0
  %2444 = vmatprep.subr.mxu0 0.0
  %2445 = vmatpush2.msra.mxu0 0.0
  %2446 = vmatprep.subr.mxu0 0.0
  %2447 = vmatpush2.msra.mxu0 0.0
  %2448 = vmatprep.subr.mxu0 0.0
  %2449 = vmatpush2.msra.mxu0 0.0
  %2450 = vmatprep.subr.mxu0 0.0
  %2451 = vmatpush2.msra.mxu0 0.0
  %2452 = vmatprep.subr.mxu0 0.0
  %2453 = vmatpush2.msra.mxu0 0.0
  %2454 = vmatprep.subr.mxu0 0.0
  %2455 = vmatpush2.msra.mxu0 0.0
  %2456 = vmatprep.mubr.f32.mxu0 0.0
  %2457 = vmatmul.mubr.f32.gmra.mxu0 %v2375
  %v2458 = vpop.f32.mrf.mxu0
  %v2459 = vadd.f32 %v2372, %v2458
  %v2460 = vpop.f32.mrf.mxu0
  %2461 = vmatprep.mubr.f32.mxu0 0.0
  %2462 = vmatmul.mubr.f32.gmra.mxu0 %v2378
  %v2463 = vpop.f32.mrf.mxu0
  %v2464 = vadd.f32 %v2372, %v2463
  %v2465 = vpop.f32.mrf.mxu0
  %2466 = vmatprep.mubr.f32.mxu0 0.0
  %2467 = vmatmul.mubr.f32.gmra.mxu0 %v2381
  %v2468 = vpop.f32.mrf.mxu0
  %v2469 = vadd.f32 %v2372, %v2468
  %v2470 = vpop.f32.mrf.mxu0
  %2471 = vmatprep.mubr.f32.mxu0 0.0
  %2472 = vmatmul.mubr.f32.gmra.mxu0 %v2384
  %v2473 = vpop.f32.mrf.mxu0
  %v2474 = vadd.f32 %v2372, %v2473
  %v2475 = vpop.f32.mrf.mxu0
  %2476 = vmatprep.mubr.f32.mxu0 0.0
  %2477 = vmatmul.mubr.f32.gmra.mxu0 %v2387
  %v2478 = vpop.f32.mrf.mxu0
  %v2479 = vadd.f32 %v2372, %v2478
  %v2480 = vpop.f32.mrf.mxu0
  %2481 = vmatprep.mubr.f32.mxu0 0.0
  %2482 = vmatmul.mubr.f32.gmra.mxu0 %v2390
  %v2483 = vpop.f32.mrf.mxu0
  %v2484 = vadd.f32 %v2372, %v2483
  %v2485 = vpop.f32.mrf.mxu0
  %2486 = vdwg.mxu0
  %v2487 = vmax.f32 %v2459, 0.0
  %v2488 = vmax.f32 %v2464, 0.0
  %v2489 = vmax.f32 %v2469, 0.0
  %v2490 = vmax.f32 %v2474, 0.0
  %v2491 = vmax.f32 %v2479, 0.0
  %v2492 = vmax.f32 %v2484, 0.0
  %v2493 = vld [vmem:[%s6] sm:$0xff]
  %v2494 = vld [vmem:[%s6 + $0x8] sm:$0xff]
  %v2495 = vld [vmem:[%s6 + $0x10] sm:$0xff]
  %v2496 = vld [vmem:[%s6 + $0x18] sm:$0xff]
  %v2497 = vld [vmem:[%s6 + $0x20] sm:$0xff]
  %v2498 = vld [vmem:[%s6 + $0x28] sm:$0xff]
  %v2499 = vld [vmem:[%s6 + $0x30] sm:$0xff]
  %v2500 = vld [vmem:[%s6 + $0x38] sm:$0xff]
  %v2501 = vld [vmem:[%s6 + $0x40] sm:$0xff]
  %v2502 = vld [vmem:[%s6 + $0x48] sm:$0xff]
  %v2503 = vld [vmem:[%s6 + $0x50] sm:$0xff]
  %v2504 = vld [vmem:[%s6 + $0x58] sm:$0xff]
  %v2505 = vld [vmem:[%s6 + $0x60] sm:$0xff]
  %v2506 = vld [vmem:[%s6 + $0x68] sm:$0xff]
  %v2507 = vld [vmem:[%s6 + $0x70] sm:$0xff]
  %v2508 = vld [vmem:[%s6 + $0x78] sm:$0xff]
  %v2509 = vlaneseq
  %v2510 = vshrl.u32 %v2509, 7
  %v2511 = vsub.s32 3, %v2510
  %v2512 = vrot.slane %v177, %v2511
  %2513 = vmatprep.subr.mxu0 0.0
  %2514 = vmatpush1.msra.mxu0 %v2508
  %2515 = vmatprep.subr.mxu0 0.0
  %2516 = vmatpush1.msra.mxu0 %v2507
  %2517 = vmatprep.subr.mxu0 0.0
  %2518 = vmatpush1.msra.mxu0 %v2506
  %2519 = vmatprep.subr.mxu0 0.0
  %2520 = vmatpush1.msra.mxu0 %v2505
  %2521 = vmatprep.subr.mxu0 0.0
  %2522 = vmatpush1.msra.mxu0 %v2504
  %2523 = vmatprep.subr.mxu0 0.0
  %2524 = vmatpush1.msra.mxu0 %v2503
  %2525 = vmatprep.subr.mxu0 0.0
  %2526 = vmatpush1.msra.mxu0 %v2502
  %2527 = vmatprep.subr.mxu0 0.0
  %2528 = vmatpush1.msra.mxu0 %v2501
  %2529 = vmatprep.subr.mxu0 0.0
  %2530 = vmatpush1.msra.mxu0 %v2500
  %2531 = vmatprep.subr.mxu0 0.0
  %2532 = vmatpush1.msra.mxu0 %v2499
  %2533 = vmatprep.subr.mxu0 0.0
  %2534 = vmatpush1.msra.mxu0 %v2498
  %2535 = vmatprep.subr.mxu0 0.0
  %2536 = vmatpush1.msra.mxu0 %v2497
  %2537 = vmatprep.subr.mxu0 0.0
  %2538 = vmatpush1.msra.mxu0 %v2496
  %2539 = vmatprep.subr.mxu0 0.0
  %2540 = vmatpush1.msra.mxu0 %v2495
  %2541 = vmatprep.subr.mxu0 0.0
  %2542 = vmatpush1.msra.mxu0 %v2494
  %2543 = vmatprep.subr.mxu0 0.0
  %2544 = vmatpush1.msra.mxu0 %v2493
  %2545 = vmatprep.subr.mxu0 0.0
  %2546 = vmatpush2.msra.mxu0 0.0
  %2547 = vmatprep.subr.mxu0 0.0
  %2548 = vmatpush2.msra.mxu0 0.0
  %2549 = vmatprep.subr.mxu0 0.0
  %2550 = vmatpush2.msra.mxu0 0.0
  %2551 = vmatprep.subr.mxu0 0.0
  %2552 = vmatpush2.msra.mxu0 0.0
  %2553 = vmatprep.subr.mxu0 0.0
  %2554 = vmatpush2.msra.mxu0 0.0
  %2555 = vmatprep.subr.mxu0 0.0
  %2556 = vmatpush2.msra.mxu0 0.0
  %2557 = vmatprep.subr.mxu0 0.0
  %2558 = vmatpush2.msra.mxu0 0.0
  %2559 = vmatprep.subr.mxu0 0.0
  %2560 = vmatpush2.msra.mxu0 0.0
  %2561 = vmatprep.subr.mxu0 0.0
  %2562 = vmatpush2.msra.mxu0 0.0
  %2563 = vmatprep.subr.mxu0 0.0
  %2564 = vmatpush2.msra.mxu0 0.0
  %2565 = vmatprep.subr.mxu0 0.0
  %2566 = vmatpush2.msra.mxu0 0.0
  %2567 = vmatprep.subr.mxu0 0.0
  %2568 = vmatpush2.msra.mxu0 0.0
  %2569 = vmatprep.subr.mxu0 0.0
  %2570 = vmatpush2.msra.mxu0 0.0
  %2571 = vmatprep.subr.mxu0 0.0
  %2572 = vmatpush2.msra.mxu0 0.0
  %2573 = vmatprep.subr.mxu0 0.0
  %2574 = vmatpush2.msra.mxu0 0.0
  %2575 = vmatprep.subr.mxu0 0.0
  %2576 = vmatpush2.msra.mxu0 0.0
  %2577 = vmatprep.mubr.f32.mxu0 0.0
  %2578 = vmatmul.mubr.f32.gmra.mxu0 %v2487
  %v2579 = vpop.f32.mrf.mxu0
  %v2580 = vadd.f32 %v2512, %v2579
  %v2581 = vpop.f32.mrf.mxu0
  %2582 = vmatprep.mubr.f32.mxu0 0.0
  %2583 = vmatmul.mubr.f32.gmra.mxu0 %v2488
  %v2584 = vpop.f32.mrf.mxu0
  %v2585 = vadd.f32 %v2512, %v2584
  %v2586 = vpop.f32.mrf.mxu0
  %2587 = vmatprep.mubr.f32.mxu0 0.0
  %2588 = vmatmul.mubr.f32.gmra.mxu0 %v2489
  %v2589 = vpop.f32.mrf.mxu0
  %v2590 = vadd.f32 %v2512, %v2589
  %v2591 = vpop.f32.mrf.mxu0
  %2592 = vmatprep.mubr.f32.mxu0 0.0
  %2593 = vmatmul.mubr.f32.gmra.mxu0 %v2490
  %v2594 = vpop.f32.mrf.mxu0
  %v2595 = vadd.f32 %v2512, %v2594
  %v2596 = vpop.f32.mrf.mxu0
  %2597 = vmatprep.mubr.f32.mxu0 0.0
  %2598 = vmatmul.mubr.f32.gmra.mxu0 %v2491
  %v2599 = vpop.f32.mrf.mxu0
  %v2600 = vadd.f32 %v2512, %v2599
  %v2601 = vpop.f32.mrf.mxu0
  %2602 = vmatprep.mubr.f32.mxu0 0.0
  %2603 = vmatmul.mubr.f32.gmra.mxu0 %v2492
  %v2604 = vpop.f32.mrf.mxu0
  %v2605 = vadd.f32 %v2512, %v2604
  %v2606 = vpop.f32.mrf.mxu0
  %2607 = vdwg.mxu0
  %v2608 = vadd.f32 %v2580, %v2357
  %v2609 = vadd.f32 %v2585, %v2358
  %v2610 = vadd.f32 %v2590, %v2359
  %v2611 = vadd.f32 %v2595, %v2360
  %v2612 = vadd.f32 %v2600, %v2361
  %v2613 = vadd.f32 %v2605, %v2362
  %v2614 = vsel %vm206, %v2608, 0.0
  %2615 = vadd.xlane.f32.xlu0 %v2614
  %v2616 = vpop.xlane.xlu0 %2615
  %v2617 = vsel %vm206, %v2609, 0.0
  %2618 = vadd.xlane.f32.xlu0 %v2617
  %v2619 = vpop.xlane.xlu0 %2618
  %v2620 = vsel %vm206, %v2610, 0.0
  %2621 = vadd.xlane.f32.xlu0 %v2620
  %v2622 = vpop.xlane.xlu0 %2621
  %v2623 = vsel %vm206, %v2611, 0.0
  %2624 = vadd.xlane.f32.xlu0 %v2623
  %v2625 = vpop.xlane.xlu0 %2624
  %v2626 = vsel %vm206, %v2612, 0.0
  %2627 = vadd.xlane.f32.xlu0 %v2626
  %v2628 = vpop.xlane.xlu0 %2627
  %v2629 = vsel %vm2278, %v2613, 0.0
  %2630 = vadd.xlane.f32.xlu0 %v2629
  %v2631 = vpop.xlane.xlu0 %2630
  %v2632 = vmul.f32 %v2616, %v2282
  %v2633 = vmul.f32 %v2619, %v2282
  %v2634 = vmul.f32 %v2622, %v2282
  %v2635 = vmul.f32 %v2625, %v2282
  %v2636 = vmul.f32 %v2628, %v2282
  %v2637 = vmul.f32 %v2631, %v2282
  %v2638 = vsub.f32 %v2608, %v2632
  %v2639 = vsub.f32 %v2609, %v2633
  %v2640 = vsub.f32 %v2610, %v2634
  %v2641 = vsub.f32 %v2611, %v2635
  %v2642 = vsub.f32 %v2612, %v2636
  %v2643 = vsub.f32 %v2613, %v2637
  %v2644 = vmul.f32 %v2638, %v2638
  %v2645 = vmul.f32 %v2639, %v2639
  %v2646 = vmul.f32 %v2640, %v2640
  %v2647 = vmul.f32 %v2641, %v2641
  %v2648 = vmul.f32 %v2642, %v2642
  %v2649 = vmul.f32 %v2643, %v2643
  %v2650 = vsel %vm206, %v2644, 0.0
  %2651 = vadd.xlane.f32.xlu0 %v2650
  %v2652 = vpop.xlane.xlu0 %2651
  %v2653 = vsel %vm206, %v2645, 0.0
  %2654 = vadd.xlane.f32.xlu0 %v2653
  %v2655 = vpop.xlane.xlu0 %2654
  %v2656 = vsel %vm206, %v2646, 0.0
  %2657 = vadd.xlane.f32.xlu0 %v2656
  %v2658 = vpop.xlane.xlu0 %2657
  %v2659 = vsel %vm206, %v2647, 0.0
  %2660 = vadd.xlane.f32.xlu0 %v2659
  %v2661 = vpop.xlane.xlu0 %2660
  %v2662 = vsel %vm206, %v2648, 0.0
  %2663 = vadd.xlane.f32.xlu0 %v2662
  %v2664 = vpop.xlane.xlu0 %2663
  %v2665 = vsel %vm2278, %v2649, 0.0
  %2666 = vadd.xlane.f32.xlu0 %v2665
  %v2667 = vpop.xlane.xlu0 %2666
  %v2668 = vmul.f32 %v2652, %v2282
  %v2669 = vmul.f32 %v2655, %v2282
  %v2670 = vmul.f32 %v2658, %v2282
  %v2671 = vmul.f32 %v2661, %v2282
  %v2672 = vmul.f32 %v2664, %v2282
  %v2673 = vmul.f32 %v2667, %v2282
  %v2674 = vadd.f32 %v2668, 1e-05
  %v2675 = vadd.f32 %v2669, 1e-05
  %v2676 = vadd.f32 %v2670, 1e-05
  %v2677 = vadd.f32 %v2671, 1e-05
  %v2678 = vadd.f32 %v2672, 1e-05
  %v2679 = vadd.f32 %v2673, 1e-05
  %v2680 = vrsqrt.pop %v2674
  %v2681 = vrsqrt.pop %v2675
  %v2682 = vrsqrt.pop %v2676
  %v2683 = vrsqrt.pop %v2677
  %v2684 = vrsqrt.pop %v2678
  %v2685 = vrsqrt.pop %v2679
  %v2686 = vmul.f32 %v2638, %v2680
  %v2687 = vmul.f32 %v2639, %v2681
  %v2688 = vmul.f32 %v2640, %v2682
  %v2689 = vmul.f32 %v2641, %v2683
  %v2690 = vmul.f32 %v2642, %v2684
  %v2691 = vmul.f32 %v2643, %v2685
  %v2692 = vlaneseq
  %v2693 = vshrl.u32 %v2692, 7
  %v2694 = vsub.s32 4, %v2693
  %v2695 = vrot.slane %v177, %v2694
  %v2696 = vmul.f32 %v2686, %v2695
  %v2697 = vmul.f32 %v2687, %v2695
  %v2698 = vmul.f32 %v2688, %v2695
  %v2699 = vmul.f32 %v2689, %v2695
  %v2700 = vmul.f32 %v2690, %v2695
  %v2701 = vmul.f32 %v2691, %v2695
  %v2702 = vlaneseq
  %v2703 = vshrl.u32 %v2702, 7
  %v2704 = vsub.s32 5, %v2703
  %v2705 = vrot.slane %v177, %v2704
  %v2706 = vadd.f32 %v2696, %v2705
  %v2707 = vadd.f32 %v2697, %v2705
  %v2708 = vadd.f32 %v2698, %v2705
  %v2709 = vadd.f32 %v2699, %v2705
  %v2710 = vadd.f32 %v2700, %v2705
  %v2711 = vadd.f32 %v2701, %v2705
  %s2712 = scalar_lea.vmem %s8, 8
  %v2713 = vld [vmem:[%s2712] sm:$0x3f]
  %s2714 = scalar_lea.vmem %s4, 128
  %v2715 = vld [vmem:[%s2714] sm:$0xff]
  %v2716 = vld [vmem:[%s2714 + $0x8] sm:$0xff]
  %v2717 = vld [vmem:[%s2714 + $0x10] sm:$0xff]
  %v2718 = vld [vmem:[%s2714 + $0x18] sm:$0xff]
  %v2719 = vld [vmem:[%s2714 + $0x20] sm:$0xff]
  %v2720 = vld [vmem:[%s2714 + $0x28] sm:$0xff]
  %v2721 = vld [vmem:[%s2714 + $0x30] sm:$0xff]
  %v2722 = vld [vmem:[%s2714 + $0x38] sm:$0xff]
  %v2723 = vld [vmem:[%s2714 + $0x40] sm:$0xff]
  %v2724 = vld [vmem:[%s2714 + $0x48] sm:$0xff]
  %v2725 = vld [vmem:[%s2714 + $0x50] sm:$0xff]
  %v2726 = vld [vmem:[%s2714 + $0x58] sm:$0xff]
  %v2727 = vld [vmem:[%s2714 + $0x60] sm:$0xff]
  %v2728 = vld [vmem:[%s2714 + $0x68] sm:$0xff]
  %v2729 = vld [vmem:[%s2714 + $0x70] sm:$0xff]
  %v2730 = vld [vmem:[%s2714 + $0x78] sm:$0xff]
  %s2731 = scalar_lea.vmem %s3, 96
  %v2732 = vld [vmem:[%s2731] sm:$0xff]
  %v2733 = vld [vmem:[%s2731 + $0x8] sm:$0xff]
  %v2734 = vld [vmem:[%s2731 + $0x10] sm:$0xff]
  %v2735 = vld [vmem:[%s2731 + $0x18] sm:$0xff]
  %v2736 = vld [vmem:[%s2731 + $0x20] sm:$0xff]
  %v2737 = vld [vmem:[%s2731 + $0x28] sm:$0xff]
  %v2738 = vld [vmem:[%s2731 + $0x30] sm:$0xff]
  %v2739 = vld [vmem:[%s2731 + $0x38] sm:$0xff]
  %v2740 = vld [vmem:[%s2731 + $0x40] sm:$0xff]
  %v2741 = vld [vmem:[%s2731 + $0x48] sm:$0xff]
  %v2742 = vld [vmem:[%s2731 + $0x50] sm:$0xff]
  %v2743 = vld [vmem:[%s2731 + $0x58] sm:$0xff]
  %v2745 = vsel %vm206, %v2706, 0
  %v2748 = vsel %vm206, %v2707, 0
  %v2751 = vsel %vm206, %v2708, 0
  %v2754 = vsel %vm206, %v2709, 0
  %v2757 = vsel %vm206, %v2710, 0
  %v2760 = vsel %vm206, %v2711, 0
  %2762 = vmatprep.subr.mxu0 0.0
  %2763 = vmatpush1.msra.mxu0 0.0
  %2764 = vmatprep.subr.mxu0 0.0
  %2765 = vmatpush1.msra.mxu0 0.0
  %2766 = vmatprep.subr.mxu0 0.0
  %2767 = vmatpush1.msra.mxu0 0.0
  %2768 = vmatprep.subr.mxu0 0.0
  %2769 = vmatpush1.msra.mxu0 0.0
  %2770 = vmatprep.subr.mxu0 0.0
  %2771 = vmatpush1.msra.mxu0 0.0
  %2772 = vmatprep.subr.mxu0 0.0
  %2773 = vmatpush1.msra.mxu0 0.0
  %2774 = vmatprep.subr.mxu0 0.0
  %2775 = vmatpush1.msra.mxu0 0.0
  %2776 = vmatprep.subr.mxu0 0.0
  %2777 = vmatpush1.msra.mxu0 0.0
  %2778 = vmatprep.subr.mxu0 0.0
  %2779 = vmatpush1.msra.mxu0 0.0
  %2780 = vmatprep.subr.mxu0 0.0
  %2781 = vmatpush1.msra.mxu0 0.0
  %2782 = vmatprep.subr.mxu0 0.0
  %2783 = vmatpush1.msra.mxu0 0.0
  %2784 = vmatprep.subr.mxu0 0.0
  %2785 = vmatpush1.msra.mxu0 0.0
  %2786 = vmatprep.subr.mxu0 %v2742
  %2787 = vmatpush1.msra.mxu0 %v2741
  %2788 = vmatprep.subr.mxu0 %v2739
  %2789 = vmatpush1.msra.mxu0 %v2738
  %2790 = vmatprep.subr.mxu0 %v2736
  %2791 = vmatpush1.msra.mxu0 %v2735
  %2792 = vmatprep.subr.mxu0 %v2733
  %2793 = vmatpush1.msra.mxu0 %v2732
  %2794 = vmatprep.subr.mxu0 0.0
  %2795 = vmatpush2.msra.mxu0 0.0
  %2796 = vmatprep.subr.mxu0 0.0
  %2797 = vmatpush2.msra.mxu0 0.0
  %2798 = vmatprep.subr.mxu0 0.0
  %2799 = vmatpush2.msra.mxu0 0.0
  %2800 = vmatprep.subr.mxu0 0.0
  %2801 = vmatpush2.msra.mxu0 0.0
  %2802 = vmatprep.subr.mxu0 0.0
  %2803 = vmatpush2.msra.mxu0 0.0
  %2804 = vmatprep.subr.mxu0 0.0
  %2805 = vmatpush2.msra.mxu0 0.0
  %2806 = vmatprep.subr.mxu0 0.0
  %2807 = vmatpush2.msra.mxu0 0.0
  %2808 = vmatprep.subr.mxu0 0.0
  %2809 = vmatpush2.msra.mxu0 0.0
  %2810 = vmatprep.subr.mxu0 0.0
  %2811 = vmatpush2.msra.mxu0 0.0
  %2812 = vmatprep.subr.mxu0 0.0
  %2813 = vmatpush2.msra.mxu0 0.0
  %2814 = vmatprep.subr.mxu0 0.0
  %2815 = vmatpush2.msra.mxu0 0.0
  %2816 = vmatprep.subr.mxu0 0.0
  %2817 = vmatpush2.msra.mxu0 0.0
  %2818 = vmatprep.subr.mxu0 0.0
  %2819 = vmatpush2.msra.mxu0 0.0
  %2820 = vmatprep.subr.mxu0 0.0
  %2821 = vmatpush2.msra.mxu0 0.0
  %2822 = vmatprep.subr.mxu0 0.0
  %2823 = vmatpush2.msra.mxu0 0.0
  %2824 = vmatprep.subr.mxu0 0.0
  %2825 = vmatpush2.msra.mxu0 0.0
  %2826 = vmatprep.mubr.f32.mxu0 0.0
  %2827 = vmatmul.mubr.f32.gmra.mxu0 %v2745
  %v2828 = vpop.f32.mrf.mxu0
  %v2829 = vadd.f32 0.0, %v2828
  %v2830 = vpop.f32.mrf.mxu0
  %v2831 = vadd.f32 0.0, %v2830
  %2832 = vmatprep.mubr.f32.mxu0 0.0
  %2833 = vmatmul.mubr.f32.gmra.mxu0 %v2748
  %v2834 = vpop.f32.mrf.mxu0
  %v2835 = vadd.f32 0.0, %v2834
  %v2836 = vpop.f32.mrf.mxu0
  %v2837 = vadd.f32 0.0, %v2836
  %2838 = vmatprep.mubr.f32.mxu0 0.0
  %2839 = vmatmul.mubr.f32.gmra.mxu0 %v2751
  %v2840 = vpop.f32.mrf.mxu0
  %v2841 = vadd.f32 0.0, %v2840
  %v2842 = vpop.f32.mrf.mxu0
  %v2843 = vadd.f32 0.0, %v2842
  %2844 = vmatprep.mubr.f32.mxu0 0.0
  %2845 = vmatmul.mubr.f32.gmra.mxu0 %v2754
  %v2846 = vpop.f32.mrf.mxu0
  %v2847 = vadd.f32 0.0, %v2846
  %v2848 = vpop.f32.mrf.mxu0
  %v2849 = vadd.f32 0.0, %v2848
  %2850 = vmatprep.mubr.f32.mxu0 0.0
  %2851 = vmatmul.mubr.f32.gmra.mxu0 %v2757
  %v2852 = vpop.f32.mrf.mxu0
  %v2853 = vadd.f32 0.0, %v2852
  %v2854 = vpop.f32.mrf.mxu0
  %v2855 = vadd.f32 0.0, %v2854
  %2856 = vmatprep.mubr.f32.mxu0 0.0
  %2857 = vmatmul.mubr.f32.gmra.mxu0 %v2760
  %v2858 = vpop.f32.mrf.mxu0
  %v2859 = vadd.f32 0.0, %v2858
  %v2860 = vpop.f32.mrf.mxu0
  %v2861 = vadd.f32 0.0, %v2860
  %2862 = vdwg.mxu0
  %2863 = vmatprep.subr.mxu0 0.0
  %2864 = vmatpush1.msra.mxu0 0.0
  %2865 = vmatprep.subr.mxu0 0.0
  %2866 = vmatpush1.msra.mxu0 0.0
  %2867 = vmatprep.subr.mxu0 0.0
  %2868 = vmatpush1.msra.mxu0 0.0
  %2869 = vmatprep.subr.mxu0 0.0
  %2870 = vmatpush1.msra.mxu0 0.0
  %2871 = vmatprep.subr.mxu0 0.0
  %2872 = vmatpush1.msra.mxu0 0.0
  %2873 = vmatprep.subr.mxu0 0.0
  %2874 = vmatpush1.msra.mxu0 0.0
  %2875 = vmatprep.subr.mxu0 0.0
  %2876 = vmatpush1.msra.mxu0 0.0
  %2877 = vmatprep.subr.mxu0 0.0
  %2878 = vmatpush1.msra.mxu0 0.0
  %2879 = vmatprep.subr.mxu0 0.0
  %2880 = vmatpush1.msra.mxu0 0.0
  %2881 = vmatprep.subr.mxu0 0.0
  %2882 = vmatpush1.msra.mxu0 0.0
  %2883 = vmatprep.subr.mxu0 0.0
  %2884 = vmatpush1.msra.mxu0 0.0
  %2885 = vmatprep.subr.mxu0 0.0
  %2886 = vmatpush1.msra.mxu0 0.0
  %2887 = vmatprep.subr.mxu0 0.0
  %2888 = vmatpush1.msra.mxu0 %v2743
  %2889 = vmatprep.subr.mxu0 0.0
  %2890 = vmatpush1.msra.mxu0 %v2740
  %2891 = vmatprep.subr.mxu0 0.0
  %2892 = vmatpush1.msra.mxu0 %v2737
  %2893 = vmatprep.subr.mxu0 0.0
  %2894 = vmatpush1.msra.mxu0 %v2734
  %2895 = vmatprep.subr.mxu0 0.0
  %2896 = vmatpush2.msra.mxu0 0.0
  %2897 = vmatprep.subr.mxu0 0.0
  %2898 = vmatpush2.msra.mxu0 0.0
  %2899 = vmatprep.subr.mxu0 0.0
  %2900 = vmatpush2.msra.mxu0 0.0
  %2901 = vmatprep.subr.mxu0 0.0
  %2902 = vmatpush2.msra.mxu0 0.0
  %2903 = vmatprep.subr.mxu0 0.0
  %2904 = vmatpush2.msra.mxu0 0.0
  %2905 = vmatprep.subr.mxu0 0.0
  %2906 = vmatpush2.msra.mxu0 0.0
  %2907 = vmatprep.subr.mxu0 0.0
  %2908 = vmatpush2.msra.mxu0 0.0
  %2909 = vmatprep.subr.mxu0 0.0
  %2910 = vmatpush2.msra.mxu0 0.0
  %2911 = vmatprep.subr.mxu0 0.0
  %2912 = vmatpush2.msra.mxu0 0.0
  %2913 = vmatprep.subr.mxu0 0.0
  %2914 = vmatpush2.msra.mxu0 0.0
  %2915 = vmatprep.subr.mxu0 0.0
  %2916 = vmatpush2.msra.mxu0 0.0
  %2917 = vmatprep.subr.mxu0 0.0
  %2918 = vmatpush2.msra.mxu0 0.0
  %2919 = vmatprep.subr.mxu0 0.0
  %2920 = vmatpush2.msra.mxu0 0.0
  %2921 = vmatprep.subr.mxu0 0.0
  %2922 = vmatpush2.msra.mxu0 0.0
  %2923 = vmatprep.subr.mxu0 0.0
  %2924 = vmatpush2.msra.mxu0 0.0
  %2925 = vmatprep.subr.mxu0 0.0
  %2926 = vmatpush2.msra.mxu0 0.0
  %2927 = vmatprep.mubr.f32.mxu0 0.0
  %2928 = vmatmul.mubr.f32.gmra.mxu0 %v2745
  %v2929 = vpop.f32.mrf.mxu0
  %v2930 = vadd.f32 0.0, %v2929
  %v2931 = vpop.f32.mrf.mxu0
  %2932 = vmatprep.mubr.f32.mxu0 0.0
  %2933 = vmatmul.mubr.f32.gmra.mxu0 %v2748
  %v2934 = vpop.f32.mrf.mxu0
  %v2935 = vadd.f32 0.0, %v2934
  %v2936 = vpop.f32.mrf.mxu0
  %2937 = vmatprep.mubr.f32.mxu0 0.0
  %2938 = vmatmul.mubr.f32.gmra.mxu0 %v2751
  %v2939 = vpop.f32.mrf.mxu0
  %v2940 = vadd.f32 0.0, %v2939
  %v2941 = vpop.f32.mrf.mxu0
  %2942 = vmatprep.mubr.f32.mxu0 0.0
  %2943 = vmatmul.mubr.f32.gmra.mxu0 %v2754
  %v2944 = vpop.f32.mrf.mxu0
  %v2945 = vadd.f32 0.0, %v2944
  %v2946 = vpop.f32.mrf.mxu0
  %2947 = vmatprep.mubr.f32.mxu0 0.0
  %2948 = vmatmul.mubr.f32.gmra.mxu0 %v2757
  %v2949 = vpop.f32.mrf.mxu0
  %v2950 = vadd.f32 0.0, %v2949
  %v2951 = vpop.f32.mrf.mxu0
  %2952 = vmatprep.mubr.f32.mxu0 0.0
  %2953 = vmatmul.mubr.f32.gmra.mxu0 %v2760
  %v2954 = vpop.f32.mrf.mxu0
  %v2955 = vadd.f32 0.0, %v2954
  %v2956 = vpop.f32.mrf.mxu0
  %2957 = vdwg.mxu0
  %v2958 = vlaneseq
  %v2959 = vshrl.u32 %v2958, 7
  %v2960 = vsub.s32 0, %v2959
  %v2961 = vrot.slane %v2713, %v2960
  %v2962 = vadd.f32 %v2706, %v2961
  %v2963 = vadd.f32 %v2707, %v2961
  %v2964 = vadd.f32 %v2708, %v2961
  %v2965 = vadd.f32 %v2709, %v2961
  %v2966 = vadd.f32 %v2710, %v2961
  %v2967 = vadd.f32 %v2711, %v2961
  %v2968 = vmul.f32 %v2829, 0.4204482
  %v2969 = vmul.f32 %v2835, 0.4204482
  %v2970 = vmul.f32 %v2841, 0.4204482
  %v2971 = vmul.f32 %v2847, 0.4204482
  %v2972 = vmul.f32 %v2853, 0.4204482
  %v2973 = vmul.f32 %v2859, 0.4204482
  %v2974 = vmul.f32 %v2831, 0.4204482
  %v2975 = vmul.f32 %v2837, 0.4204482
  %v2976 = vmul.f32 %v2843, 0.4204482
  %v2977 = vmul.f32 %v2849, 0.4204482
  %v2978 = vmul.f32 %v2855, 0.4204482
  %v2979 = vmul.f32 %v2861, 0.4204482
  %v2981 = vsel %vm206, %v2968, 0
  %v2984 = vsel %vm206, %v2969, 0
  %v2987 = vsel %vm206, %v2970, 0
  %v2990 = vsel %vm206, %v2971, 0
  %v2993 = vsel %vm206, %v2972, 0
  %v2996 = vsel %vm206, %v2973, 0
  %v2999 = vsel %vm206, %v2974, 0
  %v3002 = vsel %vm206, %v2975, 0
  %v3005 = vsel %vm206, %v2976, 0
  %v3008 = vsel %vm206, %v2977, 0
  %v3011 = vsel %vm206, %v2978, 0
  %v3014 = vsel %vm206, %v2979, 0
  %3016 = vmatprep.subr.mxu0 0.0
  %3017 = vmatpush1.xpose.msra.mxu0 0.0
  %3018 = vmatprep.subr.mxu0 0.0
  %3019 = vmatpush1.xpose.msra.mxu0 0.0
  %3020 = vmatprep.subr.mxu0 0.0
  %3021 = vmatpush1.xpose.msra.mxu0 0.0
  %3022 = vmatprep.subr.mxu0 0.0
  %3023 = vmatpush1.xpose.msra.mxu0 0.0
  %3024 = vmatprep.subr.mxu0 0.0
  %3025 = vmatpush1.xpose.msra.mxu0 0.0
  %3026 = vmatprep.subr.mxu0 0.0
  %3027 = vmatpush1.xpose.msra.mxu0 0.0
  %3028 = vmatprep.subr.mxu0 0.0
  %3029 = vmatpush1.xpose.msra.mxu0 0.0
  %3030 = vmatprep.subr.mxu0 0.0
  %3031 = vmatpush1.xpose.msra.mxu0 0.0
  %3032 = vmatprep.subr.mxu0 0.0
  %3033 = vmatpush1.xpose.msra.mxu0 0.0
  %3034 = vmatprep.subr.mxu0 0.0
  %3035 = vmatpush1.xpose.msra.mxu0 0.0
  %3036 = vmatprep.subr.mxu0 0.0
  %3037 = vmatpush1.xpose.msra.mxu0 %v3014
  %3038 = vmatprep.subr.mxu0 0.0
  %3039 = vmatpush1.xpose.msra.mxu0 %v3011
  %3040 = vmatprep.subr.mxu0 0.0
  %3041 = vmatpush1.xpose.msra.mxu0 %v3008
  %3042 = vmatprep.subr.mxu0 0.0
  %3043 = vmatpush1.xpose.msra.mxu0 %v3005
  %3044 = vmatprep.subr.mxu0 0.0
  %3045 = vmatpush1.xpose.msra.mxu0 %v3002
  %3046 = vmatprep.subr.mxu0 0.0
  %3047 = vmatpush1.xpose.msra.mxu0 %v2999
  %3048 = vmatprep.subr.mxu0 0.0
  %3049 = vmatpush2.xpose.msra.mxu0 0.0
  %3050 = vmatprep.subr.mxu0 0.0
  %3051 = vmatpush2.xpose.msra.mxu0 0.0
  %3052 = vmatprep.subr.mxu0 0.0
  %3053 = vmatpush2.xpose.msra.mxu0 0.0
  %3054 = vmatprep.subr.mxu0 0.0
  %3055 = vmatpush2.xpose.msra.mxu0 0.0
  %3056 = vmatprep.subr.mxu0 0.0
  %3057 = vmatpush2.xpose.msra.mxu0 0.0
  %3058 = vmatprep.subr.mxu0 0.0
  %3059 = vmatpush2.xpose.msra.mxu0 0.0
  %3060 = vmatprep.subr.mxu0 0.0
  %3061 = vmatpush2.xpose.msra.mxu0 0.0
  %3062 = vmatprep.subr.mxu0 0.0
  %3063 = vmatpush2.xpose.msra.mxu0 0.0
  %3064 = vmatprep.subr.mxu0 0.0
  %3065 = vmatpush2.xpose.msra.mxu0 0.0
  %3066 = vmatprep.subr.mxu0 0.0
  %3067 = vmatpush2.xpose.msra.mxu0 0.0
  %3068 = vmatprep.subr.mxu0 0.0
  %3069 = vmatpush2.xpose.msra.mxu0 0.0
  %3070 = vmatprep.subr.mxu0 0.0
  %3071 = vmatpush2.xpose.msra.mxu0 0.0
  %3072 = vmatprep.subr.mxu0 0.0
  %3073 = vmatpush2.xpose.msra.mxu0 0.0
  %3074 = vmatprep.subr.mxu0 0.0
  %3075 = vmatpush2.xpose.msra.mxu0 0.0
  %3076 = vmatprep.subr.mxu0 0.0
  %3077 = vmatpush2.xpose.msra.mxu0 0.0
  %3078 = vmatprep.subr.mxu0 0.0
  %3079 = vmatpush2.xpose.msra.mxu0 0.0
  %3080 = vmatprep.mubr.f32.mxu0 0.0
  %3081 = vmatmul.mubr.f32.gmra.mxu0 %v2981
  %v3082 = vpop.f32.mrf.mxu0
  %v3083 = vadd.f32 %v38, %v3082
  %v3084 = vpop.f32.mrf.mxu0
  %3085 = vmatprep.mubr.f32.mxu0 0.0
  %3086 = vmatmul.mubr.f32.gmra.mxu0 %v2984
  %v3087 = vpop.f32.mrf.mxu0
  %v3088 = vadd.f32 %v39, %v3087
  %v3089 = vpop.f32.mrf.mxu0
  %3090 = vmatprep.mubr.f32.mxu0 0.0
  %3091 = vmatmul.mubr.f32.gmra.mxu0 %v2987
  %v3092 = vpop.f32.mrf.mxu0
  %v3093 = vadd.f32 %v40, %v3092
  %v3094 = vpop.f32.mrf.mxu0
  %3095 = vmatprep.mubr.f32.mxu0 0.0
  %3096 = vmatmul.mubr.f32.gmra.mxu0 %v2990
  %v3097 = vpop.f32.mrf.mxu0
  %v3098 = vadd.f32 %v41, %v3097
  %v3099 = vpop.f32.mrf.mxu0
  %3100 = vmatprep.mubr.f32.mxu0 0.0
  %3101 = vmatmul.mubr.f32.gmra.mxu0 %v2993
  %v3102 = vpop.f32.mrf.mxu0
  %v3103 = vadd.f32 %v42, %v3102
  %v3104 = vpop.f32.mrf.mxu0
  %3105 = vmatprep.mubr.f32.mxu0 0.0
  %3106 = vmatmul.mubr.f32.gmra.mxu0 %v2996
  %v3107 = vpop.f32.mrf.mxu0
  %v3108 = vadd.f32 %v43, %v3107
  %v3109 = vpop.f32.mrf.mxu0
  %3110 = vdwg.mxu0
  %v3111 = vsel %vm574, %v3083, -inf
  %3112 = vmax.xlane.f32.xlu0 %v3111
  %v3113 = vpop.xlane.xlu0 %3112
  %v3114 = vsel %vm574, %v3088, -inf
  %3115 = vmax.xlane.f32.xlu0 %v3114
  %v3116 = vpop.xlane.xlu0 %3115
  %v3117 = vsel %vm574, %v3093, -inf
  %3118 = vmax.xlane.f32.xlu0 %v3117
  %v3119 = vpop.xlane.xlu0 %3118
  %v3120 = vsel %vm574, %v3098, -inf
  %3121 = vmax.xlane.f32.xlu0 %v3120
  %v3122 = vpop.xlane.xlu0 %3121
  %v3123 = vsel %vm574, %v3103, -inf
  %3124 = vmax.xlane.f32.xlu0 %v3123
  %v3125 = vpop.xlane.xlu0 %3124
  %v3126 = vsel %vm590, %v3108, -inf
  %3127 = vmax.xlane.f32.xlu0 %v3126
  %v3128 = vpop.xlane.xlu0 %3127
  %v3129 = vsub.f32 %v3083, %v3113
  %v3130 = vsub.f32 %v3088, %v3116
  %v3131 = vsub.f32 %v3093, %v3119
  %v3132 = vsub.f32 %v3098, %v3122
  %v3133 = vsub.f32 %v3103, %v3125
  %v3134 = vsub.f32 %v3108, %v3128
  %v3135 = vmul.f32 %v3129, 1.442695
  %v3136 = vpow.pop %v3135
  %v3137 = vmul.f32 %v3130, 1.442695
  %v3138 = vpow.pop %v3137
  %v3139 = vmul.f32 %v3131, 1.442695
  %v3140 = vpow.pop %v3139
  %v3141 = vmul.f32 %v3132, 1.442695
  %v3142 = vpow.pop %v3141
  %v3143 = vmul.f32 %v3133, 1.442695
  %v3144 = vpow.pop %v3143
  %v3145 = vmul.f32 %v3134, 1.442695
  %v3146 = vpow.pop %v3145
  %v3147 = vsel %vm574, %v3136, 0.0
  %3148 = vadd.xlane.f32.xlu0 %v3147
  %v3149 = vpop.xlane.xlu0 %3148
  %v3150 = vsel %vm574, %v3138, 0.0
  %3151 = vadd.xlane.f32.xlu0 %v3150
  %v3152 = vpop.xlane.xlu0 %3151
  %v3153 = vsel %vm574, %v3140, 0.0
  %3154 = vadd.xlane.f32.xlu0 %v3153
  %v3155 = vpop.xlane.xlu0 %3154
  %v3156 = vsel %vm574, %v3142, 0.0
  %3157 = vadd.xlane.f32.xlu0 %v3156
  %v3158 = vpop.xlane.xlu0 %3157
  %v3159 = vsel %vm574, %v3144, 0.0
  %3160 = vadd.xlane.f32.xlu0 %v3159
  %v3161 = vpop.xlane.xlu0 %3160
  %v3162 = vsel %vm590, %v3146, 0.0
  %3163 = vadd.xlane.f32.xlu0 %v3162
  %v3164 = vpop.xlane.xlu0 %3163
  %v3165 = vrcp.pop %v3149
  %v3166 = vrcp.pop %v3152
  %v3167 = vrcp.pop %v3155
  %v3168 = vrcp.pop %v3158
  %v3169 = vrcp.pop %v3161
  %v3170 = vrcp.pop %v3164
  %v3171 = vmul.f32 %v3136, %v3165
  %v3172 = vmul.f32 %v3138, %v3166
  %v3173 = vmul.f32 %v3140, %v3167
  %v3174 = vmul.f32 %v3142, %v3168
  %v3175 = vmul.f32 %v3144, %v3169
  %v3176 = vmul.f32 %v3146, %v3170
  %v3178 = vsel %vm574, %v3171, 0
  %v3181 = vsel %vm574, %v3172, 0
  %v3184 = vsel %vm574, %v3173, 0
  %v3187 = vsel %vm574, %v3174, 0
  %v3190 = vsel %vm574, %v3175, 0
  %v3193 = vsel %vm574, %v3176, 0
  %v3196 = vsel %vm660, %v2955, 0
  %3198 = vmatprep.subr.mxu0 0.0
  %3199 = vmatpush1.msra.mxu0 0.0
  %3200 = vmatprep.subr.mxu0 0.0
  %3201 = vmatpush1.msra.mxu0 0.0
  %3202 = vmatprep.subr.mxu0 0.0
  %3203 = vmatpush1.msra.mxu0 0.0
  %3204 = vmatprep.subr.mxu0 0.0
  %3205 = vmatpush1.msra.mxu0 0.0
  %3206 = vmatprep.subr.mxu0 0.0
  %3207 = vmatpush1.msra.mxu0 0.0
  %3208 = vmatprep.subr.mxu0 0.0
  %3209 = vmatpush1.msra.mxu0 0.0
  %3210 = vmatprep.subr.mxu0 0.0
  %3211 = vmatpush1.msra.mxu0 0.0
  %3212 = vmatprep.subr.mxu0 0.0
  %3213 = vmatpush1.msra.mxu0 0.0
  %3214 = vmatprep.subr.mxu0 0.0
  %3215 = vmatpush1.msra.mxu0 0.0
  %3216 = vmatprep.subr.mxu0 0.0
  %3217 = vmatpush1.msra.mxu0 0.0
  %3218 = vmatprep.subr.mxu0 0.0
  %3219 = vmatpush1.msra.mxu0 %v3196
  %3220 = vmatprep.subr.mxu0 0.0
  %3221 = vmatpush1.msra.mxu0 %v2950
  %3222 = vmatprep.subr.mxu0 0.0
  %3223 = vmatpush1.msra.mxu0 %v2945
  %3224 = vmatprep.subr.mxu0 0.0
  %3225 = vmatpush1.msra.mxu0 %v2940
  %3226 = vmatprep.subr.mxu0 0.0
  %3227 = vmatpush1.msra.mxu0 %v2935
  %3228 = vmatprep.subr.mxu0 0.0
  %3229 = vmatpush1.msra.mxu0 %v2930
  %3230 = vmatprep.subr.mxu0 0.0
  %3231 = vmatpush2.msra.mxu0 0.0
  %3232 = vmatprep.subr.mxu0 0.0
  %3233 = vmatpush2.msra.mxu0 0.0
  %3234 = vmatprep.subr.mxu0 0.0
  %3235 = vmatpush2.msra.mxu0 0.0
  %3236 = vmatprep.subr.mxu0 0.0
  %3237 = vmatpush2.msra.mxu0 0.0
  %3238 = vmatprep.subr.mxu0 0.0
  %3239 = vmatpush2.msra.mxu0 0.0
  %3240 = vmatprep.subr.mxu0 0.0
  %3241 = vmatpush2.msra.mxu0 0.0
  %3242 = vmatprep.subr.mxu0 0.0
  %3243 = vmatpush2.msra.mxu0 0.0
  %3244 = vmatprep.subr.mxu0 0.0
  %3245 = vmatpush2.msra.mxu0 0.0
  %3246 = vmatprep.subr.mxu0 0.0
  %3247 = vmatpush2.msra.mxu0 0.0
  %3248 = vmatprep.subr.mxu0 0.0
  %3249 = vmatpush2.msra.mxu0 0.0
  %3250 = vmatprep.subr.mxu0 0.0
  %3251 = vmatpush2.msra.mxu0 0.0
  %3252 = vmatprep.subr.mxu0 0.0
  %3253 = vmatpush2.msra.mxu0 0.0
  %3254 = vmatprep.subr.mxu0 0.0
  %3255 = vmatpush2.msra.mxu0 0.0
  %3256 = vmatprep.subr.mxu0 0.0
  %3257 = vmatpush2.msra.mxu0 0.0
  %3258 = vmatprep.subr.mxu0 0.0
  %3259 = vmatpush2.msra.mxu0 0.0
  %3260 = vmatprep.subr.mxu0 0.0
  %3261 = vmatpush2.msra.mxu0 0.0
  %3262 = vmatprep.mubr.f32.mxu0 0.0
  %3263 = vmatmul.mubr.f32.gmra.mxu0 %v3178
  %v3264 = vpop.f32.mrf.mxu0
  %v3265 = vadd.f32 0.0, %v3264
  %v3266 = vpop.f32.mrf.mxu0
  %3267 = vmatprep.mubr.f32.mxu0 0.0
  %3268 = vmatmul.mubr.f32.gmra.mxu0 %v3181
  %v3269 = vpop.f32.mrf.mxu0
  %v3270 = vadd.f32 0.0, %v3269
  %v3271 = vpop.f32.mrf.mxu0
  %3272 = vmatprep.mubr.f32.mxu0 0.0
  %3273 = vmatmul.mubr.f32.gmra.mxu0 %v3184
  %v3274 = vpop.f32.mrf.mxu0
  %v3275 = vadd.f32 0.0, %v3274
  %v3276 = vpop.f32.mrf.mxu0
  %3277 = vmatprep.mubr.f32.mxu0 0.0
  %3278 = vmatmul.mubr.f32.gmra.mxu0 %v3187
  %v3279 = vpop.f32.mrf.mxu0
  %v3280 = vadd.f32 0.0, %v3279
  %v3281 = vpop.f32.mrf.mxu0
  %3282 = vmatprep.mubr.f32.mxu0 0.0
  %3283 = vmatmul.mubr.f32.gmra.mxu0 %v3190
  %v3284 = vpop.f32.mrf.mxu0
  %v3285 = vadd.f32 0.0, %v3284
  %v3286 = vpop.f32.mrf.mxu0
  %3287 = vmatprep.mubr.f32.mxu0 0.0
  %3288 = vmatmul.mubr.f32.gmra.mxu0 %v3193
  %v3289 = vpop.f32.mrf.mxu0
  %v3290 = vadd.f32 0.0, %v3289
  %v3291 = vpop.f32.mrf.mxu0
  %3292 = vdwg.mxu0
  %v3294 = vsel %vm206, %v3265, 0
  %v3297 = vsel %vm206, %v3270, 0
  %v3300 = vsel %vm206, %v3275, 0
  %v3303 = vsel %vm206, %v3280, 0
  %v3306 = vsel %vm206, %v3285, 0
  %v3309 = vsel %vm206, %v3290, 0
  %3311 = vmatprep.subr.mxu0 0.0
  %3312 = vmatpush1.msra.mxu0 0.0
  %3313 = vmatprep.subr.mxu0 0.0
  %3314 = vmatpush1.msra.mxu0 0.0
  %3315 = vmatprep.subr.mxu0 0.0
  %3316 = vmatpush1.msra.mxu0 0.0
  %3317 = vmatprep.subr.mxu0 0.0
  %3318 = vmatpush1.msra.mxu0 0.0
  %3319 = vmatprep.subr.mxu0 0.0
  %3320 = vmatpush1.msra.mxu0 0.0
  %3321 = vmatprep.subr.mxu0 0.0
  %3322 = vmatpush1.msra.mxu0 0.0
  %3323 = vmatprep.subr.mxu0 0.0
  %3324 = vmatpush1.msra.mxu0 0.0
  %3325 = vmatprep.subr.mxu0 0.0
  %3326 = vmatpush1.msra.mxu0 0.0
  %3327 = vmatprep.subr.mxu0 0.0
  %3328 = vmatpush1.msra.mxu0 0.0
  %3329 = vmatprep.subr.mxu0 0.0
  %3330 = vmatpush1.msra.mxu0 0.0
  %3331 = vmatprep.subr.mxu0 0.0
  %3332 = vmatpush1.msra.mxu0 0.0
  %3333 = vmatprep.subr.mxu0 0.0
  %3334 = vmatpush1.msra.mxu0 0.0
  %3335 = vmatprep.subr.mxu0 0.0
  %3336 = vmatpush1.msra.mxu0 %v2718
  %3337 = vmatprep.subr.mxu0 0.0
  %3338 = vmatpush1.msra.mxu0 %v2717
  %3339 = vmatprep.subr.mxu0 0.0
  %3340 = vmatpush1.msra.mxu0 %v2716
  %3341 = vmatprep.subr.mxu0 0.0
  %3342 = vmatpush1.msra.mxu0 %v2715
  %3343 = vmatprep.subr.mxu0 0.0
  %3344 = vmatpush2.msra.mxu0 0.0
  %3345 = vmatprep.subr.mxu0 0.0
  %3346 = vmatpush2.msra.mxu0 0.0
  %3347 = vmatprep.subr.mxu0 0.0
  %3348 = vmatpush2.msra.mxu0 0.0
  %3349 = vmatprep.subr.mxu0 0.0
  %3350 = vmatpush2.msra.mxu0 0.0
  %3351 = vmatprep.subr.mxu0 0.0
  %3352 = vmatpush2.msra.mxu0 0.0
  %3353 = vmatprep.subr.mxu0 0.0
  %3354 = vmatpush2.msra.mxu0 0.0
  %3355 = vmatprep.subr.mxu0 0.0
  %3356 = vmatpush2.msra.mxu0 0.0
  %3357 = vmatprep.subr.mxu0 0.0
  %3358 = vmatpush2.msra.mxu0 0.0
  %3359 = vmatprep.subr.mxu0 0.0
  %3360 = vmatpush2.msra.mxu0 0.0
  %3361 = vmatprep.subr.mxu0 0.0
  %3362 = vmatpush2.msra.mxu0 0.0
  %3363 = vmatprep.subr.mxu0 0.0
  %3364 = vmatpush2.msra.mxu0 0.0
  %3365 = vmatprep.subr.mxu0 0.0
  %3366 = vmatpush2.msra.mxu0 0.0
  %3367 = vmatprep.subr.mxu0 0.0
  %3368 = vmatpush2.msra.mxu0 0.0
  %3369 = vmatprep.subr.mxu0 0.0
  %3370 = vmatpush2.msra.mxu0 0.0
  %3371 = vmatprep.subr.mxu0 0.0
  %3372 = vmatpush2.msra.mxu0 0.0
  %3373 = vmatprep.subr.mxu0 0.0
  %3374 = vmatpush2.msra.mxu0 0.0
  %3375 = vmatprep.mubr.f32.mxu0 0.0
  %3376 = vmatmul.mubr.f32.gmra.mxu0 %v3294
  %v3377 = vpop.f32.mrf.mxu0
  %v3378 = vadd.f32 0.0, %v3377
  %v3379 = vpop.f32.mrf.mxu0
  %3380 = vmatprep.mubr.f32.mxu0 0.0
  %3381 = vmatmul.mubr.f32.gmra.mxu0 %v3297
  %v3382 = vpop.f32.mrf.mxu0
  %v3383 = vadd.f32 0.0, %v3382
  %v3384 = vpop.f32.mrf.mxu0
  %3385 = vmatprep.mubr.f32.mxu0 0.0
  %3386 = vmatmul.mubr.f32.gmra.mxu0 %v3300
  %v3387 = vpop.f32.mrf.mxu0
  %v3388 = vadd.f32 0.0, %v3387
  %v3389 = vpop.f32.mrf.mxu0
  %3390 = vmatprep.mubr.f32.mxu0 0.0
  %3391 = vmatmul.mubr.f32.gmra.mxu0 %v3303
  %v3392 = vpop.f32.mrf.mxu0
  %v3393 = vadd.f32 0.0, %v3392
  %v3394 = vpop.f32.mrf.mxu0
  %3395 = vmatprep.mubr.f32.mxu0 0.0
  %3396 = vmatmul.mubr.f32.gmra.mxu0 %v3306
  %v3397 = vpop.f32.mrf.mxu0
  %v3398 = vadd.f32 0.0, %v3397
  %v3399 = vpop.f32.mrf.mxu0
  %3400 = vmatprep.mubr.f32.mxu0 0.0
  %3401 = vmatmul.mubr.f32.gmra.mxu0 %v3309
  %v3402 = vpop.f32.mrf.mxu0
  %v3403 = vadd.f32 0.0, %v3402
  %v3404 = vpop.f32.mrf.mxu0
  %3405 = vdwg.mxu0
  %v3406 = vadd.f32 %v2962, %v3378
  %v3407 = vadd.f32 %v2963, %v3383
  %v3408 = vadd.f32 %v2964, %v3388
  %v3409 = vadd.f32 %v2965, %v3393
  %v3410 = vadd.f32 %v2966, %v3398
  %v3411 = vadd.f32 %v2967, %v3403
  %3412 = vrot.lane.b32.xlu0 %v2968, 96
  %v3413 = vpop.permute.xlu0 %3412
  %3414 = vrot.lane.b32.xlu0 %v2969, 96
  %v3415 = vpop.permute.xlu0 %3414
  %3416 = vrot.lane.b32.xlu0 %v2970, 96
  %v3417 = vpop.permute.xlu0 %3416
  %3418 = vrot.lane.b32.xlu0 %v2971, 96
  %v3419 = vpop.permute.xlu0 %3418
  %3420 = vrot.lane.b32.xlu0 %v2972, 96
  %v3421 = vpop.permute.xlu0 %3420
  %3422 = vrot.lane.b32.xlu0 %v2973, 96
  %v3423 = vpop.permute.xlu0 %3422
  %3424 = vrot.lane.b32.xlu0 %v2974, 96
  %v3425 = vpop.permute.xlu0 %3424
  %3426 = vrot.lane.b32.xlu0 %v2975, 96
  %v3427 = vpop.permute.xlu0 %3426
  %3428 = vrot.lane.b32.xlu0 %v2976, 96
  %v3429 = vpop.permute.xlu0 %3428
  %3430 = vrot.lane.b32.xlu0 %v2977, 96
  %v3431 = vpop.permute.xlu0 %3430
  %3432 = vrot.lane.b32.xlu0 %v2978, 96
  %v3433 = vpop.permute.xlu0 %3432
  %3434 = vrot.lane.b32.xlu0 %v2979, 96
  %v3435 = vpop.permute.xlu0 %3434
  %v3436 = vsel %vm206, %v3413, 0
  %v3438 = vsel %vm206, %v3415, 0
  %v3440 = vsel %vm206, %v3417, 0
  %v3442 = vsel %vm206, %v3419, 0
  %v3444 = vsel %vm206, %v3421, 0
  %v3446 = vsel %vm206, %v3423, 0
  %v3448 = vsel %vm206, %v3425, 0
  %v3450 = vsel %vm206, %v3427, 0
  %v3452 = vsel %vm206, %v3429, 0
  %v3454 = vsel %vm206, %v3431, 0
  %v3456 = vsel %vm206, %v3433, 0
  %v3458 = vsel %vm206, %v3435, 0
  %3460 = vmatprep.subr.mxu0 0.0
  %3461 = vmatpush1.xpose.msra.mxu0 0.0
  %3462 = vmatprep.subr.mxu0 0.0
  %3463 = vmatpush1.xpose.msra.mxu0 0.0
  %3464 = vmatprep.subr.mxu0 0.0
  %3465 = vmatpush1.xpose.msra.mxu0 0.0
  %3466 = vmatprep.subr.mxu0 0.0
  %3467 = vmatpush1.xpose.msra.mxu0 0.0
  %3468 = vmatprep.subr.mxu0 0.0
  %3469 = vmatpush1.xpose.msra.mxu0 0.0
  %3470 = vmatprep.subr.mxu0 0.0
  %3471 = vmatpush1.xpose.msra.mxu0 0.0
  %3472 = vmatprep.subr.mxu0 0.0
  %3473 = vmatpush1.xpose.msra.mxu0 0.0
  %3474 = vmatprep.subr.mxu0 0.0
  %3475 = vmatpush1.xpose.msra.mxu0 0.0
  %3476 = vmatprep.subr.mxu0 0.0
  %3477 = vmatpush1.xpose.msra.mxu0 0.0
  %3478 = vmatprep.subr.mxu0 0.0
  %3479 = vmatpush1.xpose.msra.mxu0 0.0
  %3480 = vmatprep.subr.mxu0 0.0
  %3481 = vmatpush1.xpose.msra.mxu0 %v3458
  %3482 = vmatprep.subr.mxu0 0.0
  %3483 = vmatpush1.xpose.msra.mxu0 %v3456
  %3484 = vmatprep.subr.mxu0 0.0
  %3485 = vmatpush1.xpose.msra.mxu0 %v3454
  %3486 = vmatprep.subr.mxu0 0.0
  %3487 = vmatpush1.xpose.msra.mxu0 %v3452
  %3488 = vmatprep.subr.mxu0 0.0
  %3489 = vmatpush1.xpose.msra.mxu0 %v3450
  %3490 = vmatprep.subr.mxu0 0.0
  %3491 = vmatpush1.xpose.msra.mxu0 %v3448
  %3492 = vmatprep.subr.mxu0 0.0
  %3493 = vmatpush2.xpose.msra.mxu0 0.0
  %3494 = vmatprep.subr.mxu0 0.0
  %3495 = vmatpush2.xpose.msra.mxu0 0.0
  %3496 = vmatprep.subr.mxu0 0.0
  %3497 = vmatpush2.xpose.msra.mxu0 0.0
  %3498 = vmatprep.subr.mxu0 0.0
  %3499 = vmatpush2.xpose.msra.mxu0 0.0
  %3500 = vmatprep.subr.mxu0 0.0
  %3501 = vmatpush2.xpose.msra.mxu0 0.0
  %3502 = vmatprep.subr.mxu0 0.0
  %3503 = vmatpush2.xpose.msra.mxu0 0.0
  %3504 = vmatprep.subr.mxu0 0.0
  %3505 = vmatpush2.xpose.msra.mxu0 0.0
  %3506 = vmatprep.subr.mxu0 0.0
  %3507 = vmatpush2.xpose.msra.mxu0 0.0
  %3508 = vmatprep.subr.mxu0 0.0
  %3509 = vmatpush2.xpose.msra.mxu0 0.0
  %3510 = vmatprep.subr.mxu0 0.0
  %3511 = vmatpush2.xpose.msra.mxu0 0.0
  %3512 = vmatprep.subr.mxu0 0.0
  %3513 = vmatpush2.xpose.msra.mxu0 0.0
  %3514 = vmatprep.subr.mxu0 0.0
  %3515 = vmatpush2.xpose.msra.mxu0 0.0
  %3516 = vmatprep.subr.mxu0 0.0
  %3517 = vmatpush2.xpose.msra.mxu0 0.0
  %3518 = vmatprep.subr.mxu0 0.0
  %3519 = vmatpush2.xpose.msra.mxu0 0.0
  %3520 = vmatprep.subr.mxu0 0.0
  %3521 = vmatpush2.xpose.msra.mxu0 0.0
  %3522 = vmatprep.subr.mxu0 0.0
  %3523 = vmatpush2.xpose.msra.mxu0 0.0
  %3524 = vmatprep.mubr.f32.mxu0 0.0
  %3525 = vmatmul.mubr.f32.gmra.mxu0 %v3436
  %v3526 = vpop.f32.mrf.mxu0
  %v3527 = vadd.f32 %v38, %v3526
  %v3528 = vpop.f32.mrf.mxu0
  %3529 = vmatprep.mubr.f32.mxu0 0.0
  %3530 = vmatmul.mubr.f32.gmra.mxu0 %v3438
  %v3531 = vpop.f32.mrf.mxu0
  %v3532 = vadd.f32 %v39, %v3531
  %v3533 = vpop.f32.mrf.mxu0
  %3534 = vmatprep.mubr.f32.mxu0 0.0
  %3535 = vmatmul.mubr.f32.gmra.mxu0 %v3440
  %v3536 = vpop.f32.mrf.mxu0
  %v3537 = vadd.f32 %v40, %v3536
  %v3538 = vpop.f32.mrf.mxu0
  %3539 = vmatprep.mubr.f32.mxu0 0.0
  %3540 = vmatmul.mubr.f32.gmra.mxu0 %v3442
  %v3541 = vpop.f32.mrf.mxu0
  %v3542 = vadd.f32 %v41, %v3541
  %v3543 = vpop.f32.mrf.mxu0
  %3544 = vmatprep.mubr.f32.mxu0 0.0
  %3545 = vmatmul.mubr.f32.gmra.mxu0 %v3444
  %v3546 = vpop.f32.mrf.mxu0
  %v3547 = vadd.f32 %v42, %v3546
  %v3548 = vpop.f32.mrf.mxu0
  %3549 = vmatprep.mubr.f32.mxu0 0.0
  %3550 = vmatmul.mubr.f32.gmra.mxu0 %v3446
  %v3551 = vpop.f32.mrf.mxu0
  %v3552 = vadd.f32 %v43, %v3551
  %v3553 = vpop.f32.mrf.mxu0
  %3554 = vdwg.mxu0
  %v3555 = vsel %vm574, %v3527, -inf
  %3556 = vmax.xlane.f32.xlu0 %v3555
  %v3557 = vpop.xlane.xlu0 %3556
  %v3558 = vsel %vm574, %v3532, -inf
  %3559 = vmax.xlane.f32.xlu0 %v3558
  %v3560 = vpop.xlane.xlu0 %3559
  %v3561 = vsel %vm574, %v3537, -inf
  %3562 = vmax.xlane.f32.xlu0 %v3561
  %v3563 = vpop.xlane.xlu0 %3562
  %v3564 = vsel %vm574, %v3542, -inf
  %3565 = vmax.xlane.f32.xlu0 %v3564
  %v3566 = vpop.xlane.xlu0 %3565
  %v3567 = vsel %vm574, %v3547, -inf
  %3568 = vmax.xlane.f32.xlu0 %v3567
  %v3569 = vpop.xlane.xlu0 %3568
  %v3570 = vsel %vm590, %v3552, -inf
  %3571 = vmax.xlane.f32.xlu0 %v3570
  %v3572 = vpop.xlane.xlu0 %3571
  %v3573 = vsub.f32 %v3527, %v3557
  %v3574 = vsub.f32 %v3532, %v3560
  %v3575 = vsub.f32 %v3537, %v3563
  %v3576 = vsub.f32 %v3542, %v3566
  %v3577 = vsub.f32 %v3547, %v3569
  %v3578 = vsub.f32 %v3552, %v3572
  %v3579 = vmul.f32 %v3573, 1.442695
  %v3580 = vpow.pop %v3579
  %v3581 = vmul.f32 %v3574, 1.442695
  %v3582 = vpow.pop %v3581
  %v3583 = vmul.f32 %v3575, 1.442695
  %v3584 = vpow.pop %v3583
  %v3585 = vmul.f32 %v3576, 1.442695
  %v3586 = vpow.pop %v3585
  %v3587 = vmul.f32 %v3577, 1.442695
  %v3588 = vpow.pop %v3587
  %v3589 = vmul.f32 %v3578, 1.442695
  %v3590 = vpow.pop %v3589
  %v3591 = vsel %vm574, %v3580, 0.0
  %3592 = vadd.xlane.f32.xlu0 %v3591
  %v3593 = vpop.xlane.xlu0 %3592
  %v3594 = vsel %vm574, %v3582, 0.0
  %3595 = vadd.xlane.f32.xlu0 %v3594
  %v3596 = vpop.xlane.xlu0 %3595
  %v3597 = vsel %vm574, %v3584, 0.0
  %3598 = vadd.xlane.f32.xlu0 %v3597
  %v3599 = vpop.xlane.xlu0 %3598
  %v3600 = vsel %vm574, %v3586, 0.0
  %3601 = vadd.xlane.f32.xlu0 %v3600
  %v3602 = vpop.xlane.xlu0 %3601
  %v3603 = vsel %vm574, %v3588, 0.0
  %3604 = vadd.xlane.f32.xlu0 %v3603
  %v3605 = vpop.xlane.xlu0 %3604
  %v3606 = vsel %vm590, %v3590, 0.0
  %3607 = vadd.xlane.f32.xlu0 %v3606
  %v3608 = vpop.xlane.xlu0 %3607
  %v3609 = vrcp.pop %v3593
  %v3610 = vrcp.pop %v3596
  %v3611 = vrcp.pop %v3599
  %v3612 = vrcp.pop %v3602
  %v3613 = vrcp.pop %v3605
  %v3614 = vrcp.pop %v3608
  %v3615 = vmul.f32 %v3580, %v3609
  %v3616 = vmul.f32 %v3582, %v3610
  %v3617 = vmul.f32 %v3584, %v3611
  %v3618 = vmul.f32 %v3586, %v3612
  %v3619 = vmul.f32 %v3588, %v3613
  %v3620 = vmul.f32 %v3590, %v3614
  %3626 = vrot.lane.b32.xlu0 %v2930, 96
  %v3627 = vpop.permute.xlu0 %3626
  %3628 = vrot.lane.b32.xlu0 %v2935, 96
  %v3629 = vpop.permute.xlu0 %3628
  %3630 = vrot.lane.b32.xlu0 %v2940, 96
  %v3631 = vpop.permute.xlu0 %3630
  %3632 = vrot.lane.b32.xlu0 %v2945, 96
  %v3633 = vpop.permute.xlu0 %3632
  %3634 = vrot.lane.b32.xlu0 %v2950, 96
  %v3635 = vpop.permute.xlu0 %3634
  %3636 = vrot.lane.b32.xlu0 %v2955, 96
  %v3637 = vpop.permute.xlu0 %3636
  %v3644 = vsel %vm574, %v3615, 0
  %v3647 = vsel %vm574, %v3616, 0
  %v3650 = vsel %vm574, %v3617, 0
  %v3653 = vsel %vm574, %v3618, 0
  %v3656 = vsel %vm574, %v3619, 0
  %v3659 = vsel %vm574, %v3620, 0
  %v3661 = vsel %vm660, %v3637, 0
  %3663 = vmatprep.subr.mxu0 0.0
  %3664 = vmatpush1.msra.mxu0 0.0
  %3665 = vmatprep.subr.mxu0 0.0
  %3666 = vmatpush1.msra.mxu0 0.0
  %3667 = vmatprep.subr.mxu0 0.0
  %3668 = vmatpush1.msra.mxu0 0.0
  %3669 = vmatprep.subr.mxu0 0.0
  %3670 = vmatpush1.msra.mxu0 0.0
  %3671 = vmatprep.subr.mxu0 0.0
  %3672 = vmatpush1.msra.mxu0 0.0
  %3673 = vmatprep.subr.mxu0 0.0
  %3674 = vmatpush1.msra.mxu0 0.0
  %3675 = vmatprep.subr.mxu0 0.0
  %3676 = vmatpush1.msra.mxu0 0.0
  %3677 = vmatprep.subr.mxu0 0.0
  %3678 = vmatpush1.msra.mxu0 0.0
  %3679 = vmatprep.subr.mxu0 0.0
  %3680 = vmatpush1.msra.mxu0 0.0
  %3681 = vmatprep.subr.mxu0 0.0
  %3682 = vmatpush1.msra.mxu0 0.0
  %3683 = vmatprep.subr.mxu0 0.0
  %3684 = vmatpush1.msra.mxu0 %v3661
  %3685 = vmatprep.subr.mxu0 0.0
  %3686 = vmatpush1.msra.mxu0 %v3635
  %3687 = vmatprep.subr.mxu0 0.0
  %3688 = vmatpush1.msra.mxu0 %v3633
  %3689 = vmatprep.subr.mxu0 0.0
  %3690 = vmatpush1.msra.mxu0 %v3631
  %3691 = vmatprep.subr.mxu0 0.0
  %3692 = vmatpush1.msra.mxu0 %v3629
  %3693 = vmatprep.subr.mxu0 0.0
  %3694 = vmatpush1.msra.mxu0 %v3627
  %3695 = vmatprep.subr.mxu0 0.0
  %3696 = vmatpush2.msra.mxu0 0.0
  %3697 = vmatprep.subr.mxu0 0.0
  %3698 = vmatpush2.msra.mxu0 0.0
  %3699 = vmatprep.subr.mxu0 0.0
  %3700 = vmatpush2.msra.mxu0 0.0
  %3701 = vmatprep.subr.mxu0 0.0
  %3702 = vmatpush2.msra.mxu0 0.0
  %3703 = vmatprep.subr.mxu0 0.0
  %3704 = vmatpush2.msra.mxu0 0.0
  %3705 = vmatprep.subr.mxu0 0.0
  %3706 = vmatpush2.msra.mxu0 0.0
  %3707 = vmatprep.subr.mxu0 0.0
  %3708 = vmatpush2.msra.mxu0 0.0
  %3709 = vmatprep.subr.mxu0 0.0
  %3710 = vmatpush2.msra.mxu0 0.0
  %3711 = vmatprep.subr.mxu0 0.0
  %3712 = vmatpush2.msra.mxu0 0.0
  %3713 = vmatprep.subr.mxu0 0.0
  %3714 = vmatpush2.msra.mxu0 0.0
  %3715 = vmatprep.subr.mxu0 0.0
  %3716 = vmatpush2.msra.mxu0 0.0
  %3717 = vmatprep.subr.mxu0 0.0
  %3718 = vmatpush2.msra.mxu0 0.0
  %3719 = vmatprep.subr.mxu0 0.0
  %3720 = vmatpush2.msra.mxu0 0.0
  %3721 = vmatprep.subr.mxu0 0.0
  %3722 = vmatpush2.msra.mxu0 0.0
  %3723 = vmatprep.subr.mxu0 0.0
  %3724 = vmatpush2.msra.mxu0 0.0
  %3725 = vmatprep.subr.mxu0 0.0
  %3726 = vmatpush2.msra.mxu0 0.0
  %3727 = vmatprep.mubr.f32.mxu0 0.0
  %3728 = vmatmul.mubr.f32.gmra.mxu0 %v3644
  %v3729 = vpop.f32.mrf.mxu0
  %v3730 = vadd.f32 0.0, %v3729
  %v3731 = vpop.f32.mrf.mxu0
  %3732 = vmatprep.mubr.f32.mxu0 0.0
  %3733 = vmatmul.mubr.f32.gmra.mxu0 %v3647
  %v3734 = vpop.f32.mrf.mxu0
  %v3735 = vadd.f32 0.0, %v3734
  %v3736 = vpop.f32.mrf.mxu0
  %3737 = vmatprep.mubr.f32.mxu0 0.0
  %3738 = vmatmul.mubr.f32.gmra.mxu0 %v3650
  %v3739 = vpop.f32.mrf.mxu0
  %v3740 = vadd.f32 0.0, %v3739
  %v3741 = vpop.f32.mrf.mxu0
  %3742 = vmatprep.mubr.f32.mxu0 0.0
  %3743 = vmatmul.mubr.f32.gmra.mxu0 %v3653
  %v3744 = vpop.f32.mrf.mxu0
  %v3745 = vadd.f32 0.0, %v3744
  %v3746 = vpop.f32.mrf.mxu0
  %3747 = vmatprep.mubr.f32.mxu0 0.0
  %3748 = vmatmul.mubr.f32.gmra.mxu0 %v3656
  %v3749 = vpop.f32.mrf.mxu0
  %v3750 = vadd.f32 0.0, %v3749
  %v3751 = vpop.f32.mrf.mxu0
  %3752 = vmatprep.mubr.f32.mxu0 0.0
  %3753 = vmatmul.mubr.f32.gmra.mxu0 %v3659
  %v3754 = vpop.f32.mrf.mxu0
  %v3755 = vadd.f32 0.0, %v3754
  %v3756 = vpop.f32.mrf.mxu0
  %3757 = vdwg.mxu0
  %v3759 = vsel %vm206, %v3730, 0
  %v3762 = vsel %vm206, %v3735, 0
  %v3765 = vsel %vm206, %v3740, 0
  %v3768 = vsel %vm206, %v3745, 0
  %v3771 = vsel %vm206, %v3750, 0
  %v3774 = vsel %vm206, %v3755, 0
  %3776 = vmatprep.subr.mxu0 0.0
  %3777 = vmatpush1.msra.mxu0 0.0
  %3778 = vmatprep.subr.mxu0 0.0
  %3779 = vmatpush1.msra.mxu0 0.0
  %3780 = vmatprep.subr.mxu0 0.0
  %3781 = vmatpush1.msra.mxu0 0.0
  %3782 = vmatprep.subr.mxu0 0.0
  %3783 = vmatpush1.msra.mxu0 0.0
  %3784 = vmatprep.subr.mxu0 0.0
  %3785 = vmatpush1.msra.mxu0 0.0
  %3786 = vmatprep.subr.mxu0 0.0
  %3787 = vmatpush1.msra.mxu0 0.0
  %3788 = vmatprep.subr.mxu0 0.0
  %3789 = vmatpush1.msra.mxu0 0.0
  %3790 = vmatprep.subr.mxu0 0.0
  %3791 = vmatpush1.msra.mxu0 0.0
  %3792 = vmatprep.subr.mxu0 0.0
  %3793 = vmatpush1.msra.mxu0 0.0
  %3794 = vmatprep.subr.mxu0 0.0
  %3795 = vmatpush1.msra.mxu0 0.0
  %3796 = vmatprep.subr.mxu0 0.0
  %3797 = vmatpush1.msra.mxu0 0.0
  %3798 = vmatprep.subr.mxu0 0.0
  %3799 = vmatpush1.msra.mxu0 0.0
  %3800 = vmatprep.subr.mxu0 0.0
  %3801 = vmatpush1.msra.mxu0 %v2722
  %3802 = vmatprep.subr.mxu0 0.0
  %3803 = vmatpush1.msra.mxu0 %v2721
  %3804 = vmatprep.subr.mxu0 0.0
  %3805 = vmatpush1.msra.mxu0 %v2720
  %3806 = vmatprep.subr.mxu0 0.0
  %3807 = vmatpush1.msra.mxu0 %v2719
  %3808 = vmatprep.subr.mxu0 0.0
  %3809 = vmatpush2.msra.mxu0 0.0
  %3810 = vmatprep.subr.mxu0 0.0
  %3811 = vmatpush2.msra.mxu0 0.0
  %3812 = vmatprep.subr.mxu0 0.0
  %3813 = vmatpush2.msra.mxu0 0.0
  %3814 = vmatprep.subr.mxu0 0.0
  %3815 = vmatpush2.msra.mxu0 0.0
  %3816 = vmatprep.subr.mxu0 0.0
  %3817 = vmatpush2.msra.mxu0 0.0
  %3818 = vmatprep.subr.mxu0 0.0
  %3819 = vmatpush2.msra.mxu0 0.0
  %3820 = vmatprep.subr.mxu0 0.0
  %3821 = vmatpush2.msra.mxu0 0.0
  %3822 = vmatprep.subr.mxu0 0.0
  %3823 = vmatpush2.msra.mxu0 0.0
  %3824 = vmatprep.subr.mxu0 0.0
  %3825 = vmatpush2.msra.mxu0 0.0
  %3826 = vmatprep.subr.mxu0 0.0
  %3827 = vmatpush2.msra.mxu0 0.0
  %3828 = vmatprep.subr.mxu0 0.0
  %3829 = vmatpush2.msra.mxu0 0.0
  %3830 = vmatprep.subr.mxu0 0.0
  %3831 = vmatpush2.msra.mxu0 0.0
  %3832 = vmatprep.subr.mxu0 0.0
  %3833 = vmatpush2.msra.mxu0 0.0
  %3834 = vmatprep.subr.mxu0 0.0
  %3835 = vmatpush2.msra.mxu0 0.0
  %3836 = vmatprep.subr.mxu0 0.0
  %3837 = vmatpush2.msra.mxu0 0.0
  %3838 = vmatprep.subr.mxu0 0.0
  %3839 = vmatpush2.msra.mxu0 0.0
  %3840 = vmatprep.mubr.f32.mxu0 0.0
  %3841 = vmatmul.mubr.f32.gmra.mxu0 %v3759
  %v3842 = vpop.f32.mrf.mxu0
  %v3843 = vadd.f32 0.0, %v3842
  %v3844 = vpop.f32.mrf.mxu0
  %3845 = vmatprep.mubr.f32.mxu0 0.0
  %3846 = vmatmul.mubr.f32.gmra.mxu0 %v3762
  %v3847 = vpop.f32.mrf.mxu0
  %v3848 = vadd.f32 0.0, %v3847
  %v3849 = vpop.f32.mrf.mxu0
  %3850 = vmatprep.mubr.f32.mxu0 0.0
  %3851 = vmatmul.mubr.f32.gmra.mxu0 %v3765
  %v3852 = vpop.f32.mrf.mxu0
  %v3853 = vadd.f32 0.0, %v3852
  %v3854 = vpop.f32.mrf.mxu0
  %3855 = vmatprep.mubr.f32.mxu0 0.0
  %3856 = vmatmul.mubr.f32.gmra.mxu0 %v3768
  %v3857 = vpop.f32.mrf.mxu0
  %v3858 = vadd.f32 0.0, %v3857
  %v3859 = vpop.f32.mrf.mxu0
  %3860 = vmatprep.mubr.f32.mxu0 0.0
  %3861 = vmatmul.mubr.f32.gmra.mxu0 %v3771
  %v3862 = vpop.f32.mrf.mxu0
  %v3863 = vadd.f32 0.0, %v3862
  %v3864 = vpop.f32.mrf.mxu0
  %3865 = vmatprep.mubr.f32.mxu0 0.0
  %3866 = vmatmul.mubr.f32.gmra.mxu0 %v3774
  %v3867 = vpop.f32.mrf.mxu0
  %v3868 = vadd.f32 0.0, %v3867
  %v3869 = vpop.f32.mrf.mxu0
  %3870 = vdwg.mxu0
  %v3871 = vadd.f32 %v3406, %v3843
  %v3872 = vadd.f32 %v3407, %v3848
  %v3873 = vadd.f32 %v3408, %v3853
  %v3874 = vadd.f32 %v3409, %v3858
  %v3875 = vadd.f32 %v3410, %v3863
  %v3876 = vadd.f32 %v3411, %v3868
  %3877 = vrot.lane.b32.xlu0 %v2968, 64
  %v3878 = vpop.permute.xlu0 %3877
  %3879 = vrot.lane.b32.xlu0 %v2969, 64
  %v3880 = vpop.permute.xlu0 %3879
  %3881 = vrot.lane.b32.xlu0 %v2970, 64
  %v3882 = vpop.permute.xlu0 %3881
  %3883 = vrot.lane.b32.xlu0 %v2971, 64
  %v3884 = vpop.permute.xlu0 %3883
  %3885 = vrot.lane.b32.xlu0 %v2972, 64
  %v3886 = vpop.permute.xlu0 %3885
  %3887 = vrot.lane.b32.xlu0 %v2973, 64
  %v3888 = vpop.permute.xlu0 %3887
  %3889 = vrot.lane.b32.xlu0 %v2974, 64
  %v3890 = vpop.permute.xlu0 %3889
  %3891 = vrot.lane.b32.xlu0 %v2975, 64
  %v3892 = vpop.permute.xlu0 %3891
  %3893 = vrot.lane.b32.xlu0 %v2976, 64
  %v3894 = vpop.permute.xlu0 %3893
  %3895 = vrot.lane.b32.xlu0 %v2977, 64
  %v3896 = vpop.permute.xlu0 %3895
  %3897 = vrot.lane.b32.xlu0 %v2978, 64
  %v3898 = vpop.permute.xlu0 %3897
  %3899 = vrot.lane.b32.xlu0 %v2979, 64
  %v3900 = vpop.permute.xlu0 %3899
  %v3901 = vsel %vm206, %v3878, 0
  %v3903 = vsel %vm206, %v3880, 0
  %v3905 = vsel %vm206, %v3882, 0
  %v3907 = vsel %vm206, %v3884, 0
  %v3909 = vsel %vm206, %v3886, 0
  %v3911 = vsel %vm206, %v3888, 0
  %v3913 = vsel %vm206, %v3890, 0
  %v3915 = vsel %vm206, %v3892, 0
  %v3917 = vsel %vm206, %v3894, 0
  %v3919 = vsel %vm206, %v3896, 0
  %v3921 = vsel %vm206, %v3898, 0
  %v3923 = vsel %vm206, %v3900, 0
  %3925 = vmatprep.subr.mxu0 0.0
  %3926 = vmatpush1.xpose.msra.mxu0 0.0
  %3927 = vmatprep.subr.mxu0 0.0
  %3928 = vmatpush1.xpose.msra.mxu0 0.0
  %3929 = vmatprep.subr.mxu0 0.0
  %3930 = vmatpush1.xpose.msra.mxu0 0.0
  %3931 = vmatprep.subr.mxu0 0.0
  %3932 = vmatpush1.xpose.msra.mxu0 0.0
  %3933 = vmatprep.subr.mxu0 0.0
  %3934 = vmatpush1.xpose.msra.mxu0 0.0
  %3935 = vmatprep.subr.mxu0 0.0
  %3936 = vmatpush1.xpose.msra.mxu0 0.0
  %3937 = vmatprep.subr.mxu0 0.0
  %3938 = vmatpush1.xpose.msra.mxu0 0.0
  %3939 = vmatprep.subr.mxu0 0.0
  %3940 = vmatpush1.xpose.msra.mxu0 0.0
  %3941 = vmatprep.subr.mxu0 0.0
  %3942 = vmatpush1.xpose.msra.mxu0 0.0
  %3943 = vmatprep.subr.mxu0 0.0
  %3944 = vmatpush1.xpose.msra.mxu0 0.0
  %3945 = vmatprep.subr.mxu0 0.0
  %3946 = vmatpush1.xpose.msra.mxu0 %v3923
  %3947 = vmatprep.subr.mxu0 0.0
  %3948 = vmatpush1.xpose.msra.mxu0 %v3921
  %3949 = vmatprep.subr.mxu0 0.0
  %3950 = vmatpush1.xpose.msra.mxu0 %v3919
  %3951 = vmatprep.subr.mxu0 0.0
  %3952 = vmatpush1.xpose.msra.mxu0 %v3917
  %3953 = vmatprep.subr.mxu0 0.0
  %3954 = vmatpush1.xpose.msra.mxu0 %v3915
  %3955 = vmatprep.subr.mxu0 0.0
  %3956 = vmatpush1.xpose.msra.mxu0 %v3913
  %3957 = vmatprep.subr.mxu0 0.0
  %3958 = vmatpush2.xpose.msra.mxu0 0.0
  %3959 = vmatprep.subr.mxu0 0.0
  %3960 = vmatpush2.xpose.msra.mxu0 0.0
  %3961 = vmatprep.subr.mxu0 0.0
  %3962 = vmatpush2.xpose.msra.mxu0 0.0
  %3963 = vmatprep.subr.mxu0 0.0
  %3964 = vmatpush2.xpose.msra.mxu0 0.0
  %3965 = vmatprep.subr.mxu0 0.0
  %3966 = vmatpush2.xpose.msra.mxu0 0.0
  %3967 = vmatprep.subr.mxu0 0.0
  %3968 = vmatpush2.xpose.msra.mxu0 0.0
  %3969 = vmatprep.subr.mxu0 0.0
  %3970 = vmatpush2.xpose.msra.mxu0 0.0
  %3971 = vmatprep.subr.mxu0 0.0
  %3972 = vmatpush2.xpose.msra.mxu0 0.0
  %3973 = vmatprep.subr.mxu0 0.0
  %3974 = vmatpush2.xpose.msra.mxu0 0.0
  %3975 = vmatprep.subr.mxu0 0.0
  %3976 = vmatpush2.xpose.msra.mxu0 0.0
  %3977 = vmatprep.subr.mxu0 0.0
  %3978 = vmatpush2.xpose.msra.mxu0 0.0
  %3979 = vmatprep.subr.mxu0 0.0
  %3980 = vmatpush2.xpose.msra.mxu0 0.0
  %3981 = vmatprep.subr.mxu0 0.0
  %3982 = vmatpush2.xpose.msra.mxu0 0.0
  %3983 = vmatprep.subr.mxu0 0.0
  %3984 = vmatpush2.xpose.msra.mxu0 0.0
  %3985 = vmatprep.subr.mxu0 0.0
  %3986 = vmatpush2.xpose.msra.mxu0 0.0
  %3987 = vmatprep.subr.mxu0 0.0
  %3988 = vmatpush2.xpose.msra.mxu0 0.0
  %3989 = vmatprep.mubr.f32.mxu0 0.0
  %3990 = vmatmul.mubr.f32.gmra.mxu0 %v3901
  %v3991 = vpop.f32.mrf.mxu0
  %v3992 = vadd.f32 %v38, %v3991
  %v3993 = vpop.f32.mrf.mxu0
  %3994 = vmatprep.mubr.f32.mxu0 0.0
  %3995 = vmatmul.mubr.f32.gmra.mxu0 %v3903
  %v3996 = vpop.f32.mrf.mxu0
  %v3997 = vadd.f32 %v39, %v3996
  %v3998 = vpop.f32.mrf.mxu0
  %3999 = vmatprep.mubr.f32.mxu0 0.0
  %4000 = vmatmul.mubr.f32.gmra.mxu0 %v3905
  %v4001 = vpop.f32.mrf.mxu0
  %v4002 = vadd.f32 %v40, %v4001
  %v4003 = vpop.f32.mrf.mxu0
  %4004 = vmatprep.mubr.f32.mxu0 0.0
  %4005 = vmatmul.mubr.f32.gmra.mxu0 %v3907
  %v4006 = vpop.f32.mrf.mxu0
  %v4007 = vadd.f32 %v41, %v4006
  %v4008 = vpop.f32.mrf.mxu0
  %4009 = vmatprep.mubr.f32.mxu0 0.0
  %4010 = vmatmul.mubr.f32.gmra.mxu0 %v3909
  %v4011 = vpop.f32.mrf.mxu0
  %v4012 = vadd.f32 %v42, %v4011
  %v4013 = vpop.f32.mrf.mxu0
  %4014 = vmatprep.mubr.f32.mxu0 0.0
  %4015 = vmatmul.mubr.f32.gmra.mxu0 %v3911
  %v4016 = vpop.f32.mrf.mxu0
  %v4017 = vadd.f32 %v43, %v4016
  %v4018 = vpop.f32.mrf.mxu0
  %4019 = vdwg.mxu0
  %v4020 = vsel %vm574, %v3992, -inf
  %4021 = vmax.xlane.f32.xlu0 %v4020
  %v4022 = vpop.xlane.xlu0 %4021
  %v4023 = vsel %vm574, %v3997, -inf
  %4024 = vmax.xlane.f32.xlu0 %v4023
  %v4025 = vpop.xlane.xlu0 %4024
  %v4026 = vsel %vm574, %v4002, -inf
  %4027 = vmax.xlane.f32.xlu0 %v4026
  %v4028 = vpop.xlane.xlu0 %4027
  %v4029 = vsel %vm574, %v4007, -inf
  %4030 = vmax.xlane.f32.xlu0 %v4029
  %v4031 = vpop.xlane.xlu0 %4030
  %v4032 = vsel %vm574, %v4012, -inf
  %4033 = vmax.xlane.f32.xlu0 %v4032
  %v4034 = vpop.xlane.xlu0 %4033
  %v4035 = vsel %vm590, %v4017, -inf
  %4036 = vmax.xlane.f32.xlu0 %v4035
  %v4037 = vpop.xlane.xlu0 %4036
  %v4038 = vsub.f32 %v3992, %v4022
  %v4039 = vsub.f32 %v3997, %v4025
  %v4040 = vsub.f32 %v4002, %v4028
  %v4041 = vsub.f32 %v4007, %v4031
  %v4042 = vsub.f32 %v4012, %v4034
  %v4043 = vsub.f32 %v4017, %v4037
  %v4044 = vmul.f32 %v4038, 1.442695
  %v4045 = vpow.pop %v4044
  %v4046 = vmul.f32 %v4039, 1.442695
  %v4047 = vpow.pop %v4046
  %v4048 = vmul.f32 %v4040, 1.442695
  %v4049 = vpow.pop %v4048
  %v4050 = vmul.f32 %v4041, 1.442695
  %v4051 = vpow.pop %v4050
  %v4052 = vmul.f32 %v4042, 1.442695
  %v4053 = vpow.pop %v4052
  %v4054 = vmul.f32 %v4043, 1.442695
  %v4055 = vpow.pop %v4054
  %v4056 = vsel %vm574, %v4045, 0.0
  %4057 = vadd.xlane.f32.xlu0 %v4056
  %v4058 = vpop.xlane.xlu0 %4057
  %v4059 = vsel %vm574, %v4047, 0.0
  %4060 = vadd.xlane.f32.xlu0 %v4059
  %v4061 = vpop.xlane.xlu0 %4060
  %v4062 = vsel %vm574, %v4049, 0.0
  %4063 = vadd.xlane.f32.xlu0 %v4062
  %v4064 = vpop.xlane.xlu0 %4063
  %v4065 = vsel %vm574, %v4051, 0.0
  %4066 = vadd.xlane.f32.xlu0 %v4065
  %v4067 = vpop.xlane.xlu0 %4066
  %v4068 = vsel %vm574, %v4053, 0.0
  %4069 = vadd.xlane.f32.xlu0 %v4068
  %v4070 = vpop.xlane.xlu0 %4069
  %v4071 = vsel %vm590, %v4055, 0.0
  %4072 = vadd.xlane.f32.xlu0 %v4071
  %v4073 = vpop.xlane.xlu0 %4072
  %v4074 = vrcp.pop %v4058
  %v4075 = vrcp.pop %v4061
  %v4076 = vrcp.pop %v4064
  %v4077 = vrcp.pop %v4067
  %v4078 = vrcp.pop %v4070
  %v4079 = vrcp.pop %v4073
  %v4080 = vmul.f32 %v4045, %v4074
  %v4081 = vmul.f32 %v4047, %v4075
  %v4082 = vmul.f32 %v4049, %v4076
  %v4083 = vmul.f32 %v4051, %v4077
  %v4084 = vmul.f32 %v4053, %v4078
  %v4085 = vmul.f32 %v4055, %v4079
  %4086 = vrot.lane.b32.xlu0 %v2930, 64
  %v4087 = vpop.permute.xlu0 %4086
  %4088 = vrot.lane.b32.xlu0 %v2935, 64
  %v4089 = vpop.permute.xlu0 %4088
  %4090 = vrot.lane.b32.xlu0 %v2940, 64
  %v4091 = vpop.permute.xlu0 %4090
  %4092 = vrot.lane.b32.xlu0 %v2945, 64
  %v4093 = vpop.permute.xlu0 %4092
  %4094 = vrot.lane.b32.xlu0 %v2950, 64
  %v4095 = vpop.permute.xlu0 %4094
  %4096 = vrot.lane.b32.xlu0 %v2955, 64
  %v4097 = vpop.permute.xlu0 %4096
  %v4104 = vsel %vm574, %v4080, 0
  %v4107 = vsel %vm574, %v4081, 0
  %v4110 = vsel %vm574, %v4082, 0
  %v4113 = vsel %vm574, %v4083, 0
  %v4116 = vsel %vm574, %v4084, 0
  %v4119 = vsel %vm574, %v4085, 0
  %v4121 = vsel %vm660, %v4097, 0
  %4123 = vmatprep.subr.mxu0 0.0
  %4124 = vmatpush1.msra.mxu0 0.0
  %4125 = vmatprep.subr.mxu0 0.0
  %4126 = vmatpush1.msra.mxu0 0.0
  %4127 = vmatprep.subr.mxu0 0.0
  %4128 = vmatpush1.msra.mxu0 0.0
  %4129 = vmatprep.subr.mxu0 0.0
  %4130 = vmatpush1.msra.mxu0 0.0
  %4131 = vmatprep.subr.mxu0 0.0
  %4132 = vmatpush1.msra.mxu0 0.0
  %4133 = vmatprep.subr.mxu0 0.0
  %4134 = vmatpush1.msra.mxu0 0.0
  %4135 = vmatprep.subr.mxu0 0.0
  %4136 = vmatpush1.msra.mxu0 0.0
  %4137 = vmatprep.subr.mxu0 0.0
  %4138 = vmatpush1.msra.mxu0 0.0
  %4139 = vmatprep.subr.mxu0 0.0
  %4140 = vmatpush1.msra.mxu0 0.0
  %4141 = vmatprep.subr.mxu0 0.0
  %4142 = vmatpush1.msra.mxu0 0.0
  %4143 = vmatprep.subr.mxu0 0.0
  %4144 = vmatpush1.msra.mxu0 %v4121
  %4145 = vmatprep.subr.mxu0 0.0
  %4146 = vmatpush1.msra.mxu0 %v4095
  %4147 = vmatprep.subr.mxu0 0.0
  %4148 = vmatpush1.msra.mxu0 %v4093
  %4149 = vmatprep.subr.mxu0 0.0
  %4150 = vmatpush1.msra.mxu0 %v4091
  %4151 = vmatprep.subr.mxu0 0.0
  %4152 = vmatpush1.msra.mxu0 %v4089
  %4153 = vmatprep.subr.mxu0 0.0
  %4154 = vmatpush1.msra.mxu0 %v4087
  %4155 = vmatprep.subr.mxu0 0.0
  %4156 = vmatpush2.msra.mxu0 0.0
  %4157 = vmatprep.subr.mxu0 0.0
  %4158 = vmatpush2.msra.mxu0 0.0
  %4159 = vmatprep.subr.mxu0 0.0
  %4160 = vmatpush2.msra.mxu0 0.0
  %4161 = vmatprep.subr.mxu0 0.0
  %4162 = vmatpush2.msra.mxu0 0.0
  %4163 = vmatprep.subr.mxu0 0.0
  %4164 = vmatpush2.msra.mxu0 0.0
  %4165 = vmatprep.subr.mxu0 0.0
  %4166 = vmatpush2.msra.mxu0 0.0
  %4167 = vmatprep.subr.mxu0 0.0
  %4168 = vmatpush2.msra.mxu0 0.0
  %4169 = vmatprep.subr.mxu0 0.0
  %4170 = vmatpush2.msra.mxu0 0.0
  %4171 = vmatprep.subr.mxu0 0.0
  %4172 = vmatpush2.msra.mxu0 0.0
  %4173 = vmatprep.subr.mxu0 0.0
  %4174 = vmatpush2.msra.mxu0 0.0
  %4175 = vmatprep.subr.mxu0 0.0
  %4176 = vmatpush2.msra.mxu0 0.0
  %4177 = vmatprep.subr.mxu0 0.0
  %4178 = vmatpush2.msra.mxu0 0.0
  %4179 = vmatprep.subr.mxu0 0.0
  %4180 = vmatpush2.msra.mxu0 0.0
  %4181 = vmatprep.subr.mxu0 0.0
  %4182 = vmatpush2.msra.mxu0 0.0
  %4183 = vmatprep.subr.mxu0 0.0
  %4184 = vmatpush2.msra.mxu0 0.0
  %4185 = vmatprep.subr.mxu0 0.0
  %4186 = vmatpush2.msra.mxu0 0.0
  %4187 = vmatprep.mubr.f32.mxu0 0.0
  %4188 = vmatmul.mubr.f32.gmra.mxu0 %v4104
  %v4189 = vpop.f32.mrf.mxu0
  %v4190 = vadd.f32 0.0, %v4189
  %v4191 = vpop.f32.mrf.mxu0
  %4192 = vmatprep.mubr.f32.mxu0 0.0
  %4193 = vmatmul.mubr.f32.gmra.mxu0 %v4107
  %v4194 = vpop.f32.mrf.mxu0
  %v4195 = vadd.f32 0.0, %v4194
  %v4196 = vpop.f32.mrf.mxu0
  %4197 = vmatprep.mubr.f32.mxu0 0.0
  %4198 = vmatmul.mubr.f32.gmra.mxu0 %v4110
  %v4199 = vpop.f32.mrf.mxu0
  %v4200 = vadd.f32 0.0, %v4199
  %v4201 = vpop.f32.mrf.mxu0
  %4202 = vmatprep.mubr.f32.mxu0 0.0
  %4203 = vmatmul.mubr.f32.gmra.mxu0 %v4113
  %v4204 = vpop.f32.mrf.mxu0
  %v4205 = vadd.f32 0.0, %v4204
  %v4206 = vpop.f32.mrf.mxu0
  %4207 = vmatprep.mubr.f32.mxu0 0.0
  %4208 = vmatmul.mubr.f32.gmra.mxu0 %v4116
  %v4209 = vpop.f32.mrf.mxu0
  %v4210 = vadd.f32 0.0, %v4209
  %v4211 = vpop.f32.mrf.mxu0
  %4212 = vmatprep.mubr.f32.mxu0 0.0
  %4213 = vmatmul.mubr.f32.gmra.mxu0 %v4119
  %v4214 = vpop.f32.mrf.mxu0
  %v4215 = vadd.f32 0.0, %v4214
  %v4216 = vpop.f32.mrf.mxu0
  %4217 = vdwg.mxu0
  %v4219 = vsel %vm206, %v4190, 0
  %v4222 = vsel %vm206, %v4195, 0
  %v4225 = vsel %vm206, %v4200, 0
  %v4228 = vsel %vm206, %v4205, 0
  %v4231 = vsel %vm206, %v4210, 0
  %v4234 = vsel %vm206, %v4215, 0
  %4236 = vmatprep.subr.mxu0 0.0
  %4237 = vmatpush1.msra.mxu0 0.0
  %4238 = vmatprep.subr.mxu0 0.0
  %4239 = vmatpush1.msra.mxu0 0.0
  %4240 = vmatprep.subr.mxu0 0.0
  %4241 = vmatpush1.msra.mxu0 0.0
  %4242 = vmatprep.subr.mxu0 0.0
  %4243 = vmatpush1.msra.mxu0 0.0
  %4244 = vmatprep.subr.mxu0 0.0
  %4245 = vmatpush1.msra.mxu0 0.0
  %4246 = vmatprep.subr.mxu0 0.0
  %4247 = vmatpush1.msra.mxu0 0.0
  %4248 = vmatprep.subr.mxu0 0.0
  %4249 = vmatpush1.msra.mxu0 0.0
  %4250 = vmatprep.subr.mxu0 0.0
  %4251 = vmatpush1.msra.mxu0 0.0
  %4252 = vmatprep.subr.mxu0 0.0
  %4253 = vmatpush1.msra.mxu0 0.0
  %4254 = vmatprep.subr.mxu0 0.0
  %4255 = vmatpush1.msra.mxu0 0.0
  %4256 = vmatprep.subr.mxu0 0.0
  %4257 = vmatpush1.msra.mxu0 0.0
  %4258 = vmatprep.subr.mxu0 0.0
  %4259 = vmatpush1.msra.mxu0 0.0
  %4260 = vmatprep.subr.mxu0 0.0
  %4261 = vmatpush1.msra.mxu0 %v2726
  %4262 = vmatprep.subr.mxu0 0.0
  %4263 = vmatpush1.msra.mxu0 %v2725
  %4264 = vmatprep.subr.mxu0 0.0
  %4265 = vmatpush1.msra.mxu0 %v2724
  %4266 = vmatprep.subr.mxu0 0.0
  %4267 = vmatpush1.msra.mxu0 %v2723
  %4268 = vmatprep.subr.mxu0 0.0
  %4269 = vmatpush2.msra.mxu0 0.0
  %4270 = vmatprep.subr.mxu0 0.0
  %4271 = vmatpush2.msra.mxu0 0.0
  %4272 = vmatprep.subr.mxu0 0.0
  %4273 = vmatpush2.msra.mxu0 0.0
  %4274 = vmatprep.subr.mxu0 0.0
  %4275 = vmatpush2.msra.mxu0 0.0
  %4276 = vmatprep.subr.mxu0 0.0
  %4277 = vmatpush2.msra.mxu0 0.0
  %4278 = vmatprep.subr.mxu0 0.0
  %4279 = vmatpush2.msra.mxu0 0.0
  %4280 = vmatprep.subr.mxu0 0.0
  %4281 = vmatpush2.msra.mxu0 0.0
  %4282 = vmatprep.subr.mxu0 0.0
  %4283 = vmatpush2.msra.mxu0 0.0
  %4284 = vmatprep.subr.mxu0 0.0
  %4285 = vmatpush2.msra.mxu0 0.0
  %4286 = vmatprep.subr.mxu0 0.0
  %4287 = vmatpush2.msra.mxu0 0.0
  %4288 = vmatprep.subr.mxu0 0.0
  %4289 = vmatpush2.msra.mxu0 0.0
  %4290 = vmatprep.subr.mxu0 0.0
  %4291 = vmatpush2.msra.mxu0 0.0
  %4292 = vmatprep.subr.mxu0 0.0
  %4293 = vmatpush2.msra.mxu0 0.0
  %4294 = vmatprep.subr.mxu0 0.0
  %4295 = vmatpush2.msra.mxu0 0.0
  %4296 = vmatprep.subr.mxu0 0.0
  %4297 = vmatpush2.msra.mxu0 0.0
  %4298 = vmatprep.subr.mxu0 0.0
  %4299 = vmatpush2.msra.mxu0 0.0
  %4300 = vmatprep.mubr.f32.mxu0 0.0
  %4301 = vmatmul.mubr.f32.gmra.mxu0 %v4219
  %v4302 = vpop.f32.mrf.mxu0
  %v4303 = vadd.f32 0.0, %v4302
  %v4304 = vpop.f32.mrf.mxu0
  %4305 = vmatprep.mubr.f32.mxu0 0.0
  %4306 = vmatmul.mubr.f32.gmra.mxu0 %v4222
  %v4307 = vpop.f32.mrf.mxu0
  %v4308 = vadd.f32 0.0, %v4307
  %v4309 = vpop.f32.mrf.mxu0
  %4310 = vmatprep.mubr.f32.mxu0 0.0
  %4311 = vmatmul.mubr.f32.gmra.mxu0 %v4225
  %v4312 = vpop.f32.mrf.mxu0
  %v4313 = vadd.f32 0.0, %v4312
  %v4314 = vpop.f32.mrf.mxu0
  %4315 = vmatprep.mubr.f32.mxu0 0.0
  %4316 = vmatmul.mubr.f32.gmra.mxu0 %v4228
  %v4317 = vpop.f32.mrf.mxu0
  %v4318 = vadd.f32 0.0, %v4317
  %v4319 = vpop.f32.mrf.mxu0
  %4320 = vmatprep.mubr.f32.mxu0 0.0
  %4321 = vmatmul.mubr.f32.gmra.mxu0 %v4231
  %v4322 = vpop.f32.mrf.mxu0
  %v4323 = vadd.f32 0.0, %v4322
  %v4324 = vpop.f32.mrf.mxu0
  %4325 = vmatprep.mubr.f32.mxu0 0.0
  %4326 = vmatmul.mubr.f32.gmra.mxu0 %v4234
  %v4327 = vpop.f32.mrf.mxu0
  %v4328 = vadd.f32 0.0, %v4327
  %v4329 = vpop.f32.mrf.mxu0
  %4330 = vdwg.mxu0
  %v4331 = vadd.f32 %v3871, %v4303
  %v4332 = vadd.f32 %v3872, %v4308
  %v4333 = vadd.f32 %v3873, %v4313
  %v4334 = vadd.f32 %v3874, %v4318
  %v4335 = vadd.f32 %v3875, %v4323
  %v4336 = vadd.f32 %v3876, %v4328
  %4337 = vrot.lane.b32.xlu0 %v2968, 32
  %v4338 = vpop.permute.xlu0 %4337
  %4339 = vrot.lane.b32.xlu0 %v2969, 32
  %v4340 = vpop.permute.xlu0 %4339
  %4341 = vrot.lane.b32.xlu0 %v2970, 32
  %v4342 = vpop.permute.xlu0 %4341
  %4343 = vrot.lane.b32.xlu0 %v2971, 32
  %v4344 = vpop.permute.xlu0 %4343
  %4345 = vrot.lane.b32.xlu0 %v2972, 32
  %v4346 = vpop.permute.xlu0 %4345
  %4347 = vrot.lane.b32.xlu0 %v2973, 32
  %v4348 = vpop.permute.xlu0 %4347
  %4349 = vrot.lane.b32.xlu0 %v2974, 32
  %v4350 = vpop.permute.xlu0 %4349
  %4351 = vrot.lane.b32.xlu0 %v2975, 32
  %v4352 = vpop.permute.xlu0 %4351
  %4353 = vrot.lane.b32.xlu0 %v2976, 32
  %v4354 = vpop.permute.xlu0 %4353
  %4355 = vrot.lane.b32.xlu0 %v2977, 32
  %v4356 = vpop.permute.xlu0 %4355
  %4357 = vrot.lane.b32.xlu0 %v2978, 32
  %v4358 = vpop.permute.xlu0 %4357
  %4359 = vrot.lane.b32.xlu0 %v2979, 32
  %v4360 = vpop.permute.xlu0 %4359
  %v4361 = vsel %vm206, %v4338, 0
  %v4363 = vsel %vm206, %v4340, 0
  %v4365 = vsel %vm206, %v4342, 0
  %v4367 = vsel %vm206, %v4344, 0
  %v4369 = vsel %vm206, %v4346, 0
  %v4371 = vsel %vm206, %v4348, 0
  %v4373 = vsel %vm206, %v4350, 0
  %v4375 = vsel %vm206, %v4352, 0
  %v4377 = vsel %vm206, %v4354, 0
  %v4379 = vsel %vm206, %v4356, 0
  %v4381 = vsel %vm206, %v4358, 0
  %v4383 = vsel %vm206, %v4360, 0
  %4385 = vmatprep.subr.mxu0 0.0
  %4386 = vmatpush1.xpose.msra.mxu0 0.0
  %4387 = vmatprep.subr.mxu0 0.0
  %4388 = vmatpush1.xpose.msra.mxu0 0.0
  %4389 = vmatprep.subr.mxu0 0.0
  %4390 = vmatpush1.xpose.msra.mxu0 0.0
  %4391 = vmatprep.subr.mxu0 0.0
  %4392 = vmatpush1.xpose.msra.mxu0 0.0
  %4393 = vmatprep.subr.mxu0 0.0
  %4394 = vmatpush1.xpose.msra.mxu0 0.0
  %4395 = vmatprep.subr.mxu0 0.0
  %4396 = vmatpush1.xpose.msra.mxu0 0.0
  %4397 = vmatprep.subr.mxu0 0.0
  %4398 = vmatpush1.xpose.msra.mxu0 0.0
  %4399 = vmatprep.subr.mxu0 0.0
  %4400 = vmatpush1.xpose.msra.mxu0 0.0
  %4401 = vmatprep.subr.mxu0 0.0
  %4402 = vmatpush1.xpose.msra.mxu0 0.0
  %4403 = vmatprep.subr.mxu0 0.0
  %4404 = vmatpush1.xpose.msra.mxu0 0.0
  %4405 = vmatprep.subr.mxu0 0.0
  %4406 = vmatpush1.xpose.msra.mxu0 %v4383
  %4407 = vmatprep.subr.mxu0 0.0
  %4408 = vmatpush1.xpose.msra.mxu0 %v4381
  %4409 = vmatprep.subr.mxu0 0.0
  %4410 = vmatpush1.xpose.msra.mxu0 %v4379
  %4411 = vmatprep.subr.mxu0 0.0
  %4412 = vmatpush1.xpose.msra.mxu0 %v4377
  %4413 = vmatprep.subr.mxu0 0.0
  %4414 = vmatpush1.xpose.msra.mxu0 %v4375
  %4415 = vmatprep.subr.mxu0 0.0
  %4416 = vmatpush1.xpose.msra.mxu0 %v4373
  %4417 = vmatprep.subr.mxu0 0.0
  %4418 = vmatpush2.xpose.msra.mxu0 0.0
  %4419 = vmatprep.subr.mxu0 0.0
  %4420 = vmatpush2.xpose.msra.mxu0 0.0
  %4421 = vmatprep.subr.mxu0 0.0
  %4422 = vmatpush2.xpose.msra.mxu0 0.0
  %4423 = vmatprep.subr.mxu0 0.0
  %4424 = vmatpush2.xpose.msra.mxu0 0.0
  %4425 = vmatprep.subr.mxu0 0.0
  %4426 = vmatpush2.xpose.msra.mxu0 0.0
  %4427 = vmatprep.subr.mxu0 0.0
  %4428 = vmatpush2.xpose.msra.mxu0 0.0
  %4429 = vmatprep.subr.mxu0 0.0
  %4430 = vmatpush2.xpose.msra.mxu0 0.0
  %4431 = vmatprep.subr.mxu0 0.0
  %4432 = vmatpush2.xpose.msra.mxu0 0.0
  %4433 = vmatprep.subr.mxu0 0.0
  %4434 = vmatpush2.xpose.msra.mxu0 0.0
  %4435 = vmatprep.subr.mxu0 0.0
  %4436 = vmatpush2.xpose.msra.mxu0 0.0
  %4437 = vmatprep.subr.mxu0 0.0
  %4438 = vmatpush2.xpose.msra.mxu0 0.0
  %4439 = vmatprep.subr.mxu0 0.0
  %4440 = vmatpush2.xpose.msra.mxu0 0.0
  %4441 = vmatprep.subr.mxu0 0.0
  %4442 = vmatpush2.xpose.msra.mxu0 0.0
  %4443 = vmatprep.subr.mxu0 0.0
  %4444 = vmatpush2.xpose.msra.mxu0 0.0
  %4445 = vmatprep.subr.mxu0 0.0
  %4446 = vmatpush2.xpose.msra.mxu0 0.0
  %4447 = vmatprep.subr.mxu0 0.0
  %4448 = vmatpush2.xpose.msra.mxu0 0.0
  %4449 = vmatprep.mubr.f32.mxu0 0.0
  %4450 = vmatmul.mubr.f32.gmra.mxu0 %v4361
  %v4451 = vpop.f32.mrf.mxu0
  %v4452 = vadd.f32 %v38, %v4451
  %v4453 = vpop.f32.mrf.mxu0
  %4454 = vmatprep.mubr.f32.mxu0 0.0
  %4455 = vmatmul.mubr.f32.gmra.mxu0 %v4363
  %v4456 = vpop.f32.mrf.mxu0
  %v4457 = vadd.f32 %v39, %v4456
  %v4458 = vpop.f32.mrf.mxu0
  %4459 = vmatprep.mubr.f32.mxu0 0.0
  %4460 = vmatmul.mubr.f32.gmra.mxu0 %v4365
  %v4461 = vpop.f32.mrf.mxu0
  %v4462 = vadd.f32 %v40, %v4461
  %v4463 = vpop.f32.mrf.mxu0
  %4464 = vmatprep.mubr.f32.mxu0 0.0
  %4465 = vmatmul.mubr.f32.gmra.mxu0 %v4367
  %v4466 = vpop.f32.mrf.mxu0
  %v4467 = vadd.f32 %v41, %v4466
  %v4468 = vpop.f32.mrf.mxu0
  %4469 = vmatprep.mubr.f32.mxu0 0.0
  %4470 = vmatmul.mubr.f32.gmra.mxu0 %v4369
  %v4471 = vpop.f32.mrf.mxu0
  %v4472 = vadd.f32 %v42, %v4471
  %v4473 = vpop.f32.mrf.mxu0
  %4474 = vmatprep.mubr.f32.mxu0 0.0
  %4475 = vmatmul.mubr.f32.gmra.mxu0 %v4371
  %v4476 = vpop.f32.mrf.mxu0
  %v4477 = vadd.f32 %v43, %v4476
  %v4478 = vpop.f32.mrf.mxu0
  %4479 = vdwg.mxu0
  %v4480 = vsel %vm574, %v4452, -inf
  %4481 = vmax.xlane.f32.xlu0 %v4480
  %v4482 = vpop.xlane.xlu0 %4481
  %v4483 = vsel %vm574, %v4457, -inf
  %4484 = vmax.xlane.f32.xlu0 %v4483
  %v4485 = vpop.xlane.xlu0 %4484
  %v4486 = vsel %vm574, %v4462, -inf
  %4487 = vmax.xlane.f32.xlu0 %v4486
  %v4488 = vpop.xlane.xlu0 %4487
  %v4489 = vsel %vm574, %v4467, -inf
  %4490 = vmax.xlane.f32.xlu0 %v4489
  %v4491 = vpop.xlane.xlu0 %4490
  %v4492 = vsel %vm574, %v4472, -inf
  %4493 = vmax.xlane.f32.xlu0 %v4492
  %v4494 = vpop.xlane.xlu0 %4493
  %v4495 = vsel %vm590, %v4477, -inf
  %4496 = vmax.xlane.f32.xlu0 %v4495
  %v4497 = vpop.xlane.xlu0 %4496
  %v4498 = vsub.f32 %v4452, %v4482
  %v4499 = vsub.f32 %v4457, %v4485
  %v4500 = vsub.f32 %v4462, %v4488
  %v4501 = vsub.f32 %v4467, %v4491
  %v4502 = vsub.f32 %v4472, %v4494
  %v4503 = vsub.f32 %v4477, %v4497
  %v4504 = vmul.f32 %v4498, 1.442695
  %v4505 = vpow.pop %v4504
  %v4506 = vmul.f32 %v4499, 1.442695
  %v4507 = vpow.pop %v4506
  %v4508 = vmul.f32 %v4500, 1.442695
  %v4509 = vpow.pop %v4508
  %v4510 = vmul.f32 %v4501, 1.442695
  %v4511 = vpow.pop %v4510
  %v4512 = vmul.f32 %v4502, 1.442695
  %v4513 = vpow.pop %v4512
  %v4514 = vmul.f32 %v4503, 1.442695
  %v4515 = vpow.pop %v4514
  %v4516 = vsel %vm574, %v4505, 0.0
  %4517 = vadd.xlane.f32.xlu0 %v4516
  %v4518 = vpop.xlane.xlu0 %4517
  %v4519 = vsel %vm574, %v4507, 0.0
  %4520 = vadd.xlane.f32.xlu0 %v4519
  %v4521 = vpop.xlane.xlu0 %4520
  %v4522 = vsel %vm574, %v4509, 0.0
  %4523 = vadd.xlane.f32.xlu0 %v4522
  %v4524 = vpop.xlane.xlu0 %4523
  %v4525 = vsel %vm574, %v4511, 0.0
  %4526 = vadd.xlane.f32.xlu0 %v4525
  %v4527 = vpop.xlane.xlu0 %4526
  %v4528 = vsel %vm574, %v4513, 0.0
  %4529 = vadd.xlane.f32.xlu0 %v4528
  %v4530 = vpop.xlane.xlu0 %4529
  %v4531 = vsel %vm590, %v4515, 0.0
  %4532 = vadd.xlane.f32.xlu0 %v4531
  %v4533 = vpop.xlane.xlu0 %4532
  %v4534 = vrcp.pop %v4518
  %v4535 = vrcp.pop %v4521
  %v4536 = vrcp.pop %v4524
  %v4537 = vrcp.pop %v4527
  %v4538 = vrcp.pop %v4530
  %v4539 = vrcp.pop %v4533
  %v4540 = vmul.f32 %v4505, %v4534
  %v4541 = vmul.f32 %v4507, %v4535
  %v4542 = vmul.f32 %v4509, %v4536
  %v4543 = vmul.f32 %v4511, %v4537
  %v4544 = vmul.f32 %v4513, %v4538
  %v4545 = vmul.f32 %v4515, %v4539
  %4546 = vrot.lane.b32.xlu0 %v2930, 32
  %v4547 = vpop.permute.xlu0 %4546
  %4548 = vrot.lane.b32.xlu0 %v2935, 32
  %v4549 = vpop.permute.xlu0 %4548
  %4550 = vrot.lane.b32.xlu0 %v2940, 32
  %v4551 = vpop.permute.xlu0 %4550
  %4552 = vrot.lane.b32.xlu0 %v2945, 32
  %v4553 = vpop.permute.xlu0 %4552
  %4554 = vrot.lane.b32.xlu0 %v2950, 32
  %v4555 = vpop.permute.xlu0 %4554
  %4556 = vrot.lane.b32.xlu0 %v2955, 32
  %v4557 = vpop.permute.xlu0 %4556
  %v4564 = vsel %vm574, %v4540, 0
  %v4567 = vsel %vm574, %v4541, 0
  %v4570 = vsel %vm574, %v4542, 0
  %v4573 = vsel %vm574, %v4543, 0
  %v4576 = vsel %vm574, %v4544, 0
  %v4579 = vsel %vm574, %v4545, 0
  %v4581 = vsel %vm660, %v4557, 0
  %4583 = vmatprep.subr.mxu0 0.0
  %4584 = vmatpush1.msra.mxu0 0.0
  %4585 = vmatprep.subr.mxu0 0.0
  %4586 = vmatpush1.msra.mxu0 0.0
  %4587 = vmatprep.subr.mxu0 0.0
  %4588 = vmatpush1.msra.mxu0 0.0
  %4589 = vmatprep.subr.mxu0 0.0
  %4590 = vmatpush1.msra.mxu0 0.0
  %4591 = vmatprep.subr.mxu0 0.0
  %4592 = vmatpush1.msra.mxu0 0.0
  %4593 = vmatprep.subr.mxu0 0.0
  %4594 = vmatpush1.msra.mxu0 0.0
  %4595 = vmatprep.subr.mxu0 0.0
  %4596 = vmatpush1.msra.mxu0 0.0
  %4597 = vmatprep.subr.mxu0 0.0
  %4598 = vmatpush1.msra.mxu0 0.0
  %4599 = vmatprep.subr.mxu0 0.0
  %4600 = vmatpush1.msra.mxu0 0.0
  %4601 = vmatprep.subr.mxu0 0.0
  %4602 = vmatpush1.msra.mxu0 0.0
  %4603 = vmatprep.subr.mxu0 0.0
  %4604 = vmatpush1.msra.mxu0 %v4581
  %4605 = vmatprep.subr.mxu0 0.0
  %4606 = vmatpush1.msra.mxu0 %v4555
  %4607 = vmatprep.subr.mxu0 0.0
  %4608 = vmatpush1.msra.mxu0 %v4553
  %4609 = vmatprep.subr.mxu0 0.0
  %4610 = vmatpush1.msra.mxu0 %v4551
  %4611 = vmatprep.subr.mxu0 0.0
  %4612 = vmatpush1.msra.mxu0 %v4549
  %4613 = vmatprep.subr.mxu0 0.0
  %4614 = vmatpush1.msra.mxu0 %v4547
  %4615 = vmatprep.subr.mxu0 0.0
  %4616 = vmatpush2.msra.mxu0 0.0
  %4617 = vmatprep.subr.mxu0 0.0
  %4618 = vmatpush2.msra.mxu0 0.0
  %4619 = vmatprep.subr.mxu0 0.0
  %4620 = vmatpush2.msra.mxu0 0.0
  %4621 = vmatprep.subr.mxu0 0.0
  %4622 = vmatpush2.msra.mxu0 0.0
  %4623 = vmatprep.subr.mxu0 0.0
  %4624 = vmatpush2.msra.mxu0 0.0
  %4625 = vmatprep.subr.mxu0 0.0
  %4626 = vmatpush2.msra.mxu0 0.0
  %4627 = vmatprep.subr.mxu0 0.0
  %4628 = vmatpush2.msra.mxu0 0.0
  %4629 = vmatprep.subr.mxu0 0.0
  %4630 = vmatpush2.msra.mxu0 0.0
  %4631 = vmatprep.subr.mxu0 0.0
  %4632 = vmatpush2.msra.mxu0 0.0
  %4633 = vmatprep.subr.mxu0 0.0
  %4634 = vmatpush2.msra.mxu0 0.0
  %4635 = vmatprep.subr.mxu0 0.0
  %4636 = vmatpush2.msra.mxu0 0.0
  %4637 = vmatprep.subr.mxu0 0.0
  %4638 = vmatpush2.msra.mxu0 0.0
  %4639 = vmatprep.subr.mxu0 0.0
  %4640 = vmatpush2.msra.mxu0 0.0
  %4641 = vmatprep.subr.mxu0 0.0
  %4642 = vmatpush2.msra.mxu0 0.0
  %4643 = vmatprep.subr.mxu0 0.0
  %4644 = vmatpush2.msra.mxu0 0.0
  %4645 = vmatprep.subr.mxu0 0.0
  %4646 = vmatpush2.msra.mxu0 0.0
  %4647 = vmatprep.mubr.f32.mxu0 0.0
  %4648 = vmatmul.mubr.f32.gmra.mxu0 %v4564
  %v4649 = vpop.f32.mrf.mxu0
  %v4650 = vadd.f32 0.0, %v4649
  %v4651 = vpop.f32.mrf.mxu0
  %4652 = vmatprep.mubr.f32.mxu0 0.0
  %4653 = vmatmul.mubr.f32.gmra.mxu0 %v4567
  %v4654 = vpop.f32.mrf.mxu0
  %v4655 = vadd.f32 0.0, %v4654
  %v4656 = vpop.f32.mrf.mxu0
  %4657 = vmatprep.mubr.f32.mxu0 0.0
  %4658 = vmatmul.mubr.f32.gmra.mxu0 %v4570
  %v4659 = vpop.f32.mrf.mxu0
  %v4660 = vadd.f32 0.0, %v4659
  %v4661 = vpop.f32.mrf.mxu0
  %4662 = vmatprep.mubr.f32.mxu0 0.0
  %4663 = vmatmul.mubr.f32.gmra.mxu0 %v4573
  %v4664 = vpop.f32.mrf.mxu0
  %v4665 = vadd.f32 0.0, %v4664
  %v4666 = vpop.f32.mrf.mxu0
  %4667 = vmatprep.mubr.f32.mxu0 0.0
  %4668 = vmatmul.mubr.f32.gmra.mxu0 %v4576
  %v4669 = vpop.f32.mrf.mxu0
  %v4670 = vadd.f32 0.0, %v4669
  %v4671 = vpop.f32.mrf.mxu0
  %4672 = vmatprep.mubr.f32.mxu0 0.0
  %4673 = vmatmul.mubr.f32.gmra.mxu0 %v4579
  %v4674 = vpop.f32.mrf.mxu0
  %v4675 = vadd.f32 0.0, %v4674
  %v4676 = vpop.f32.mrf.mxu0
  %4677 = vdwg.mxu0
  %v4679 = vsel %vm206, %v4650, 0
  %v4682 = vsel %vm206, %v4655, 0
  %v4685 = vsel %vm206, %v4660, 0
  %v4688 = vsel %vm206, %v4665, 0
  %v4691 = vsel %vm206, %v4670, 0
  %v4694 = vsel %vm206, %v4675, 0
  %4696 = vmatprep.subr.mxu0 0.0
  %4697 = vmatpush1.msra.mxu0 0.0
  %4698 = vmatprep.subr.mxu0 0.0
  %4699 = vmatpush1.msra.mxu0 0.0
  %4700 = vmatprep.subr.mxu0 0.0
  %4701 = vmatpush1.msra.mxu0 0.0
  %4702 = vmatprep.subr.mxu0 0.0
  %4703 = vmatpush1.msra.mxu0 0.0
  %4704 = vmatprep.subr.mxu0 0.0
  %4705 = vmatpush1.msra.mxu0 0.0
  %4706 = vmatprep.subr.mxu0 0.0
  %4707 = vmatpush1.msra.mxu0 0.0
  %4708 = vmatprep.subr.mxu0 0.0
  %4709 = vmatpush1.msra.mxu0 0.0
  %4710 = vmatprep.subr.mxu0 0.0
  %4711 = vmatpush1.msra.mxu0 0.0
  %4712 = vmatprep.subr.mxu0 0.0
  %4713 = vmatpush1.msra.mxu0 0.0
  %4714 = vmatprep.subr.mxu0 0.0
  %4715 = vmatpush1.msra.mxu0 0.0
  %4716 = vmatprep.subr.mxu0 0.0
  %4717 = vmatpush1.msra.mxu0 0.0
  %4718 = vmatprep.subr.mxu0 0.0
  %4719 = vmatpush1.msra.mxu0 0.0
  %4720 = vmatprep.subr.mxu0 0.0
  %4721 = vmatpush1.msra.mxu0 %v2730
  %4722 = vmatprep.subr.mxu0 0.0
  %4723 = vmatpush1.msra.mxu0 %v2729
  %4724 = vmatprep.subr.mxu0 0.0
  %4725 = vmatpush1.msra.mxu0 %v2728
  %4726 = vmatprep.subr.mxu0 0.0
  %4727 = vmatpush1.msra.mxu0 %v2727
  %4728 = vmatprep.subr.mxu0 0.0
  %4729 = vmatpush2.msra.mxu0 0.0
  %4730 = vmatprep.subr.mxu0 0.0
  %4731 = vmatpush2.msra.mxu0 0.0
  %4732 = vmatprep.subr.mxu0 0.0
  %4733 = vmatpush2.msra.mxu0 0.0
  %4734 = vmatprep.subr.mxu0 0.0
  %4735 = vmatpush2.msra.mxu0 0.0
  %4736 = vmatprep.subr.mxu0 0.0
  %4737 = vmatpush2.msra.mxu0 0.0
  %4738 = vmatprep.subr.mxu0 0.0
  %4739 = vmatpush2.msra.mxu0 0.0
  %4740 = vmatprep.subr.mxu0 0.0
  %4741 = vmatpush2.msra.mxu0 0.0
  %4742 = vmatprep.subr.mxu0 0.0
  %4743 = vmatpush2.msra.mxu0 0.0
  %4744 = vmatprep.subr.mxu0 0.0
  %4745 = vmatpush2.msra.mxu0 0.0
  %4746 = vmatprep.subr.mxu0 0.0
  %4747 = vmatpush2.msra.mxu0 0.0
  %4748 = vmatprep.subr.mxu0 0.0
  %4749 = vmatpush2.msra.mxu0 0.0
  %4750 = vmatprep.subr.mxu0 0.0
  %4751 = vmatpush2.msra.mxu0 0.0
  %4752 = vmatprep.subr.mxu0 0.0
  %4753 = vmatpush2.msra.mxu0 0.0
  %4754 = vmatprep.subr.mxu0 0.0
  %4755 = vmatpush2.msra.mxu0 0.0
  %4756 = vmatprep.subr.mxu0 0.0
  %4757 = vmatpush2.msra.mxu0 0.0
  %4758 = vmatprep.subr.mxu0 0.0
  %4759 = vmatpush2.msra.mxu0 0.0
  %4760 = vmatprep.mubr.f32.mxu0 0.0
  %4761 = vmatmul.mubr.f32.gmra.mxu0 %v4679
  %v4762 = vpop.f32.mrf.mxu0
  %v4763 = vadd.f32 0.0, %v4762
  %v4764 = vpop.f32.mrf.mxu0
  %4765 = vmatprep.mubr.f32.mxu0 0.0
  %4766 = vmatmul.mubr.f32.gmra.mxu0 %v4682
  %v4767 = vpop.f32.mrf.mxu0
  %v4768 = vadd.f32 0.0, %v4767
  %v4769 = vpop.f32.mrf.mxu0
  %4770 = vmatprep.mubr.f32.mxu0 0.0
  %4771 = vmatmul.mubr.f32.gmra.mxu0 %v4685
  %v4772 = vpop.f32.mrf.mxu0
  %v4773 = vadd.f32 0.0, %v4772
  %v4774 = vpop.f32.mrf.mxu0
  %4775 = vmatprep.mubr.f32.mxu0 0.0
  %4776 = vmatmul.mubr.f32.gmra.mxu0 %v4688
  %v4777 = vpop.f32.mrf.mxu0
  %v4778 = vadd.f32 0.0, %v4777
  %v4779 = vpop.f32.mrf.mxu0
  %4780 = vmatprep.mubr.f32.mxu0 0.0
  %4781 = vmatmul.mubr.f32.gmra.mxu0 %v4691
  %v4782 = vpop.f32.mrf.mxu0
  %v4783 = vadd.f32 0.0, %v4782
  %v4784 = vpop.f32.mrf.mxu0
  %4785 = vmatprep.mubr.f32.mxu0 0.0
  %4786 = vmatmul.mubr.f32.gmra.mxu0 %v4694
  %v4787 = vpop.f32.mrf.mxu0
  %v4788 = vadd.f32 0.0, %v4787
  %v4789 = vpop.f32.mrf.mxu0
  %4790 = vdwg.mxu0
  %v4791 = vadd.f32 %v4331, %v4763
  %v4792 = vadd.f32 %v4332, %v4768
  %v4793 = vadd.f32 %v4333, %v4773
  %v4794 = vadd.f32 %v4334, %v4778
  %v4795 = vadd.f32 %v4335, %v4783
  %v4796 = vadd.f32 %v4336, %v4788
  %v4797 = vsel %vm206, %v4791, 0.0
  %4798 = vadd.xlane.f32.xlu0 %v4797
  %v4799 = vpop.xlane.xlu0 %4798
  %v4800 = vsel %vm206, %v4792, 0.0
  %4801 = vadd.xlane.f32.xlu0 %v4800
  %v4802 = vpop.xlane.xlu0 %4801
  %v4803 = vsel %vm206, %v4793, 0.0
  %4804 = vadd.xlane.f32.xlu0 %v4803
  %v4805 = vpop.xlane.xlu0 %4804
  %v4806 = vsel %vm206, %v4794, 0.0
  %4807 = vadd.xlane.f32.xlu0 %v4806
  %v4808 = vpop.xlane.xlu0 %4807
  %v4809 = vsel %vm206, %v4795, 0.0
  %4810 = vadd.xlane.f32.xlu0 %v4809
  %v4811 = vpop.xlane.xlu0 %4810
  %v4812 = vsel %vm2278, %v4796, 0.0
  %4813 = vadd.xlane.f32.xlu0 %v4812
  %v4814 = vpop.xlane.xlu0 %4813
  %v4815 = vmul.f32 %v4799, %v2282
  %v4816 = vmul.f32 %v4802, %v2282
  %v4817 = vmul.f32 %v4805, %v2282
  %v4818 = vmul.f32 %v4808, %v2282
  %v4819 = vmul.f32 %v4811, %v2282
  %v4820 = vmul.f32 %v4814, %v2282
  %v4821 = vsub.f32 %v4791, %v4815
  %v4822 = vsub.f32 %v4792, %v4816
  %v4823 = vsub.f32 %v4793, %v4817
  %v4824 = vsub.f32 %v4794, %v4818
  %v4825 = vsub.f32 %v4795, %v4819
  %v4826 = vsub.f32 %v4796, %v4820
  %v4827 = vmul.f32 %v4821, %v4821
  %v4828 = vmul.f32 %v4822, %v4822
  %v4829 = vmul.f32 %v4823, %v4823
  %v4830 = vmul.f32 %v4824, %v4824
  %v4831 = vmul.f32 %v4825, %v4825
  %v4832 = vmul.f32 %v4826, %v4826
  %v4833 = vsel %vm206, %v4827, 0.0
  %4834 = vadd.xlane.f32.xlu0 %v4833
  %v4835 = vpop.xlane.xlu0 %4834
  %v4836 = vsel %vm206, %v4828, 0.0
  %4837 = vadd.xlane.f32.xlu0 %v4836
  %v4838 = vpop.xlane.xlu0 %4837
  %v4839 = vsel %vm206, %v4829, 0.0
  %4840 = vadd.xlane.f32.xlu0 %v4839
  %v4841 = vpop.xlane.xlu0 %4840
  %v4842 = vsel %vm206, %v4830, 0.0
  %4843 = vadd.xlane.f32.xlu0 %v4842
  %v4844 = vpop.xlane.xlu0 %4843
  %v4845 = vsel %vm206, %v4831, 0.0
  %4846 = vadd.xlane.f32.xlu0 %v4845
  %v4847 = vpop.xlane.xlu0 %4846
  %v4848 = vsel %vm2278, %v4832, 0.0
  %4849 = vadd.xlane.f32.xlu0 %v4848
  %v4850 = vpop.xlane.xlu0 %4849
  %v4851 = vmul.f32 %v4835, %v2282
  %v4852 = vmul.f32 %v4838, %v2282
  %v4853 = vmul.f32 %v4841, %v2282
  %v4854 = vmul.f32 %v4844, %v2282
  %v4855 = vmul.f32 %v4847, %v2282
  %v4856 = vmul.f32 %v4850, %v2282
  %v4857 = vadd.f32 %v4851, 1e-05
  %v4858 = vadd.f32 %v4852, 1e-05
  %v4859 = vadd.f32 %v4853, 1e-05
  %v4860 = vadd.f32 %v4854, 1e-05
  %v4861 = vadd.f32 %v4855, 1e-05
  %v4862 = vadd.f32 %v4856, 1e-05
  %v4863 = vrsqrt.pop %v4857
  %v4864 = vrsqrt.pop %v4858
  %v4865 = vrsqrt.pop %v4859
  %v4866 = vrsqrt.pop %v4860
  %v4867 = vrsqrt.pop %v4861
  %v4868 = vrsqrt.pop %v4862
  %v4869 = vmul.f32 %v4821, %v4863
  %v4870 = vmul.f32 %v4822, %v4864
  %v4871 = vmul.f32 %v4823, %v4865
  %v4872 = vmul.f32 %v4824, %v4866
  %v4873 = vmul.f32 %v4825, %v4867
  %v4874 = vmul.f32 %v4826, %v4868
  %v4875 = vlaneseq
  %v4876 = vshrl.u32 %v4875, 7
  %v4877 = vsub.s32 1, %v4876
  %v4878 = vrot.slane %v2713, %v4877
  %v4879 = vmul.f32 %v4869, %v4878
  %v4880 = vmul.f32 %v4870, %v4878
  %v4881 = vmul.f32 %v4871, %v4878
  %v4882 = vmul.f32 %v4872, %v4878
  %v4883 = vmul.f32 %v4873, %v4878
  %v4884 = vmul.f32 %v4874, %v4878
  %v4885 = vlaneseq
  %v4886 = vshrl.u32 %v4885, 7
  %v4887 = vsub.s32 2, %v4886
  %v4888 = vrot.slane %v2713, %v4887
  %v4889 = vadd.f32 %v4879, %v4888
  %v4890 = vadd.f32 %v4880, %v4888
  %v4891 = vadd.f32 %v4881, %v4888
  %v4892 = vadd.f32 %v4882, %v4888
  %v4893 = vadd.f32 %v4883, %v4888
  %v4894 = vadd.f32 %v4884, %v4888
  %s4895 = scalar_lea.vmem %s5, 32
  %v4896 = vld [vmem:[%s4895] sm:$0xff]
  %v4897 = vld [vmem:[%s4895 + $0x8] sm:$0xff]
  %v4898 = vld [vmem:[%s4895 + $0x10] sm:$0xff]
  %v4899 = vld [vmem:[%s4895 + $0x18] sm:$0xff]
  %s4900 = scalar_lea.vmem %s7, 1
  %v4901 = vld [vmem:[%s4900] sm:$0x1]
  %v4903 = vlaneseq
  %v4904 = vshrl.u32 %v4903, 7
  %v4905 = vsub.s32 0, %v4904
  %v4906 = vrot.slane %v4901, %v4905
  %v4909 = vsel %vm206, %v4889, 0
  %v4912 = vsel %vm206, %v4890, 0
  %v4915 = vsel %vm206, %v4891, 0
  %v4918 = vsel %vm206, %v4892, 0
  %v4921 = vsel %vm206, %v4893, 0
  %v4924 = vsel %vm206, %v4894, 0
  %4926 = vmatprep.subr.mxu0 0.0
  %4927 = vmatpush1.msra.mxu0 0.0
  %4928 = vmatprep.subr.mxu0 0.0
  %4929 = vmatpush1.msra.mxu0 0.0
  %4930 = vmatprep.subr.mxu0 0.0
  %4931 = vmatpush1.msra.mxu0 0.0
  %4932 = vmatprep.subr.mxu0 0.0
  %4933 = vmatpush1.msra.mxu0 0.0
  %4934 = vmatprep.subr.mxu0 0.0
  %4935 = vmatpush1.msra.mxu0 0.0
  %4936 = vmatprep.subr.mxu0 0.0
  %4937 = vmatpush1.msra.mxu0 0.0
  %4938 = vmatprep.subr.mxu0 0.0
  %4939 = vmatpush1.msra.mxu0 0.0
  %4940 = vmatprep.subr.mxu0 0.0
  %4941 = vmatpush1.msra.mxu0 0.0
  %4942 = vmatprep.subr.mxu0 0.0
  %4943 = vmatpush1.msra.mxu0 0.0
  %4944 = vmatprep.subr.mxu0 0.0
  %4945 = vmatpush1.msra.mxu0 0.0
  %4946 = vmatprep.subr.mxu0 0.0
  %4947 = vmatpush1.msra.mxu0 0.0
  %4948 = vmatprep.subr.mxu0 0.0
  %4949 = vmatpush1.msra.mxu0 0.0
  %4950 = vmatprep.subr.mxu0 0.0
  %4951 = vmatpush1.msra.mxu0 %v4899
  %4952 = vmatprep.subr.mxu0 0.0
  %4953 = vmatpush1.msra.mxu0 %v4898
  %4954 = vmatprep.subr.mxu0 0.0
  %4955 = vmatpush1.msra.mxu0 %v4897
  %4956 = vmatprep.subr.mxu0 0.0
  %4957 = vmatpush1.msra.mxu0 %v4896
  %4958 = vmatprep.subr.mxu0 0.0
  %4959 = vmatpush2.msra.mxu0 0.0
  %4960 = vmatprep.subr.mxu0 0.0
  %4961 = vmatpush2.msra.mxu0 0.0
  %4962 = vmatprep.subr.mxu0 0.0
  %4963 = vmatpush2.msra.mxu0 0.0
  %4964 = vmatprep.subr.mxu0 0.0
  %4965 = vmatpush2.msra.mxu0 0.0
  %4966 = vmatprep.subr.mxu0 0.0
  %4967 = vmatpush2.msra.mxu0 0.0
  %4968 = vmatprep.subr.mxu0 0.0
  %4969 = vmatpush2.msra.mxu0 0.0
  %4970 = vmatprep.subr.mxu0 0.0
  %4971 = vmatpush2.msra.mxu0 0.0
  %4972 = vmatprep.subr.mxu0 0.0
  %4973 = vmatpush2.msra.mxu0 0.0
  %4974 = vmatprep.subr.mxu0 0.0
  %4975 = vmatpush2.msra.mxu0 0.0
  %4976 = vmatprep.subr.mxu0 0.0
  %4977 = vmatpush2.msra.mxu0 0.0
  %4978 = vmatprep.subr.mxu0 0.0
  %4979 = vmatpush2.msra.mxu0 0.0
  %4980 = vmatprep.subr.mxu0 0.0
  %4981 = vmatpush2.msra.mxu0 0.0
  %4982 = vmatprep.subr.mxu0 0.0
  %4983 = vmatpush2.msra.mxu0 0.0
  %4984 = vmatprep.subr.mxu0 0.0
  %4985 = vmatpush2.msra.mxu0 0.0
  %4986 = vmatprep.subr.mxu0 0.0
  %4987 = vmatpush2.msra.mxu0 0.0
  %4988 = vmatprep.subr.mxu0 0.0
  %4989 = vmatpush2.msra.mxu0 0.0
  %4990 = vmatprep.mubr.f32.mxu0 0.0
  %4991 = vmatmul.mubr.f32.gmra.mxu0 %v4909
  %v4992 = vpop.f32.mrf.mxu0
  %v4993 = vadd.f32 %v4906, %v4992
  %v4994 = vpop.f32.mrf.mxu0
  %4995 = vmatprep.mubr.f32.mxu0 0.0
  %4996 = vmatmul.mubr.f32.gmra.mxu0 %v4912
  %v4997 = vpop.f32.mrf.mxu0
  %v4998 = vadd.f32 %v4906, %v4997
  %v4999 = vpop.f32.mrf.mxu0
  %5000 = vmatprep.mubr.f32.mxu0 0.0
  %5001 = vmatmul.mubr.f32.gmra.mxu0 %v4915
  %v5002 = vpop.f32.mrf.mxu0
  %v5003 = vadd.f32 %v4906, %v5002
  %v5004 = vpop.f32.mrf.mxu0
  %5005 = vmatprep.mubr.f32.mxu0 0.0
  %5006 = vmatmul.mubr.f32.gmra.mxu0 %v4918
  %v5007 = vpop.f32.mrf.mxu0
  %v5008 = vadd.f32 %v4906, %v5007
  %v5009 = vpop.f32.mrf.mxu0
  %5010 = vmatprep.mubr.f32.mxu0 0.0
  %5011 = vmatmul.mubr.f32.gmra.mxu0 %v4921
  %v5012 = vpop.f32.mrf.mxu0
  %v5013 = vadd.f32 %v4906, %v5012
  %v5014 = vpop.f32.mrf.mxu0
  %5015 = vmatprep.mubr.f32.mxu0 0.0
  %5016 = vmatmul.mubr.f32.gmra.mxu0 %v4924
  %v5017 = vpop.f32.mrf.mxu0
  %v5018 = vadd.f32 %v4906, %v5017
  %v5019 = vpop.f32.mrf.mxu0
  %5020 = vdwg.mxu0
  %v5021 = vmax.f32 %v4993, 0.0
  %v5022 = vmax.f32 %v4998, 0.0
  %v5023 = vmax.f32 %v5003, 0.0
  %v5024 = vmax.f32 %v5008, 0.0
  %v5025 = vmax.f32 %v5013, 0.0
  %v5026 = vmax.f32 %v5018, 0.0
  %s5027 = scalar_lea.vmem %s6, 128
  %v5028 = vld [vmem:[%s5027] sm:$0xff]
  %v5029 = vld [vmem:[%s5027 + $0x8] sm:$0xff]
  %v5030 = vld [vmem:[%s5027 + $0x10] sm:$0xff]
  %v5031 = vld [vmem:[%s5027 + $0x18] sm:$0xff]
  %v5032 = vld [vmem:[%s5027 + $0x20] sm:$0xff]
  %v5033 = vld [vmem:[%s5027 + $0x28] sm:$0xff]
  %v5034 = vld [vmem:[%s5027 + $0x30] sm:$0xff]
  %v5035 = vld [vmem:[%s5027 + $0x38] sm:$0xff]
  %v5036 = vld [vmem:[%s5027 + $0x40] sm:$0xff]
  %v5037 = vld [vmem:[%s5027 + $0x48] sm:$0xff]
  %v5038 = vld [vmem:[%s5027 + $0x50] sm:$0xff]
  %v5039 = vld [vmem:[%s5027 + $0x58] sm:$0xff]
  %v5040 = vld [vmem:[%s5027 + $0x60] sm:$0xff]
  %v5041 = vld [vmem:[%s5027 + $0x68] sm:$0xff]
  %v5042 = vld [vmem:[%s5027 + $0x70] sm:$0xff]
  %v5043 = vld [vmem:[%s5027 + $0x78] sm:$0xff]
  %v5044 = vlaneseq
  %v5045 = vshrl.u32 %v5044, 7
  %v5046 = vsub.s32 3, %v5045
  %v5047 = vrot.slane %v2713, %v5046
  %5048 = vmatprep.subr.mxu0 0.0
  %5049 = vmatpush1.msra.mxu0 %v5043
  %5050 = vmatprep.subr.mxu0 0.0
  %5051 = vmatpush1.msra.mxu0 %v5042
  %5052 = vmatprep.subr.mxu0 0.0
  %5053 = vmatpush1.msra.mxu0 %v5041
  %5054 = vmatprep.subr.mxu0 0.0
  %5055 = vmatpush1.msra.mxu0 %v5040
  %5056 = vmatprep.subr.mxu0 0.0
  %5057 = vmatpush1.msra.mxu0 %v5039
  %5058 = vmatprep.subr.mxu0 0.0
  %5059 = vmatpush1.msra.mxu0 %v5038
  %5060 = vmatprep.subr.mxu0 0.0
  %5061 = vmatpush1.msra.mxu0 %v5037
  %5062 = vmatprep.subr.mxu0 0.0
  %5063 = vmatpush1.msra.mxu0 %v5036
  %5064 = vmatprep.subr.mxu0 0.0
  %5065 = vmatpush1.msra.mxu0 %v5035
  %5066 = vmatprep.subr.mxu0 0.0
  %5067 = vmatpush1.msra.mxu0 %v5034
  %5068 = vmatprep.subr.mxu0 0.0
  %5069 = vmatpush1.msra.mxu0 %v5033
  %5070 = vmatprep.subr.mxu0 0.0
  %5071 = vmatpush1.msra.mxu0 %v5032
  %5072 = vmatprep.subr.mxu0 0.0
  %5073 = vmatpush1.msra.mxu0 %v5031
  %5074 = vmatprep.subr.mxu0 0.0
  %5075 = vmatpush1.msra.mxu0 %v5030
  %5076 = vmatprep.subr.mxu0 0.0
  %5077 = vmatpush1.msra.mxu0 %v5029
  %5078 = vmatprep.subr.mxu0 0.0
  %5079 = vmatpush1.msra.mxu0 %v5028
  %5080 = vmatprep.subr.mxu0 0.0
  %5081 = vmatpush2.msra.mxu0 0.0
  %5082 = vmatprep.subr.mxu0 0.0
  %5083 = vmatpush2.msra.mxu0 0.0
  %5084 = vmatprep.subr.mxu0 0.0
  %5085 = vmatpush2.msra.mxu0 0.0
  %5086 = vmatprep.subr.mxu0 0.0
  %5087 = vmatpush2.msra.mxu0 0.0
  %5088 = vmatprep.subr.mxu0 0.0
  %5089 = vmatpush2.msra.mxu0 0.0
  %5090 = vmatprep.subr.mxu0 0.0
  %5091 = vmatpush2.msra.mxu0 0.0
  %5092 = vmatprep.subr.mxu0 0.0
  %5093 = vmatpush2.msra.mxu0 0.0
  %5094 = vmatprep.subr.mxu0 0.0
  %5095 = vmatpush2.msra.mxu0 0.0
  %5096 = vmatprep.subr.mxu0 0.0
  %5097 = vmatpush2.msra.mxu0 0.0
  %5098 = vmatprep.subr.mxu0 0.0
  %5099 = vmatpush2.msra.mxu0 0.0
  %5100 = vmatprep.subr.mxu0 0.0
  %5101 = vmatpush2.msra.mxu0 0.0
  %5102 = vmatprep.subr.mxu0 0.0
  %5103 = vmatpush2.msra.mxu0 0.0
  %5104 = vmatprep.subr.mxu0 0.0
  %5105 = vmatpush2.msra.mxu0 0.0
  %5106 = vmatprep.subr.mxu0 0.0
  %5107 = vmatpush2.msra.mxu0 0.0
  %5108 = vmatprep.subr.mxu0 0.0
  %5109 = vmatpush2.msra.mxu0 0.0
  %5110 = vmatprep.subr.mxu0 0.0
  %5111 = vmatpush2.msra.mxu0 0.0
  %5112 = vmatprep.mubr.f32.mxu0 0.0
  %5113 = vmatmul.mubr.f32.gmra.mxu0 %v5021
  %v5114 = vpop.f32.mrf.mxu0
  %v5115 = vadd.f32 %v5047, %v5114
  %v5116 = vpop.f32.mrf.mxu0
  %5117 = vmatprep.mubr.f32.mxu0 0.0
  %5118 = vmatmul.mubr.f32.gmra.mxu0 %v5022
  %v5119 = vpop.f32.mrf.mxu0
  %v5120 = vadd.f32 %v5047, %v5119
  %v5121 = vpop.f32.mrf.mxu0
  %5122 = vmatprep.mubr.f32.mxu0 0.0
  %5123 = vmatmul.mubr.f32.gmra.mxu0 %v5023
  %v5124 = vpop.f32.mrf.mxu0
  %v5125 = vadd.f32 %v5047, %v5124
  %v5126 = vpop.f32.mrf.mxu0
  %5127 = vmatprep.mubr.f32.mxu0 0.0
  %5128 = vmatmul.mubr.f32.gmra.mxu0 %v5024
  %v5129 = vpop.f32.mrf.mxu0
  %v5130 = vadd.f32 %v5047, %v5129
  %v5131 = vpop.f32.mrf.mxu0
  %5132 = vmatprep.mubr.f32.mxu0 0.0
  %5133 = vmatmul.mubr.f32.gmra.mxu0 %v5025
  %v5134 = vpop.f32.mrf.mxu0
  %v5135 = vadd.f32 %v5047, %v5134
  %v5136 = vpop.f32.mrf.mxu0
  %5137 = vmatprep.mubr.f32.mxu0 0.0
  %5138 = vmatmul.mubr.f32.gmra.mxu0 %v5026
  %v5139 = vpop.f32.mrf.mxu0
  %v5140 = vadd.f32 %v5047, %v5139
  %v5141 = vpop.f32.mrf.mxu0
  %5142 = vdwg.mxu0
  %v5143 = vadd.f32 %v5115, %v4889
  %v5144 = vadd.f32 %v5120, %v4890
  %v5145 = vadd.f32 %v5125, %v4891
  %v5146 = vadd.f32 %v5130, %v4892
  %v5147 = vadd.f32 %v5135, %v4893
  %v5148 = vadd.f32 %v5140, %v4894
  %v5149 = vsel %vm206, %v5143, 0.0
  %5150 = vadd.xlane.f32.xlu0 %v5149
  %v5151 = vpop.xlane.xlu0 %5150
  %v5152 = vsel %vm206, %v5144, 0.0
  %5153 = vadd.xlane.f32.xlu0 %v5152
  %v5154 = vpop.xlane.xlu0 %5153
  %v5155 = vsel %vm206, %v5145, 0.0
  %5156 = vadd.xlane.f32.xlu0 %v5155
  %v5157 = vpop.xlane.xlu0 %5156
  %v5158 = vsel %vm206, %v5146, 0.0
  %5159 = vadd.xlane.f32.xlu0 %v5158
  %v5160 = vpop.xlane.xlu0 %5159
  %v5161 = vsel %vm206, %v5147, 0.0
  %5162 = vadd.xlane.f32.xlu0 %v5161
  %v5163 = vpop.xlane.xlu0 %5162
  %v5164 = vsel %vm2278, %v5148, 0.0
  %5165 = vadd.xlane.f32.xlu0 %v5164
  %v5166 = vpop.xlane.xlu0 %5165
  %v5167 = vmul.f32 %v5151, %v2282
  %v5168 = vmul.f32 %v5154, %v2282
  %v5169 = vmul.f32 %v5157, %v2282
  %v5170 = vmul.f32 %v5160, %v2282
  %v5171 = vmul.f32 %v5163, %v2282
  %v5172 = vmul.f32 %v5166, %v2282
  %v5173 = vsub.f32 %v5143, %v5167
  %v5174 = vsub.f32 %v5144, %v5168
  %v5175 = vsub.f32 %v5145, %v5169
  %v5176 = vsub.f32 %v5146, %v5170
  %v5177 = vsub.f32 %v5147, %v5171
  %v5178 = vsub.f32 %v5148, %v5172
  %v5179 = vmul.f32 %v5173, %v5173
  %v5180 = vmul.f32 %v5174, %v5174
  %v5181 = vmul.f32 %v5175, %v5175
  %v5182 = vmul.f32 %v5176, %v5176
  %v5183 = vmul.f32 %v5177, %v5177
  %v5184 = vmul.f32 %v5178, %v5178
  %v5185 = vsel %vm206, %v5179, 0.0
  %5186 = vadd.xlane.f32.xlu0 %v5185
  %v5187 = vpop.xlane.xlu0 %5186
  %v5188 = vsel %vm206, %v5180, 0.0
  %5189 = vadd.xlane.f32.xlu0 %v5188
  %v5190 = vpop.xlane.xlu0 %5189
  %v5191 = vsel %vm206, %v5181, 0.0
  %5192 = vadd.xlane.f32.xlu0 %v5191
  %v5193 = vpop.xlane.xlu0 %5192
  %v5194 = vsel %vm206, %v5182, 0.0
  %5195 = vadd.xlane.f32.xlu0 %v5194
  %v5196 = vpop.xlane.xlu0 %5195
  %v5197 = vsel %vm206, %v5183, 0.0
  %5198 = vadd.xlane.f32.xlu0 %v5197
  %v5199 = vpop.xlane.xlu0 %5198
  %v5200 = vsel %vm2278, %v5184, 0.0
  %5201 = vadd.xlane.f32.xlu0 %v5200
  %v5202 = vpop.xlane.xlu0 %5201
  %v5203 = vmul.f32 %v5187, %v2282
  %v5204 = vmul.f32 %v5190, %v2282
  %v5205 = vmul.f32 %v5193, %v2282
  %v5206 = vmul.f32 %v5196, %v2282
  %v5207 = vmul.f32 %v5199, %v2282
  %v5208 = vmul.f32 %v5202, %v2282
  %v5209 = vadd.f32 %v5203, 1e-05
  %v5210 = vadd.f32 %v5204, 1e-05
  %v5211 = vadd.f32 %v5205, 1e-05
  %v5212 = vadd.f32 %v5206, 1e-05
  %v5213 = vadd.f32 %v5207, 1e-05
  %v5214 = vadd.f32 %v5208, 1e-05
  %v5215 = vrsqrt.pop %v5209
  %v5216 = vrsqrt.pop %v5210
  %v5217 = vrsqrt.pop %v5211
  %v5218 = vrsqrt.pop %v5212
  %v5219 = vrsqrt.pop %v5213
  %v5220 = vrsqrt.pop %v5214
  %v5221 = vmul.f32 %v5173, %v5215
  %v5222 = vmul.f32 %v5174, %v5216
  %v5223 = vmul.f32 %v5175, %v5217
  %v5224 = vmul.f32 %v5176, %v5218
  %v5225 = vmul.f32 %v5177, %v5219
  %v5226 = vmul.f32 %v5178, %v5220
  %v5227 = vlaneseq
  %v5228 = vshrl.u32 %v5227, 7
  %v5229 = vsub.s32 4, %v5228
  %v5230 = vrot.slane %v2713, %v5229
  %v5231 = vmul.f32 %v5221, %v5230
  %v5232 = vmul.f32 %v5222, %v5230
  %v5233 = vmul.f32 %v5223, %v5230
  %v5234 = vmul.f32 %v5224, %v5230
  %v5235 = vmul.f32 %v5225, %v5230
  %v5236 = vmul.f32 %v5226, %v5230
  %v5237 = vlaneseq
  %v5238 = vshrl.u32 %v5237, 7
  %v5239 = vsub.s32 5, %v5238
  %v5240 = vrot.slane %v2713, %v5239
  %v5241 = vadd.f32 %v5231, %v5240
  %v5242 = vadd.f32 %v5232, %v5240
  %v5243 = vadd.f32 %v5233, %v5240
  %v5244 = vadd.f32 %v5234, %v5240
  %v5245 = vadd.f32 %v5235, %v5240
  %v5246 = vadd.f32 %v5236, %v5240
  %v5247 = vld [vmem:[%s9] sm:$0xff]
  %v5248 = vld [vmem:[%s9 + $0x8] sm:$0xff]
  %v5249 = vld [vmem:[%s9 + $0x10] sm:$0xff]
  %v5250 = vld [vmem:[%s9 + $0x18] sm:$0xff]
  %v5251 = vld [vmem:[%s10] sm:$0x1]
  %v5253 = vlaneseq
  %v5254 = vshrl.u32 %v5253, 7
  %v5255 = vsub.s32 0, %v5254
  %v5256 = vrot.slane %v5251, %v5255
  %v5259 = vsel %vm206, %v5241, 0
  %v5262 = vsel %vm206, %v5242, 0
  %v5265 = vsel %vm206, %v5243, 0
  %v5268 = vsel %vm206, %v5244, 0
  %v5271 = vsel %vm206, %v5245, 0
  %v5274 = vsel %vm206, %v5246, 0
  %5276 = vmatprep.subr.mxu0 0.0
  %5277 = vmatpush1.msra.mxu0 0.0
  %5278 = vmatprep.subr.mxu0 0.0
  %5279 = vmatpush1.msra.mxu0 0.0
  %5280 = vmatprep.subr.mxu0 0.0
  %5281 = vmatpush1.msra.mxu0 0.0
  %5282 = vmatprep.subr.mxu0 0.0
  %5283 = vmatpush1.msra.mxu0 0.0
  %5284 = vmatprep.subr.mxu0 0.0
  %5285 = vmatpush1.msra.mxu0 0.0
  %5286 = vmatprep.subr.mxu0 0.0
  %5287 = vmatpush1.msra.mxu0 0.0
  %5288 = vmatprep.subr.mxu0 0.0
  %5289 = vmatpush1.msra.mxu0 0.0
  %5290 = vmatprep.subr.mxu0 0.0
  %5291 = vmatpush1.msra.mxu0 0.0
  %5292 = vmatprep.subr.mxu0 0.0
  %5293 = vmatpush1.msra.mxu0 0.0
  %5294 = vmatprep.subr.mxu0 0.0
  %5295 = vmatpush1.msra.mxu0 0.0
  %5296 = vmatprep.subr.mxu0 0.0
  %5297 = vmatpush1.msra.mxu0 0.0
  %5298 = vmatprep.subr.mxu0 0.0
  %5299 = vmatpush1.msra.mxu0 0.0
  %5300 = vmatprep.subr.mxu0 0.0
  %5301 = vmatpush1.msra.mxu0 %v5250
  %5302 = vmatprep.subr.mxu0 0.0
  %5303 = vmatpush1.msra.mxu0 %v5249
  %5304 = vmatprep.subr.mxu0 0.0
  %5305 = vmatpush1.msra.mxu0 %v5248
  %5306 = vmatprep.subr.mxu0 0.0
  %5307 = vmatpush1.msra.mxu0 %v5247
  %5308 = vmatprep.subr.mxu0 0.0
  %5309 = vmatpush2.msra.mxu0 0.0
  %5310 = vmatprep.subr.mxu0 0.0
  %5311 = vmatpush2.msra.mxu0 0.0
  %5312 = vmatprep.subr.mxu0 0.0
  %5313 = vmatpush2.msra.mxu0 0.0
  %5314 = vmatprep.subr.mxu0 0.0
  %5315 = vmatpush2.msra.mxu0 0.0
  %5316 = vmatprep.subr.mxu0 0.0
  %5317 = vmatpush2.msra.mxu0 0.0
  %5318 = vmatprep.subr.mxu0 0.0
  %5319 = vmatpush2.msra.mxu0 0.0
  %5320 = vmatprep.subr.mxu0 0.0
  %5321 = vmatpush2.msra.mxu0 0.0
  %5322 = vmatprep.subr.mxu0 0.0
  %5323 = vmatpush2.msra.mxu0 0.0
  %5324 = vmatprep.subr.mxu0 0.0
  %5325 = vmatpush2.msra.mxu0 0.0
  %5326 = vmatprep.subr.mxu0 0.0
  %5327 = vmatpush2.msra.mxu0 0.0
  %5328 = vmatprep.subr.mxu0 0.0
  %5329 = vmatpush2.msra.mxu0 0.0
  %5330 = vmatprep.subr.mxu0 0.0
  %5331 = vmatpush2.msra.mxu0 0.0
  %5332 = vmatprep.subr.mxu0 0.0
  %5333 = vmatpush2.msra.mxu0 0.0
  %5334 = vmatprep.subr.mxu0 0.0
  %5335 = vmatpush2.msra.mxu0 0.0
  %5336 = vmatprep.subr.mxu0 0.0
  %5337 = vmatpush2.msra.mxu0 0.0
  %5338 = vmatprep.subr.mxu0 0.0
  %5339 = vmatpush2.msra.mxu0 0.0
  %5340 = vmatprep.mubr.f32.mxu0 0.0
  %5341 = vmatmul.mubr.f32.gmra.mxu0 %v5259
  %v5342 = vpop.f32.mrf.mxu0
  %v5343 = vadd.f32 %v5256, %v5342
  %v5344 = vpop.f32.mrf.mxu0
  %5345 = vmatprep.mubr.f32.mxu0 0.0
  %5346 = vmatmul.mubr.f32.gmra.mxu0 %v5262
  %v5347 = vpop.f32.mrf.mxu0
  %v5348 = vadd.f32 %v5256, %v5347
  %v5349 = vpop.f32.mrf.mxu0
  %5350 = vmatprep.mubr.f32.mxu0 0.0
  %5351 = vmatmul.mubr.f32.gmra.mxu0 %v5265
  %v5352 = vpop.f32.mrf.mxu0
  %v5353 = vadd.f32 %v5256, %v5352
  %v5354 = vpop.f32.mrf.mxu0
  %5355 = vmatprep.mubr.f32.mxu0 0.0
  %5356 = vmatmul.mubr.f32.gmra.mxu0 %v5268
  %v5357 = vpop.f32.mrf.mxu0
  %v5358 = vadd.f32 %v5256, %v5357
  %v5359 = vpop.f32.mrf.mxu0
  %5360 = vmatprep.mubr.f32.mxu0 0.0
  %5361 = vmatmul.mubr.f32.gmra.mxu0 %v5271
  %v5362 = vpop.f32.mrf.mxu0
  %v5363 = vadd.f32 %v5256, %v5362
  %v5364 = vpop.f32.mrf.mxu0
  %5365 = vmatprep.mubr.f32.mxu0 0.0
  %5366 = vmatmul.mubr.f32.gmra.mxu0 %v5274
  %v5367 = vpop.f32.mrf.mxu0
  %v5368 = vadd.f32 %v5256, %v5367
  %v5369 = vpop.f32.mrf.mxu0
  %5370 = vdwg.mxu0
  %5371 = vst.msk [vmem:[%s11] sm:$0xff] %vm206, %v5343
  %5372 = vst.msk [vmem:[%s11 + $0x8] sm:$0xff] %vm206, %v5348
  %5373 = vst.msk [vmem:[%s11 + $0x10] sm:$0xff] %vm206, %v5353
  %5374 = vst.msk [vmem:[%s11 + $0x18] sm:$0xff] %vm206, %v5358
  %5375 = vst.msk [vmem:[%s11 + $0x20] sm:$0xff] %vm206, %v5363
  %5376 = vst.msk [vmem:[%s11 + $0x28] sm:$0x3] %vm2278, %v5368
  // Predicated region
  $region46: #{tpu_custom_call.1} parent=0 // pred_check
    _
  $region47: #{tpu_custom_call.1} parent=0 // pred_check_branch
    %5378 = sbr.rel (0) target = $region49
  $region48: #{tpu_custom_call.1} parent=0 // pred_region
    _
  $region49: #{tpu_custom_call.1} parent=0 // pred_fallthru
    _
  // Predicated region
  $region50: #{tpu_custom_call.1} parent=0 // pred_check
    _
  $region51: #{tpu_custom_call.1} parent=0 // pred_check_branch
    %5380 = sbr.rel (0) target = $region53
  $region52: #{tpu_custom_call.1} parent=0 // pred_region
    _
  $region53: #{tpu_custom_call.1} parent=0 // pred_fallthru
    _

</llo_original>
